<compile_context>
chip_gen: v5e
topology: v5e:2x2
jax: 0.10.0
libtpu: 0.0.40
codegen_flags: <defaults>
</compile_context>

<pallas_src>
import functools

import jax
import jax.numpy as jnp
from jax.experimental import pallas as pl
from jax.experimental.pallas import tpu as pltpu

EPS = 1e-5
LANE = 128        # TPU lane width; Cout is padded to a multiple of this


def _round_up(x, m):
    return (x + m - 1) // m * m


def _tpu_vmem_bytes():
    try:
        return int(pltpu.get_tpu_info().vmem_capacity_bytes)
    except Exception:
        return 64 * 1024 * 1024


_VMEM_CAP = _tpu_vmem_bytes()
if _VMEM_CAP >= 100 * 1024 * 1024:        # v5e / v6e: 128 MiB physical VMEM
    TP_MAX = 1024                          # bigger spatial tiles -> fewer grid steps
    VMEM_LIMIT = 96 * 1024 * 1024
else:                                      # v7x (64 MiB / TensorCore) or unknown
    TP_MAX = 512
    VMEM_LIMIT = 48 * 1024 * 1024


def _spatial_tiling(p_out):
    tp = min(TP_MAX, _round_up(p_out, 8))
    p_pad = _round_up(p_out, tp)
    return tp, p_pad


# ----------------------------------------------------------------------------
# Pallas kernel: fused 3x3 conv (single deep contraction) + BN affine
#                (+ 1x1 shortcut + BN | identity add) (+ ReLU) (+ wrap masking)
# ----------------------------------------------------------------------------
def _make_conv3x3_bn_kernel(tap_offsets, tp, cin_eff, relu, shortcut_mode,
                            n_p_tiles, masked):
    fuse_taps = (cin_eff % LANE == 0)      # lane-aligned pieces -> cheap lane concat

    def kernel(*refs):
        it = iter(refs)
        x_ref = next(it)
        w_ref = next(it)
        scale_ref = next(it)
        shift_ref = next(it)
        mask_ref = next(it) if masked else None
        if shortcut_mode == "proj":
            xsc_ref, wsc_ref = next(it), next(it)
            scale_sc_ref, shift_sc_ref = next(it), next(it)
        elif shortcut_mode == "identity":
            xsc_ref = next(it)
        o_ref = next(it)

        if n_p_tiles > 1:
            base = pl.multiple_of(pl.program_id(2) * tp, 8)
        else:
            base = 0                        # single spatial tile -> static tap slices

        if fuse_taps:
            # Stack the 9 shifted tap windows side-by-side along lanes (one explicit
            # staging pass) and do ONE deep MXU contraction (K = 9*Cin).
            lhs = jnp.concatenate(
                [x_ref[0, pl.ds(base + off, tp), :] for off in tap_offsets],
                axis=-1)
            out = jnp.dot(lhs, w_ref[...], preferred_element_type=jnp.float32)
        else:
            # Small / unaligned Cin (conv1): per-tap matmuls (contraction-starved anyway).
            out = jnp.zeros((tp, o_ref.shape[2]), jnp.float32)
            for t, off in enumerate(tap_offsets):
                lhs = x_ref[0, pl.ds(base + off, tp), :]
                wt = w_ref[t * cin_eff:(t + 1) * cin_eff, :]
                out = out + jnp.dot(lhs, wt, preferred_element_type=jnp.float32)

        out = out * scale_ref[...] + shift_ref[...]
        if shortcut_mode == "proj":
            sc = jnp.dot(xsc_ref[0], wsc_ref[...], preferred_element_type=jnp.float32)
            out = out + sc * scale_sc_ref[...] + shift_sc_ref[...]
        elif shortcut_mode == "identity":
            out = out + xsc_ref[0].astype(jnp.float32)     # no identity matmul / BN FMA
        if relu:
            out = jnp.maximum(out, 0.0)
        if masked:
            # zero the wrap/tail flat rows so this output can feed the next conv directly
            out = out * mask_ref[...]
        o_ref[0] = out.astype(o_ref.dtype)

    return kernel


# ----------------------------------------------------------------------------
# Wrapper on the flat-row layout: geometry, BlockSpecs, pallas_call
# ----------------------------------------------------------------------------
def conv3x3_bn_flat(x_flat, hp, wp, w_packed, scale, shift, *, relu,
                    shortcut=None, identity_shortcut=None, mask_output=False):
    """Fused 3x3 conv + BN affine (+ shortcut + add) (+ ReLU) on flat-row input.

    x_flat:   (N, pf_in, Cin_eff) bf16 — zero-padded activation flattened over
              (hp rows x wp cols), tail-padded so every tap slice is in bounds.
    w_packed: (9*Cin_eff, Cpad) bf16 (taps stacked along the contraction dim).
    scale/shift: (1, Cpad) f32 folded-BN affine (zero in padded channels).
    shortcut: optional projection (sc_flat (N,p_pad,Csc), wsc (Csc,Cpad),
              scale_sc, shift_sc); identity_shortcut: optional (N,p_pad,Cpad) add.
    Returns (N, p_pad, Cpad) bf16 flat output over (hp-2 rows x wp cols).
    """
    n, pf_in, cin_eff = x_flat.shape
    kcin, cpad = w_packed.shape
    assert kcin == 9 * cin_eff and cpad % LANE == 0

    ho, wo = hp - 2, wp - 2                 # stride-1 output extent
    p_out = ho * wp                         # flat output slab (keeps wrap columns)
    tp, p_pad = _spatial_tiling(p_out)
    assert pf_in >= p_pad + 2 * wp + 2, (pf_in, p_pad, wp)

    tc = 256 if cpad % 256 == 0 else LANE   # fill the 256-wide MXU on deep layers
    n_c_tiles = cpad // tc
    n_p_tiles = p_pad // tp
    # Cout tiles outer, spatial tiles inner: weight/affine blocks stay resident
    grid = (n, n_c_tiles, n_p_tiles)

    tap_offsets = tuple(kh * wp + kw for kh in range(3) for kw in range(3))

    in_specs = [
        # whole flat image stays resident in VMEM across all (ci, pi) tiles of an image
        pl.BlockSpec((1, pf_in, cin_eff), lambda ni, ci, pi: (ni, 0, 0)),
        pl.BlockSpec((9 * cin_eff, tc), lambda ni, ci, pi: (0, ci)),
        pl.BlockSpec((1, tc), lambda ni, ci, pi: (0, ci)),
        pl.BlockSpec((1, tc), lambda ni, ci, pi: (0, ci)),
    ]
    inputs = [x_flat, w_packed, scale.astype(jnp.float32), shift.astype(jnp.float32)]

    if mask_output:
        pos = jnp.arange(p_pad, dtype=jnp.int32)
        mask = ((pos < p_out) & (pos % wp < wo)).astype(jnp.float32).reshape(p_pad, 1)
        in_specs.append(pl.BlockSpec((tp, 1), lambda ni, ci, pi: (pi, 0)))
        inputs.append(mask)

    shortcut_mode = None
    if shortcut is not None:
        sc_flat, wsc, scale_sc, shift_sc = shortcut
        c_sc = sc_flat.shape[-1]
        in_specs += [
            pl.BlockSpec((1, tp, c_sc), lambda ni, ci, pi: (ni, pi, 0)),
            pl.BlockSpec((c_sc, tc), lambda ni, ci, pi: (0, ci)),
            pl.BlockSpec((1, tc), lambda ni, ci, pi: (0, ci)),
            pl.BlockSpec((1, tc), lambda ni, ci, pi: (0, ci)),
        ]
        inputs += [sc_flat, wsc,
                   scale_sc.astype(jnp.float32), shift_sc.astype(jnp.float32)]
        shortcut_mode = "proj"
    elif identity_shortcut is not None:
        in_specs.append(pl.BlockSpec((1, tp, tc), lambda ni, ci, pi: (ni, pi, ci)))
        inputs.append(identity_shortcut)
        shortcut_mode = "identity"

    kernel = _make_conv3x3_bn_kernel(tap_offsets, tp, cin_eff, relu, shortcut_mode,
                                     n_p_tiles, mask_output)

    return pl.pallas_call(
        kernel,
        out_shape=jax.ShapeDtypeStruct((n, p_pad, cpad), jnp.bfloat16),
        grid=grid,
        in_specs=in_specs,
        out_specs=pl.BlockSpec((1, tp, tc), lambda ni, ci, pi: (ni, pi, ci)),
        compiler_params=pltpu.CompilerParams(
            dimension_semantics=("parallel", "parallel", "parallel"),
            vmem_limit_bytes=VMEM_LIMIT,
        ),
    )(*inputs)


# ----------------------------------------------------------------------------
# Flat-layout packing helpers
# ----------------------------------------------------------------------------
def _nhwc_to_flat(x_nhwc, padding):
    """Zero-pad spatially, flatten rows, tail-pad so every tap slice is in bounds."""
    n, h, w, c = x_nhwc.shape
    hp, wp = h + 2 * padding, w + 2 * padding
    ho = hp - 2
    _, p_pad = _spatial_tiling(ho * wp)
    pf = _round_up(p_pad + 2 * wp + 2, 8)
    xp = jnp.pad(x_nhwc, ((0, 0), (padding, padding), (padding, padding), (0, 0)))
    xf = jnp.pad(xp.reshape(n, hp * wp, c), ((0, 0), (0, pf - hp * wp), (0, 0)))
    return xf.astype(jnp.bfloat16), hp, wp


def _flat_to_nhwc(y_flat, hp, wp, c_keep):
    ho, wo = hp - 2, wp - 2
    n = y_flat.shape[0]
    return y_flat[:, :ho * wp, :].reshape(n, ho, wp, -1)[:, :, :wo, :c_keep]


def _pack_shortcut_flat(x_sc, wp, p_pad):
    """(N, Ho, Wo, C) -> (N, p_pad, C) flat over (Ho rows x wp cols), bf16."""
    n, ho, wo, c = x_sc.shape
    sc = jnp.pad(x_sc, ((0, 0), (0, 0), (0, wp - wo), (0, 0)))
    sc = jnp.pad(sc.reshape(n, ho * wp, c), ((0, 0), (0, p_pad - ho * wp), (0, 0)))
    return sc.astype(jnp.bfloat16)


# ----------------------------------------------------------------------------
# Parameter packing (BN folding, weight flattening, channel padding)
# ----------------------------------------------------------------------------
def _fold_bn(gamma, beta, mean, var, cpad):
    scale = gamma / jnp.sqrt(var + EPS)
    shift = beta - mean * scale
    pad = cpad - scale.shape[0]
    scale = jnp.pad(scale, (0, pad)).reshape(1, cpad).astype(jnp.float32)
    shift = jnp.pad(shift, (0, pad)).reshape(1, cpad).astype(jnp.float32)
    return scale, shift


def _pack_w3x3(w_hwio, cin_pad, cout_pad):
    kh, kw, cin, cout = w_hwio.shape
    wpad = jnp.pad(w_hwio, ((0, 0), (0, 0), (0, cin_pad - cin), (0, cout_pad - cout)))
    # row index = (kh*3 + kw)*cin_pad + ci  -> matches the lane-concat tap order
    return wpad.reshape(kh * kw * cin_pad, cout_pad).astype(jnp.bfloat16)


# ----------------------------------------------------------------------------
# ResBlock forward (eval-mode BN), matching the PyTorch module
# ----------------------------------------------------------------------------
def resblock_forward(x_nchw, params, stride=(1, 1), padding=1):
    s0, s1 = int(stride[0]), int(stride[1])
    x = jnp.transpose(x_nchw, (0, 2, 3, 1))            # NCHW -> NHWC
    n, h, w, cin = x.shape
    cout = params["w1"].shape[-1]
    cpad = _round_up(cout, LANE)

    w1_p = _pack_w3x3(params["w1"], cin, cpad)          # (9*Cin,  Cpad)
    scale1, shift1 = _fold_bn(*params["bn1"], cpad)
    w2_p = _pack_w3x3(params["w2"], cpad, cpad)          # (9*Cpad, Cpad)
    scale2, shift2 = _fold_bn(*params["bn2"], cpad)

    # layer[0:3]: conv3x3 -> BN -> ReLU  (one fused kernel); y1 keeps Cpad channels
    x_flat1, hp1, wp1 = _nhwc_to_flat(x, padding)
    ho1, wo1 = hp1 - 2, wp1 - 2
    fuse_feed = (s0 == 1 and padding == 1)               # flat conv1->conv2 hand-off
    y1_flat = conv3x3_bn_flat(x_flat1, hp1, wp1, w1_p, scale1, shift1,
                              relu=True, mask_output=fuse_feed)

    if fuse_feed:
        # conv2's zero-padded flat input is conv1's (masked) flat output shifted by
        # one padded row + one column: a single jnp.pad, no unflatten/re-flatten.
        hp2, wp2 = ho1 + 2, wp1
        _, p_pad2 = _spatial_tiling((hp2 - 2) * wp2)
        pf2 = _round_up(p_pad2 + 2 * wp2 + 2, 8)
        front = wp2 + 1
        back = pf2 - front - y1_flat.shape[1]
        assert back >= 0
        x_flat2 = jnp.pad(y1_flat, ((0, 0), (front, back), (0, 0)))
        ho_s, wo_s = ho1, wo1
    else:
        # TODO(synk): true strided conv via strided tap slices instead of subsampling.
        y1 = _flat_to_nhwc(y1_flat, hp1, wp1, cpad)
        if s0 > 1:
            y1 = y1[:, ::s0, ::s0, :]
        ho_s, wo_s = y1.shape[1], y1.shape[2]
        x_flat2, hp2, wp2 = _nhwc_to_flat(y1, padding)

    _, p_pad2 = _spatial_tiling((hp2 - 2) * wp2)

    # shortcut operands (fused into the second kernel)
    x_sc = x[:, ::s0, ::s0, :][:, :ho_s, :wo_s, :]
    if "wsc" in params:
        wsc_p = jnp.pad(params["wsc"].reshape(cin, cout),
                        ((0, 0), (0, cpad - cout))).astype(jnp.bfloat16)
        scale_sc, shift_sc = _fold_bn(*params["bnsc"], cpad)
        shortcut = (_pack_shortcut_flat(x_sc, wp2, p_pad2), wsc_p, scale_sc, shift_sc)
        ident = None
    else:
        # identity fast path: plain add, no identity matmul / unit-BN FMA
        x_sc_p = jnp.pad(x_sc, ((0, 0), (0, 0), (0, 0), (0, cpad - cin)))
        ident = _pack_shortcut_flat(x_sc_p, wp2, p_pad2)
        shortcut = None

    # layer[3:5] + shortcut + residual add + final ReLU  (one fused kernel)
    y2_flat = conv3x3_bn_flat(x_flat2, hp2, wp2, w2_p, scale2, shift2,
                              relu=True, shortcut=shortcut, identity_shortcut=ident)
    y2 = _flat_to_nhwc(y2_flat, hp2, wp2, cout)
    if s1 > 1:
        y2 = y2[:, ::s1, ::s1, :]                        # TODO(synk): strided conv2
    return jnp.transpose(y2.astype(jnp.float32), (0, 3, 1, 2))   # NHWC -> NCHW


# ----------------------------------------------------------------------------
# Parameter init + pure-JAX reference
# ----------------------------------------------------------------------------
def init_resblock_params(key, in_channels, out_channels, stride=(1, 1)):
    keys = jax.random.split(key, 6)

    def bn_params(k, c):
        k0, k1, k2, k3 = jax.random.split(k, 4)
        g = 1.0 + 0.1 * jax.random.normal(k0, (c,), jnp.float32)
        b = 0.1 * jax.random.normal(k1, (c,), jnp.float32)
        m = 0.05 * jax.random.normal(k2, (c,), jnp.float32)
        v = 0.5 + jnp.abs(jax.random.normal(k3, (c,), jnp.float32))
        return g, b, m, v

    params = {
        "w1": 0.1 * jax.random.normal(
            keys[0], (3, 3, in_channels, out_channels), jnp.float32),
        "bn1": bn_params(keys[1], out_channels),
        "w2": 0.1 * jax.random.normal(
            keys[2], (3, 3, out_channels, out_channels), jnp.float32),
        "bn2": bn_params(keys[3], out_channels),
    }
    if stride[0] != 1 or in_channels != out_channels:
        params["wsc"] = 0.1 * jax.random.normal(
            keys[4], (1, 1, in_channels, out_channels), jnp.float32)
        params["bnsc"] = bn_params(keys[5], out_channels)
    return params


def _ref_conv(x_nhwc, w_hwio, stride, padding):
    return jax.lax.conv_general_dilated(
        x_nhwc, w_hwio, (stride, stride),
        [(padding, padding), (padding, padding)],
        dimension_numbers=("NHWC", "HWIO", "NHWC"))


def _ref_bn(x, bn):
    g, b, m, v = bn
    return (x - m) / jnp.sqrt(v + EPS) * g + b


def ref_resblock(x_nchw, params, stride=(1, 1), padding=1):
    x = jnp.transpose(x_nchw, (0, 2, 3, 1))
    y = jax.nn.relu(_ref_bn(_ref_conv(x, params["w1"], stride[0], padding),
                            params["bn1"]))
    y = _ref_bn(_ref_conv(y, params["w2"], stride[1], padding), params["bn2"])
    if "wsc" in params:
        sc = _ref_bn(_ref_conv(x, params["wsc"], stride[0], 0), params["bnsc"])
    else:
        sc = x
    out = jax.nn.relu(y + sc)
    return jnp.transpose(out, (0, 3, 1, 2))


# ----------------------------------------------------------------------------
if __name__ == "__main__":
    key = jax.random.PRNGKey(0)
    N, H, W = 2, 16, 16
    stride = (1, 1)
    padding = 1

    # exercise both shortcut variants: 1x1 projection (Cin != Cout) and identity
    for name, cin, cout in (("projection", 4, 8), ("identity", 8, 8)):
        key, kx, kp = jax.random.split(key, 3)
        x = jax.random.normal(kx, (N, cin, H, W), jnp.float32)   # NCHW input
        params = init_resblock_params(kp, cin, cout, stride)

        fwd = jax.jit(functools.partial(resblock_forward, stride=stride,
                                        padding=padding))
        out = jax.block_until_ready(fwd(x, params))
        ref = ref_resblock(x, params, stride, padding)

        assert out.shape == (N, cout, H, W), (name, out.shape)
        err = float(jnp.max(jnp.abs(out - ref)))
        # bf16 activations/weights (fp32 accumulation) -> relaxed tolerance
        assert jnp.allclose(out, ref, rtol=5e-2, atol=5e-2), (name, err)

    print("KERNEL_OK")
</pallas_src>

<mosaic_0001>
module attributes {stable_mosaic.version = 11 : i64} {
  func.func @kernel(%arg0: i32, %arg1: i32, %arg2: i32, %arg3: memref<1x328x4xbf16, #tpu.memory_space<vmem>>, %arg4: memref<36x128xbf16, #tpu.memory_space<vmem>>, %arg5: memref<1x128xf32, #tpu.memory_space<vmem>>, %arg6: memref<1x128xf32, #tpu.memory_space<vmem>>, %arg7: memref<288x1xf32, #tpu.memory_space<vmem>>, %arg8: memref<1x288x128xbf16, #tpu.memory_space<vmem>>) attributes {dimension_semantics = [#tpu.dimension_semantics<parallel>, #tpu.dimension_semantics<parallel>, #tpu.dimension_semantics<parallel>], iteration_bounds = array<i64: 2, 1, 1>, scalar_prefetch = 0 : i64, scratch_operands = 0 : i64, tpu.core_type = #tpu.core_type<tc>, window_params = [{transform_indices = @transform_0, window_bounds = array<i64: 1, 328, 4>}, {transform_indices = @transform_1, window_bounds = array<i64: 36, 128>}, {transform_indices = @transform_2, window_bounds = array<i64: 1, 128>}, {transform_indices = @transform_3, window_bounds = array<i64: 1, 128>}, {transform_indices = @transform_4, window_bounds = array<i64: 288, 1>}, {transform_indices = @transform_5, window_bounds = array<i64: 1, 288, 128>}]} {
    %cst = arith.constant 0.000000e+00 : f32
    %0 = vector.broadcast %cst : f32 to vector<288x128xf32>
    %c0 = arith.constant 0 : index
    %c0_0 = arith.constant 0 : index
    %c0_1 = arith.constant 0 : index
    %1 = vector.load %arg3[%c0, %c0_0, %c0_1] : memref<1x328x4xbf16, #tpu.memory_space<vmem>>, vector<1x288x4xbf16>
    %2 = vector.shape_cast %1 : vector<1x288x4xbf16> to vector<288x4xbf16>
    %c0_2 = arith.constant 0 : index
    %c0_3 = arith.constant 0 : index
    %3 = vector.load %arg4[%c0_2, %c0_3] : memref<36x128xbf16, #tpu.memory_space<vmem>>, vector<4x128xbf16>
    %cst_4 = arith.constant dense<0.000000e+00> : vector<288x128xf32>
    %4 = tpu.matmul %2, %3, %cst_4 {dimension_numbers = #tpu.dot_dimension_numbers<[1], [0], [0], [1], [0, 0, 1, 1], [], []>} : vector<288x4xbf16>, vector<4x128xbf16>, vector<288x128xf32> -> vector<288x128xf32>
    %5 = arith.addf %0, %4 : vector<288x128xf32>
    %c0_5 = arith.constant 0 : index
    %c1 = arith.constant 1 : index
    %c0_6 = arith.constant 0 : index
    %6 = vector.load %arg3[%c0_5, %c1, %c0_6] : memref<1x328x4xbf16, #tpu.memory_space<vmem>>, vector<1x288x4xbf16>
    %7 = vector.shape_cast %6 : vector<1x288x4xbf16> to vector<288x4xbf16>
    %c4 = arith.constant 4 : index
    %c0_7 = arith.constant 0 : index
    %8 = vector.load %arg4[%c4, %c0_7] : memref<36x128xbf16, #tpu.memory_space<vmem>>, vector<4x128xbf16>
    %cst_8 = arith.constant dense<0.000000e+00> : vector<288x128xf32>
    %9 = tpu.matmul %7, %8, %cst_8 {dimension_numbers = #tpu.dot_dimension_numbers<[1], [0], [0], [1], [0, 0, 1, 1], [], []>} : vector<288x4xbf16>, vector<4x128xbf16>, vector<288x128xf32> -> vector<288x128xf32>
    %10 = arith.addf %5, %9 : vector<288x128xf32>
    %c0_9 = arith.constant 0 : index
    %c2 = arith.constant 2 : index
    %c0_10 = arith.constant 0 : index
    %11 = vector.load %arg3[%c0_9, %c2, %c0_10] : memref<1x328x4xbf16, #tpu.memory_space<vmem>>, vector<1x288x4xbf16>
    %12 = vector.shape_cast %11 : vector<1x288x4xbf16> to vector<288x4xbf16>
    %c8 = arith.constant 8 : index
    %c0_11 = arith.constant 0 : index
    %13 = vector.load %arg4[%c8, %c0_11] : memref<36x128xbf16, #tpu.memory_space<vmem>>, vector<4x128xbf16>
    %cst_12 = arith.constant dense<0.000000e+00> : vector<288x128xf32>
    %14 = tpu.matmul %12, %13, %cst_12 {dimension_numbers = #tpu.dot_dimension_numbers<[1], [0], [0], [1], [0, 0, 1, 1], [], []>} : vector<288x4xbf16>, vector<4x128xbf16>, vector<288x128xf32> -> vector<288x128xf32>
    %15 = arith.addf %10, %14 : vector<288x128xf32>
    %c0_13 = arith.constant 0 : index
    %c18 = arith.constant 18 : index
    %c0_14 = arith.constant 0 : index
    %16 = vector.load %arg3[%c0_13, %c18, %c0_14] : memref<1x328x4xbf16, #tpu.memory_space<vmem>>, vector<1x288x4xbf16>
    %17 = vector.shape_cast %16 : vector<1x288x4xbf16> to vector<288x4xbf16>
    %c12 = arith.constant 12 : index
    %c0_15 = arith.constant 0 : index
    %18 = vector.load %arg4[%c12, %c0_15] : memref<36x128xbf16, #tpu.memory_space<vmem>>, vector<4x128xbf16>
    %cst_16 = arith.constant dense<0.000000e+00> : vector<288x128xf32>
    %19 = tpu.matmul %17, %18, %cst_16 {dimension_numbers = #tpu.dot_dimension_numbers<[1], [0], [0], [1], [0, 0, 1, 1], [], []>} : vector<288x4xbf16>, vector<4x128xbf16>, vector<288x128xf32> -> vector<288x128xf32>
    %20 = arith.addf %15, %19 : vector<288x128xf32>
    %c0_17 = arith.constant 0 : index
    %c19 = arith.constant 19 : index
    %c0_18 = arith.constant 0 : index
    %21 = vector.load %arg3[%c0_17, %c19, %c0_18] : memref<1x328x4xbf16, #tpu.memory_space<vmem>>, vector<1x288x4xbf16>
    %22 = vector.shape_cast %21 : vector<1x288x4xbf16> to vector<288x4xbf16>
    %c16 = arith.constant 16 : index
    %c0_19 = arith.constant 0 : index
    %23 = vector.load %arg4[%c16, %c0_19] : memref<36x128xbf16, #tpu.memory_space<vmem>>, vector<4x128xbf16>
    %cst_20 = arith.constant dense<0.000000e+00> : vector<288x128xf32>
    %24 = tpu.matmul %22, %23, %cst_20 {dimension_numbers = #tpu.dot_dimension_numbers<[1], [0], [0], [1], [0, 0, 1, 1], [], []>} : vector<288x4xbf16>, vector<4x128xbf16>, vector<288x128xf32> -> vector<288x128xf32>
    %25 = arith.addf %20, %24 : vector<288x128xf32>
    %c0_21 = arith.constant 0 : index
    %c20 = arith.constant 20 : index
    %c0_22 = arith.constant 0 : index
    %26 = vector.load %arg3[%c0_21, %c20, %c0_22] : memref<1x328x4xbf16, #tpu.memory_space<vmem>>, vector<1x288x4xbf16>
    %27 = vector.shape_cast %26 : vector<1x288x4xbf16> to vector<288x4xbf16>
    %c20_23 = arith.constant 20 : index
    %c0_24 = arith.constant 0 : index
    %28 = vector.load %arg4[%c20_23, %c0_24] : memref<36x128xbf16, #tpu.memory_space<vmem>>, vector<4x128xbf16>
    %cst_25 = arith.constant dense<0.000000e+00> : vector<288x128xf32>
    %29 = tpu.matmul %27, %28, %cst_25 {dimension_numbers = #tpu.dot_dimension_numbers<[1], [0], [0], [1], [0, 0, 1, 1], [], []>} : vector<288x4xbf16>, vector<4x128xbf16>, vector<288x128xf32> -> vector<288x128xf32>
    %30 = arith.addf %25, %29 : vector<288x128xf32>
    %c0_26 = arith.constant 0 : index
    %c36 = arith.constant 36 : index
    %c0_27 = arith.constant 0 : index
    %31 = vector.load %arg3[%c0_26, %c36, %c0_27] : memref<1x328x4xbf16, #tpu.memory_space<vmem>>, vector<1x288x4xbf16>
    %32 = vector.shape_cast %31 : vector<1x288x4xbf16> to vector<288x4xbf16>
    %c24 = arith.constant 24 : index
    %c0_28 = arith.constant 0 : index
    %33 = vector.load %arg4[%c24, %c0_28] : memref<36x128xbf16, #tpu.memory_space<vmem>>, vector<4x128xbf16>
    %cst_29 = arith.constant dense<0.000000e+00> : vector<288x128xf32>
    %34 = tpu.matmul %32, %33, %cst_29 {dimension_numbers = #tpu.dot_dimension_numbers<[1], [0], [0], [1], [0, 0, 1, 1], [], []>} : vector<288x4xbf16>, vector<4x128xbf16>, vector<288x128xf32> -> vector<288x128xf32>
    %35 = arith.addf %30, %34 : vector<288x128xf32>
    %c0_30 = arith.constant 0 : index
    %c37 = arith.constant 37 : index
    %c0_31 = arith.constant 0 : index
    %36 = vector.load %arg3[%c0_30, %c37, %c0_31] : memref<1x328x4xbf16, #tpu.memory_space<vmem>>, vector<1x288x4xbf16>
    %37 = vector.shape_cast %36 : vector<1x288x4xbf16> to vector<288x4xbf16>
    %c28 = arith.constant 28 : index
    %c0_32 = arith.constant 0 : index
    %38 = vector.load %arg4[%c28, %c0_32] : memref<36x128xbf16, #tpu.memory_space<vmem>>, vector<4x128xbf16>
    %cst_33 = arith.constant dense<0.000000e+00> : vector<288x128xf32>
    %39 = tpu.matmul %37, %38, %cst_33 {dimension_numbers = #tpu.dot_dimension_numbers<[1], [0], [0], [1], [0, 0, 1, 1], [], []>} : vector<288x4xbf16>, vector<4x128xbf16>, vector<288x128xf32> -> vector<288x128xf32>
    %40 = arith.addf %35, %39 : vector<288x128xf32>
    %c0_34 = arith.constant 0 : index
    %c38 = arith.constant 38 : index
    %c0_35 = arith.constant 0 : index
    %41 = vector.load %arg3[%c0_34, %c38, %c0_35] : memref<1x328x4xbf16, #tpu.memory_space<vmem>>, vector<1x288x4xbf16>
    %42 = vector.shape_cast %41 : vector<1x288x4xbf16> to vector<288x4xbf16>
    %c32 = arith.constant 32 : index
    %c0_36 = arith.constant 0 : index
    %43 = vector.load %arg4[%c32, %c0_36] : memref<36x128xbf16, #tpu.memory_space<vmem>>, vector<4x128xbf16>
    %cst_37 = arith.constant dense<0.000000e+00> : vector<288x128xf32>
    %44 = tpu.matmul %42, %43, %cst_37 {dimension_numbers = #tpu.dot_dimension_numbers<[1], [0], [0], [1], [0, 0, 1, 1], [], []>} : vector<288x4xbf16>, vector<4x128xbf16>, vector<288x128xf32> -> vector<288x128xf32>
    %45 = arith.addf %40, %44 : vector<288x128xf32>
    %c0_38 = arith.constant 0 : index
    %c0_39 = arith.constant 0 : index
    %46 = vector.load %arg5[%c0_38, %c0_39] : memref<1x128xf32, #tpu.memory_space<vmem>>, vector<1x128xf32>
    %47 = vector.broadcast %46 : vector<1x128xf32> to vector<288x128xf32>
    %48 = arith.mulf %45, %47 : vector<288x128xf32>
    %c0_40 = arith.constant 0 : index
    %c0_41 = arith.constant 0 : index
    %49 = vector.load %arg6[%c0_40, %c0_41] : memref<1x128xf32, #tpu.memory_space<vmem>>, vector<1x128xf32>
    %50 = vector.broadcast %49 : vector<1x128xf32> to vector<288x128xf32>
    %51 = arith.addf %48, %50 : vector<288x128xf32>
    %cst_42 = arith.constant 0.000000e+00 : f32
    %52 = vector.broadcast %cst_42 : f32 to vector<288x128xf32>
    %53 = arith.maximumf %51, %52 : vector<288x128xf32>
    %c0_43 = arith.constant 0 : index
    %c0_44 = arith.constant 0 : index
    %54 = vector.load %arg7[%c0_43, %c0_44] : memref<288x1xf32, #tpu.memory_space<vmem>>, vector<288x1xf32>
    %55 = vector.broadcast %54 : vector<288x1xf32> to vector<288x128xf32>
    %56 = arith.mulf %53, %55 : vector<288x128xf32>
    %57 = arith.truncf %56 : vector<288x128xf32> to vector<288x128xbf16>
    %c0_45 = arith.constant 0 : index
    %c0_46 = arith.constant 0 : index
    %c0_47 = arith.constant 0 : index
    %58 = vector.load %arg8[%c0_45, %c0_46, %c0_47] : memref<1x288x128xbf16, #tpu.memory_space<vmem>>, vector<1x288x128xbf16>
    %59 = vector.shape_cast %58 : vector<1x288x128xbf16> to vector<288x128xbf16>
    %60 = vector.shape_cast %57 : vector<288x128xbf16> to vector<1x288x128xbf16>
    tpu.vector_store %arg8[%c0_45, %c0_46, %c0_47], %60 {strides = array<i32>} : memref<1x288x128xbf16, #tpu.memory_space<vmem>>, vector<1x288x128xbf16>,
    return
  }
  func.func @transform_0(%arg0: i32, %arg1: i32, %arg2: i32) -> (i32, i32, i32) {
    %c0_i32 = arith.constant 0 : i32
    %c0_i32_0 = arith.constant 0 : i32
    %c0_i32_1 = arith.constant 0 : i32
    return %arg0, %c0_i32, %c0_i32_0 : i32, i32, i32
  }
  func.func @transform_1(%arg0: i32, %arg1: i32, %arg2: i32) -> (i32, i32) {
    %c0_i32 = arith.constant 0 : i32
    %c0_i32_0 = arith.constant 0 : i32
    return %c0_i32, %arg1 : i32, i32
  }
  func.func @transform_2(%arg0: i32, %arg1: i32, %arg2: i32) -> (i32, i32) {
    %c0_i32 = arith.constant 0 : i32
    %c0_i32_0 = arith.constant 0 : i32
    return %c0_i32, %arg1 : i32, i32
  }
  func.func @transform_3(%arg0: i32, %arg1: i32, %arg2: i32) -> (i32, i32) {
    %c0_i32 = arith.constant 0 : i32
    %c0_i32_0 = arith.constant 0 : i32
    return %c0_i32, %arg1 : i32, i32
  }
  func.func @transform_4(%arg0: i32, %arg1: i32, %arg2: i32) -> (i32, i32) {
    %c0_i32 = arith.constant 0 : i32
    %c0_i32_0 = arith.constant 0 : i32
    return %arg2, %c0_i32 : i32, i32
  }
  func.func @transform_5(%arg0: i32, %arg1: i32, %arg2: i32) -> (i32, i32, i32) {
    %c0_i32 = arith.constant 0 : i32
    return %arg0, %arg2, %arg1 : i32, i32, i32
  }
}

module attributes {stable_mosaic.version = 11 : i64} {
  func.func @kernel(%arg0: i32, %arg1: i32, %arg2: i32, %arg3: memref<1x328x128xbf16, #tpu.memory_space<vmem>>, %arg4: memref<1152x128xbf16, #tpu.memory_space<vmem>>, %arg5: memref<1x128xf32, #tpu.memory_space<vmem>>, %arg6: memref<1x128xf32, #tpu.memory_space<vmem>>, %arg7: memref<1x288x4xbf16, #tpu.memory_space<vmem>>, %arg8: memref<4x128xbf16, #tpu.memory_space<vmem>>, %arg9: memref<1x128xf32, #tpu.memory_space<vmem>>, %arg10: memref<1x128xf32, #tpu.memory_space<vmem>>, %arg11: memref<1x288x128xbf16, #tpu.memory_space<vmem>>) attributes {dimension_semantics = [#tpu.dimension_semantics<parallel>, #tpu.dimension_semantics<parallel>, #tpu.dimension_semantics<parallel>], iteration_bounds = array<i64: 2, 1, 1>, scalar_prefetch = 0 : i64, scratch_operands = 0 : i64, tpu.core_type = #tpu.core_type<tc>, window_params = [{transform_indices = @transform_0, window_bounds = array<i64: 1, 328, 128>}, {transform_indices = @transform_1, window_bounds = array<i64: 1152, 128>}, {transform_indices = @transform_2, window_bounds = array<i64: 1, 128>}, {transform_indices = @transform_3, window_bounds = array<i64: 1, 128>}, {transform_indices = @transform_4, window_bounds = array<i64: 1, 288, 4>}, {transform_indices = @transform_5, window_bounds = array<i64: 4, 128>}, {transform_indices = @transform_6, window_bounds = array<i64: 1, 128>}, {transform_indices = @transform_7, window_bounds = array<i64: 1, 128>}, {transform_indices = @transform_8, window_bounds = array<i64: 1, 288, 128>}]} {
    %c0 = arith.constant 0 : index
    %c0_0 = arith.constant 0 : index
    %c0_1 = arith.constant 0 : index
    %0 = vector.load %arg3[%c0, %c0_0, %c0_1] : memref<1x328x128xbf16, #tpu.memory_space<vmem>>, vector<1x288x128xbf16>
    %1 = vector.shape_cast %0 : vector<1x288x128xbf16> to vector<288x128xbf16>
    %c0_2 = arith.constant 0 : index
    %c1 = arith.constant 1 : index
    %c0_3 = arith.constant 0 : index
    %2 = vector.load %arg3[%c0_2, %c1, %c0_3] : memref<1x328x128xbf16, #tpu.memory_space<vmem>>, vector<1x288x128xbf16>
    %3 = vector.shape_cast %2 : vector<1x288x128xbf16> to vector<288x128xbf16>
    %c0_4 = arith.constant 0 : index
    %c2 = arith.constant 2 : index
    %c0_5 = arith.constant 0 : index
    %4 = vector.load %arg3[%c0_4, %c2, %c0_5] : memref<1x328x128xbf16, #tpu.memory_space<vmem>>, vector<1x288x128xbf16>
    %5 = vector.shape_cast %4 : vector<1x288x128xbf16> to vector<288x128xbf16>
    %c0_6 = arith.constant 0 : index
    %c18 = arith.constant 18 : index
    %c0_7 = arith.constant 0 : index
    %6 = vector.load %arg3[%c0_6, %c18, %c0_7] : memref<1x328x128xbf16, #tpu.memory_space<vmem>>, vector<1x288x128xbf16>
    %7 = vector.shape_cast %6 : vector<1x288x128xbf16> to vector<288x128xbf16>
    %c0_8 = arith.constant 0 : index
    %c19 = arith.constant 19 : index
    %c0_9 = arith.constant 0 : index
    %8 = vector.load %arg3[%c0_8, %c19, %c0_9] : memref<1x328x128xbf16, #tpu.memory_space<vmem>>, vector<1x288x128xbf16>
    %9 = vector.shape_cast %8 : vector<1x288x128xbf16> to vector<288x128xbf16>
    %c0_10 = arith.constant 0 : index
    %c20 = arith.constant 20 : index
    %c0_11 = arith.constant 0 : index
    %10 = vector.load %arg3[%c0_10, %c20, %c0_11] : memref<1x328x128xbf16, #tpu.memory_space<vmem>>, vector<1x288x128xbf16>
    %11 = vector.shape_cast %10 : vector<1x288x128xbf16> to vector<288x128xbf16>
    %c0_12 = arith.constant 0 : index
    %c36 = arith.constant 36 : index
    %c0_13 = arith.constant 0 : index
    %12 = vector.load %arg3[%c0_12, %c36, %c0_13] : memref<1x328x128xbf16, #tpu.memory_space<vmem>>, vector<1x288x128xbf16>
    %13 = vector.shape_cast %12 : vector<1x288x128xbf16> to vector<288x128xbf16>
    %c0_14 = arith.constant 0 : index
    %c37 = arith.constant 37 : index
    %c0_15 = arith.constant 0 : index
    %14 = vector.load %arg3[%c0_14, %c37, %c0_15] : memref<1x328x128xbf16, #tpu.memory_space<vmem>>, vector<1x288x128xbf16>
    %15 = vector.shape_cast %14 : vector<1x288x128xbf16> to vector<288x128xbf16>
    %c0_16 = arith.constant 0 : index
    %c38 = arith.constant 38 : index
    %c0_17 = arith.constant 0 : index
    %16 = vector.load %arg3[%c0_16, %c38, %c0_17] : memref<1x328x128xbf16, #tpu.memory_space<vmem>>, vector<1x288x128xbf16>
    %17 = vector.shape_cast %16 : vector<1x288x128xbf16> to vector<288x128xbf16>
    %18 = tpu.concatenate %1, %3, %5, %7, %9, %11, %13, %15, %17 in 1 : vector<288x128xbf16>, vector<288x128xbf16>, vector<288x128xbf16>, vector<288x128xbf16>, vector<288x128xbf16>, vector<288x128xbf16>, vector<288x128xbf16>, vector<288x128xbf16>, vector<288x128xbf16> -> vector<288x1152xbf16>
    %c0_18 = arith.constant 0 : index
    %c0_19 = arith.constant 0 : index
    %19 = vector.load %arg4[%c0_18, %c0_19] : memref<1152x128xbf16, #tpu.memory_space<vmem>>, vector<1152x128xbf16>
    %cst = arith.constant dense<0.000000e+00> : vector<288x128xf32>
    %20 = tpu.matmul %18, %19, %cst {dimension_numbers = #tpu.dot_dimension_numbers<[1], [0], [0], [1], [0, 0, 1, 1], [], []>} : vector<288x1152xbf16>, vector<1152x128xbf16>, vector<288x128xf32> -> vector<288x128xf32>
    %c0_20 = arith.constant 0 : index
    %c0_21 = arith.constant 0 : index
    %21 = vector.load %arg5[%c0_20, %c0_21] : memref<1x128xf32, #tpu.memory_space<vmem>>, vector<1x128xf32>
    %22 = vector.broadcast %21 : vector<1x128xf32> to vector<288x128xf32>
    %23 = arith.mulf %20, %22 : vector<288x128xf32>
    %c0_22 = arith.constant 0 : index
    %c0_23 = arith.constant 0 : index
    %24 = vector.load %arg6[%c0_22, %c0_23] : memref<1x128xf32, #tpu.memory_space<vmem>>, vector<1x128xf32>
    %25 = vector.broadcast %24 : vector<1x128xf32> to vector<288x128xf32>
    %26 = arith.addf %23, %25 : vector<288x128xf32>
    %c0_24 = arith.constant 0 : index
    %c0_25 = arith.constant 0 : index
    %c0_26 = arith.constant 0 : index
    %27 = vector.load %arg7[%c0_24, %c0_25, %c0_26] : memref<1x288x4xbf16, #tpu.memory_space<vmem>>, vector<1x288x4xbf16>
    %28 = vector.shape_cast %27 : vector<1x288x4xbf16> to vector<288x4xbf16>
    %c0_27 = arith.constant 0 : index
    %c0_28 = arith.constant 0 : index
    %29 = vector.load %arg8[%c0_27, %c0_28] : memref<4x128xbf16, #tpu.memory_space<vmem>>, vector<4x128xbf16>
    %cst_29 = arith.constant dense<0.000000e+00> : vector<288x128xf32>
    %30 = tpu.matmul %28, %29, %cst_29 {dimension_numbers = #tpu.dot_dimension_numbers<[1], [0], [0], [1], [0, 0, 1, 1], [], []>} : vector<288x4xbf16>, vector<4x128xbf16>, vector<288x128xf32> -> vector<288x128xf32>
    %c0_30 = arith.constant 0 : index
    %c0_31 = arith.constant 0 : index
    %31 = vector.load %arg9[%c0_30, %c0_31] : memref<1x128xf32, #tpu.memory_space<vmem>>, vector<1x128xf32>
    %32 = vector.broadcast %31 : vector<1x128xf32> to vector<288x128xf32>
    %33 = arith.mulf %30, %32 : vector<288x128xf32>
    %34 = arith.addf %26, %33 : vector<288x128xf32>
    %c0_32 = arith.constant 0 : index
    %c0_33 = arith.constant 0 : index
    %35 = vector.load %arg10[%c0_32, %c0_33] : memref<1x128xf32, #tpu.memory_space<vmem>>, vector<1x128xf32>
    %36 = vector.broadcast %35 : vector<1x128xf32> to vector<288x128xf32>
    %37 = arith.addf %34, %36 : vector<288x128xf32>
    %cst_34 = arith.constant 0.000000e+00 : f32
    %38 = vector.broadcast %cst_34 : f32 to vector<288x128xf32>
    %39 = arith.maximumf %37, %38 : vector<288x128xf32>
    %40 = arith.truncf %39 : vector<288x128xf32> to vector<288x128xbf16>
    %c0_35 = arith.constant 0 : index
    %c0_36 = arith.constant 0 : index
    %c0_37 = arith.constant 0 : index
    %41 = vector.load %arg11[%c0_35, %c0_36, %c0_37] : memref<1x288x128xbf16, #tpu.memory_space<vmem>>, vector<1x288x128xbf16>
    %42 = vector.shape_cast %41 : vector<1x288x128xbf16> to vector<288x128xbf16>
    %43 = vector.shape_cast %40 : vector<288x128xbf16> to vector<1x288x128xbf16>
    tpu.vector_store %arg11[%c0_35, %c0_36, %c0_37], %43 {strides = array<i32>} : memref<1x288x128xbf16, #tpu.memory_space<vmem>>, vector<1x288x128xbf16>,
    return
  }
  func.func @transform_0(%arg0: i32, %arg1: i32, %arg2: i32) -> (i32, i32, i32) {
    %c0_i32 = arith.constant 0 : i32
    %c0_i32_0 = arith.constant 0 : i32
    %c0_i32_1 = arith.constant 0 : i32
    return %arg0, %c0_i32, %c0_i32_0 : i32, i32, i32
  }
  func.func @transform_1(%arg0: i32, %arg1: i32, %arg2: i32) -> (i32, i32) {
    %c0_i32 = arith.constant 0 : i32
    %c0_i32_0 = arith.constant 0 : i32
    return %c0_i32, %arg1 : i32, i32
  }
  func.func @transform_2(%arg0: i32, %arg1: i32, %arg2: i32) -> (i32, i32) {
    %c0_i32 = arith.constant 0 : i32
    %c0_i32_0 = arith.constant 0 : i32
    return %c0_i32, %arg1 : i32, i32
  }
  func.func @transform_3(%arg0: i32, %arg1: i32, %arg2: i32) -> (i32, i32) {
    %c0_i32 = arith.constant 0 : i32
    %c0_i32_0 = arith.constant 0 : i32
    return %c0_i32, %arg1 : i32, i32
  }
  func.func @transform_4(%arg0: i32, %arg1: i32, %arg2: i32) -> (i32, i32, i32) {
    %c0_i32 = arith.constant 0 : i32
    %c0_i32_0 = arith.constant 0 : i32
    return %arg0, %arg2, %c0_i32 : i32, i32, i32
  }
  func.func @transform_5(%arg0: i32, %arg1: i32, %arg2: i32) -> (i32, i32) {
    %c0_i32 = arith.constant 0 : i32
    %c0_i32_0 = arith.constant 0 : i32
    return %c0_i32, %arg1 : i32, i32
  }
  func.func @transform_6(%arg0: i32, %arg1: i32, %arg2: i32) -> (i32, i32) {
    %c0_i32 = arith.constant 0 : i32
    %c0_i32_0 = arith.constant 0 : i32
    return %c0_i32, %arg1 : i32, i32
  }
  func.func @transform_7(%arg0: i32, %arg1: i32, %arg2: i32) -> (i32, i32) {
    %c0_i32 = arith.constant 0 : i32
    %c0_i32_0 = arith.constant 0 : i32
    return %c0_i32, %arg1 : i32, i32
  }
  func.func @transform_8(%arg0: i32, %arg1: i32, %arg2: i32) -> (i32, i32, i32) {
    %c0_i32 = arith.constant 0 : i32
    return %arg0, %arg2, %arg1 : i32, i32, i32
  }
}

</mosaic_0001>

<llo_original>
// kernel: resblock_forward.2
$region0: #{resblock_forward.2}
  #allocation0 [shape = 'u32[]', space=smem, size = 0x4, offset = 0x4, fixed_abs, tag = 'smem constant byte address 0x4 - core index']
  #allocation1 [shape = 'u32[72,128]{1,0:T(1,128)}', space=vmem, size = 0x9000, scoped, tag = 'internal scratch']
  %s0 = inlined_call_operand.vmem [shape: bf16[2,328,4], index: 0, kind: input, shape index: {}]
  %s1 = inlined_call_operand.vmem [shape: bf16[36,128], index: 1, kind: input, shape index: {}]
  %s2 = inlined_call_operand.vmem [shape: f32[1,128], index: 2, kind: input, shape index: {}]
  %s3 = inlined_call_operand.vmem [shape: f32[1,128], index: 3, kind: input, shape index: {}]
  %s4 = inlined_call_operand.vmem [shape: f32[288,1], index: 4, kind: input, shape index: {}]
  %s5 = inlined_call_operand.vmem [shape: bf16[2,288,128], index: 5, kind: output, shape index: {}]
  %s6 = sld [smem:[#allocation0]]
  $region53: #{resblock_forward.2} parent=0
    _
  %s8 = ssub.s32 1, %s6
  %s9 = scalar_select 0, %s8, %s6
  loop: start=0, step=1, limit=4
  $region2: #{resblock_forward.2} parent=0 // loop_pre_header
    _
  $region3: #{resblock_forward.2} parent=0 // loop_header
    %s11 = sphi 0, %s15
    %p12 = scmp.ge.s32.totalorder %s11, 4
    %s18 = sphi 0, %s37
    %s19 = sphi 0, %s33
    %s20 = sphi 0, %s29
    %s21 = sphi 0, %s18
    %s22 = sphi 0, %s19
    %s23 = sphi 0, %s20
    %s24 = sphi 0, %s21
    %s25 = sphi 0, %s22
    %s26 = sphi 0, %s23
    %s40 = sphi 0, %s42
    %s43 = sphi 0, %s40
    %s44 = sphi 0, %s43
    %s60 = sphi 0, %s44
    %s66 = sphi 0, %s68
    %s69 = sphi 0, %s66
    %s70 = sphi 0, %s69
    %s86 = sphi 0, %s70
    %s92 = sphi 0, %s94
    %s95 = sphi 0, %s92
    %s96 = sphi 0, %s95
    %s112 = sphi 0, %s96
    %s118 = sphi 0, %s120
    %s121 = sphi 0, %s118
    %s122 = sphi 0, %s121
    %s138 = sphi 0, %s122
    %s144 = sphi 0, %s146
    %s147 = sphi 0, %s144
    %s148 = sphi 0, %s147
    %s164 = sphi 0, %s148
    %s174 = sphi 0, %s176
    %s177 = sphi 0, %s174
    %s178 = sphi 0, %s177
    %s194 = sphi 0, %s178
  $region4: #{resblock_forward.2} parent=0 // loop_header_branch
    %14 = sbr.rel (%p12) target = $region8
  $region5: #{resblock_forward.2} parent=0 // loop_body
    %s16 = ssub.s32 %s11, 1
    %s17 = ssub.s32 %s11, 2
    %s27 = sadd.s32 1, %s20
    %p28 = scmp.ge.s32.totalorder %s27, 1
    %s29 = scalar_select %p28, 0, %s27
    %s30 = sadd.s32 1, %s19
    %s31 = scalar_select %p28, %s30, %s19
    %p32 = scmp.ge.s32.totalorder %s31, 1
    %s33 = scalar_select %p32, 0, %s31
    %s34 = sadd.s32 1, %s18
    %s35 = scalar_select %p32, %s34, %s18
    %p36 = scmp.ge.s32.totalorder %s35, 2
    %s37 = scalar_select %p36, 0, %s35
    %s38 = ssub.s32 %s18, %s37
    %p39 = scmp.eq.s32.totalorder %s38, 0
    %s41 = sadd.s32 %s40, 1
    %s42 = scalar_select %p39, %s40, %s41
    %p45 = pneg %p39
    %p46 = scmp.eq.s32.totalorder %s11, 1
    %p47 = por %p45, %p46
    %p48 = scmp.ne.s32.totalorder %s40, %s43
    %p49 = scmp.eq.s32.totalorder %s11, 0
    %p50 = por %p48, %p49
    %p51 = scmp.ne.s32.totalorder %s40, %s43
    %p52 = scmp.eq.s32.totalorder %s16, 1
    %p53 = por %p51, %p52
    %p54 = scmp.ne.s32.totalorder %s43, %s44
    %p55 = scmp.eq.s32.totalorder %s16, 0
    %p56 = por %p54, %p55
    %p57 = scmp.ne.s32.totalorder %s43, %s44
    %p58 = scmp.eq.s32.totalorder %s17, 1
    %p59 = por %p57, %p58
    %p61 = scmp.ne.s32.totalorder %s44, %s60
    %p62 = scmp.eq.s32.totalorder %s17, 0
    %p63 = por %p61, %p62
    %s64 = ssub.s32 %s19, %s33
    %p65 = scmp.eq.s32.totalorder %s64, 0
    %s67 = sadd.s32 %s66, 1
    %s68 = scalar_select %p65, %s66, %s67
    %p71 = pneg %p65
    %p72 = scmp.eq.s32.totalorder %s11, 1
    %p73 = por %p71, %p72
    %p74 = scmp.ne.s32.totalorder %s66, %s69
    %p75 = scmp.eq.s32.totalorder %s11, 0
    %p76 = por %p74, %p75
    %p77 = scmp.ne.s32.totalorder %s66, %s69
    %p78 = scmp.eq.s32.totalorder %s16, 1
    %p79 = por %p77, %p78
    %p80 = scmp.ne.s32.totalorder %s69, %s70
    %p81 = scmp.eq.s32.totalorder %s16, 0
    %p82 = por %p80, %p81
    %p83 = scmp.ne.s32.totalorder %s69, %s70
    %p84 = scmp.eq.s32.totalorder %s17, 1
    %p85 = por %p83, %p84
    %p87 = scmp.ne.s32.totalorder %s70, %s86
    %p88 = scmp.eq.s32.totalorder %s17, 0
    %p89 = por %p87, %p88
    %s90 = ssub.s32 %s19, %s33
    %p91 = scmp.eq.s32.totalorder %s90, 0
    %s93 = sadd.s32 %s92, 1
    %s94 = scalar_select %p91, %s92, %s93
    %p97 = pneg %p91
    %p98 = scmp.eq.s32.totalorder %s11, 1
    %p99 = por %p97, %p98
    %p100 = scmp.ne.s32.totalorder %s92, %s95
    %p101 = scmp.eq.s32.totalorder %s11, 0
    %p102 = por %p100, %p101
    %p103 = scmp.ne.s32.totalorder %s92, %s95
    %p104 = scmp.eq.s32.totalorder %s16, 1
    %p105 = por %p103, %p104
    %p106 = scmp.ne.s32.totalorder %s95, %s96
    %p107 = scmp.eq.s32.totalorder %s16, 0
    %p108 = por %p106, %p107
    %p109 = scmp.ne.s32.totalorder %s95, %s96
    %p110 = scmp.eq.s32.totalorder %s17, 1
    %p111 = por %p109, %p110
    %p113 = scmp.ne.s32.totalorder %s96, %s112
    %p114 = scmp.eq.s32.totalorder %s17, 0
    %p115 = por %p113, %p114
    %s116 = ssub.s32 %s19, %s33
    %p117 = scmp.eq.s32.totalorder %s116, 0
    %s119 = sadd.s32 %s118, 1
    %s120 = scalar_select %p117, %s118, %s119
    %p123 = pneg %p117
    %p124 = scmp.eq.s32.totalorder %s11, 1
    %p125 = por %p123, %p124
    %p126 = scmp.ne.s32.totalorder %s118, %s121
    %p127 = scmp.eq.s32.totalorder %s11, 0
    %p128 = por %p126, %p127
    %p129 = scmp.ne.s32.totalorder %s118, %s121
    %p130 = scmp.eq.s32.totalorder %s16, 1
    %p131 = por %p129, %p130
    %p132 = scmp.ne.s32.totalorder %s121, %s122
    %p133 = scmp.eq.s32.totalorder %s16, 0
    %p134 = por %p132, %p133
    %p135 = scmp.ne.s32.totalorder %s121, %s122
    %p136 = scmp.eq.s32.totalorder %s17, 1
    %p137 = por %p135, %p136
    %p139 = scmp.ne.s32.totalorder %s122, %s138
    %p140 = scmp.eq.s32.totalorder %s17, 0
    %p141 = por %p139, %p140
    %s142 = ssub.s32 %s20, %s29
    %p143 = scmp.eq.s32.totalorder %s142, 0
    %s145 = sadd.s32 %s144, 1
    %s146 = scalar_select %p143, %s144, %s145
    %p149 = pneg %p143
    %p150 = scmp.eq.s32.totalorder %s11, 1
    %p151 = por %p149, %p150
    %p152 = scmp.ne.s32.totalorder %s144, %s147
    %p153 = scmp.eq.s32.totalorder %s11, 0
    %p154 = por %p152, %p153
    %p155 = scmp.ne.s32.totalorder %s144, %s147
    %p156 = scmp.eq.s32.totalorder %s16, 1
    %p157 = por %p155, %p156
    %p158 = scmp.ne.s32.totalorder %s147, %s148
    %p159 = scmp.eq.s32.totalorder %s16, 0
    %p160 = por %p158, %p159
    %p161 = scmp.ne.s32.totalorder %s147, %s148
    %p162 = scmp.eq.s32.totalorder %s17, 1
    %p163 = por %p161, %p162
    %p165 = scmp.ne.s32.totalorder %s148, %s164
    %p166 = scmp.eq.s32.totalorder %s17, 0
    %p167 = por %p165, %p166
    %s168 = ssub.s32 %s18, %s37
    %s169 = ssub.s32 %s20, %s29
    %s170 = sor.u32 %s168, %s169
    %s171 = ssub.s32 %s19, %s33
    %s172 = sor.u32 %s170, %s171
    %p173 = scmp.eq.s32.totalorder %s172, 0
    %s175 = sadd.s32 %s174, 1
    %s176 = scalar_select %p173, %s174, %s175
    %p179 = pneg %p173
    %p180 = scmp.eq.s32.totalorder %s11, 1
    %p181 = por %p179, %p180
    %p182 = scmp.ne.s32.totalorder %s174, %s177
    %p183 = scmp.eq.s32.totalorder %s11, 0
    %p184 = por %p182, %p183
    %p185 = scmp.ne.s32.totalorder %s174, %s177
    %p186 = scmp.eq.s32.totalorder %s16, 1
    %p187 = por %p185, %p186
    %p188 = scmp.ne.s32.totalorder %s177, %s178
    %p189 = scmp.eq.s32.totalorder %s16, 0
    %p190 = por %p188, %p189
    %p191 = scmp.ne.s32.totalorder %s177, %s178
    %p192 = scmp.eq.s32.totalorder %s17, 1
    %p193 = por %p191, %p192
    %p195 = scmp.ne.s32.totalorder %s178, %s194
    %p196 = scmp.eq.s32.totalorder %s17, 0
    %p197 = por %p195, %p196
    %p198 = scmp.le.s32.totalorder 1, %s11
    %p199 = scmp.lt.s32.totalorder %s11, 3
    %p200 = pnand %p198, %p199
    %p201 = pneg %p200
    // Predicated region
    $region9: #{resblock_forward.2} parent=5 // pred_check
      _
    $region10: #{resblock_forward.2} parent=5 // pred_check_branch
      %203 = sbr.rel (%p200) target = $region12
    $region11: #{resblock_forward.2} parent=5 // pred_region
      %s204 = ssub.s32 %s11, 1
      // Predicated region
      $region13: #{resblock_forward.2} parent=11 // pred_check
        %p205 = pneg %p82
      $region14: #{resblock_forward.2} parent=11 // pred_check_branch
        %207 = sbr.rel (%p205) target = $region16
      $region15: #{resblock_forward.2} parent=11 // pred_region
        %p208 = scmp.lt.s32.totalorder %s22, 0
        %s209 = scalar_select %p208, %s22, 0
        %s210 = smul.addr %s209, 4
        %s211 = scalar_lea.vmem %s1, %s210
      $region16: #{resblock_forward.2} parent=11 // pred_fallthru
        _
      // Predicated region
      $region17: #{resblock_forward.2} parent=11 // pred_check
        %p212 = pneg %p108
      $region18: #{resblock_forward.2} parent=11 // pred_check_branch
        %214 = sbr.rel (%p212) target = $region20
      $region19: #{resblock_forward.2} parent=11 // pred_region
        %p215 = scmp.lt.s32.totalorder %s22, 0
        %s216 = scalar_select %p215, %s22, 0
        %s217 = scalar_lea.vmem %s2, %s216
      $region20: #{resblock_forward.2} parent=11 // pred_fallthru
        _
      // Predicated region
      $region21: #{resblock_forward.2} parent=11 // pred_check
        %p218 = pneg %p134
      $region22: #{resblock_forward.2} parent=11 // pred_check_branch
        %220 = sbr.rel (%p218) target = $region24
      $region23: #{resblock_forward.2} parent=11 // pred_region
        %p221 = scmp.lt.s32.totalorder %s22, 0
        %s222 = scalar_select %p221, %s22, 0
        %s223 = scalar_lea.vmem %s3, %s222
      $region24: #{resblock_forward.2} parent=11 // pred_fallthru
        _
      // Predicated region
      $region25: #{resblock_forward.2} parent=11 // pred_check
        %p224 = pneg %p160
      $region26: #{resblock_forward.2} parent=11 // pred_check_branch
        %226 = sbr.rel (%p224) target = $region28
      $region27: #{resblock_forward.2} parent=11 // pred_region
        %s227 = smul.u32 36, %s23
        %p228 = scmp.lt.s32.totalorder %s227, 35
        %s229 = scalar_select %p228, %s227, 35
        %s230 = smul.addr %s229, 8
        %s231 = scalar_lea.vmem %s4, %s230
        %s232 = smul.u32 36, %s23
      $region28: #{resblock_forward.2} parent=11 // pred_fallthru
        _
    $region12: #{resblock_forward.2} parent=5 // pred_fallthru
      _
    %p233 = scmp.lt.s32.totalorder %s11, 2
    // Predicated region
    $region29: #{resblock_forward.2} parent=5 // pred_check
      %p234 = pneg %p233
    $region30: #{resblock_forward.2} parent=5 // pred_check_branch
      %236 = sbr.rel (%p234) target = $region32
    $region31: #{resblock_forward.2} parent=5 // pred_region
      // Predicated region
      $region33: #{resblock_forward.2} parent=31 // pred_check
        %p237 = pneg %p50
      $region34: #{resblock_forward.2} parent=31 // pred_check_branch
        %239 = sbr.rel (%p237) target = $region36
      $region35: #{resblock_forward.2} parent=31 // pred_region
        %p240 = scmp.lt.s32.totalorder %s18, 1
        %s241 = scalar_select %p240, %s18, 1
        %s242 = smul.addr %s241, 41
        %s243 = smul.addr %s242, 4
        %s244 = scalar_lea.vmem %s0, %s243
      $region36: #{resblock_forward.2} parent=31 // pred_fallthru
        _
    $region32: #{resblock_forward.2} parent=5 // pred_fallthru
      _
    %p245 = scmp.le.s32.totalorder 1, %s11
    %p246 = scmp.lt.s32.totalorder %s11, 3
    %p247 = pnand %p245, %p246
    %p248 = pneg %p247
    // Predicated region
    $region37: #{resblock_forward.2} parent=5 // pred_check
      _
    $region38: #{resblock_forward.2} parent=5 // pred_check_branch
      %250 = sbr.rel (%p247) target = $region40
    $region39: #{resblock_forward.2} parent=5 // pred_region
      %s251 = ssub.s32 %s11, 1
      %p252 = scmp.lt.s32.totalorder %s21, 1
      %s253 = scalar_select %p252, %s21, 1
      %s254 = smul.addr %s253, 41
      %s255 = smul.addr %s254, 4
      %s256 = scalar_lea.vmem %s0, %s255
      %p257 = pneg %p56
      %p258 = pneg %p53
      %p259 = scmp.lt.s32.totalorder %s22, 0
      %s260 = scalar_select %p259, %s22, 0
      %s261 = smul.addr %s260, 4
      %s262 = scalar_lea.vmem %s1, %s261
      %p263 = pneg %p82
      %p264 = pneg %p79
      %p265 = scmp.lt.s32.totalorder %s22, 0
      %s266 = scalar_select %p265, %s22, 0
      %s267 = scalar_lea.vmem %s2, %s266
      %p268 = pneg %p108
      %p269 = pneg %p105
      %p270 = scmp.lt.s32.totalorder %s22, 0
      %s271 = scalar_select %p270, %s22, 0
      %s272 = scalar_lea.vmem %s3, %s271
      %p273 = pneg %p134
      %p274 = pneg %p131
      %s275 = smul.u32 36, %s23
      %p276 = scmp.lt.s32.totalorder %s275, 35
      %s277 = scalar_select %p276, %s275, 35
      %s278 = smul.addr %s277, 8
      %s279 = scalar_lea.vmem %s4, %s278
      %p280 = pneg %p160
      %p281 = pneg %p157
      %p282 = pneg %p190
      %p283 = pneg %p187
      %s284 = smul.u32 36, %s23
      %p285 = scmp.lt.s32.totalorder %s21, 1
      %s286 = scalar_select %p285, %s21, 1
      %p287 = scmp.lt.s32.totalorder %s284, 35
      %s288 = scalar_select %p287, %s284, 35
      %p289 = scmp.lt.s32.totalorder %s22, 0
      %s290 = scalar_select %p289, %s22, 0
      %s291 = sadd.s32 %s290, %s288
      %s292 = smul.addr %s286, 36
      %s293 = sadd.s32 %s291, %s292
      %s294 = smul.addr %s293, 4
      %s295 = scalar_lea.vmem %s5, %s294
      %p296 = scmp.lt.s32.totalorder %s21, 1
      %s297 = scalar_select %p296, %s21, 1
      %s298 = smul.addr %s297, 41
      %s299 = smul.addr %s298, 4
      %s300 = scalar_lea.vmem %s0, %s299
      %p301 = scmp.lt.s32.totalorder %s22, 0
      %s302 = scalar_select %p301, %s22, 0
      %s303 = smul.addr %s302, 4
      %s304 = scalar_lea.vmem %s1, %s303
      %p305 = scmp.lt.s32.totalorder %s22, 0
      %s306 = scalar_select %p305, %s22, 0
      %s307 = scalar_lea.vmem %s2, %s306
      %p308 = scmp.lt.s32.totalorder %s22, 0
      %s309 = scalar_select %p308, %s22, 0
      %s310 = scalar_lea.vmem %s3, %s309
      %s311 = smul.u32 36, %s23
      %p312 = scmp.lt.s32.totalorder %s311, 35
      %s313 = scalar_select %p312, %s311, 35
      %s314 = smul.addr %s313, 8
      %s315 = scalar_lea.vmem %s4, %s314
      %s316 = smul.u32 36, %s23
      %s317 = smul.u32 36, %s23
      %p318 = scmp.lt.s32.totalorder %s21, 1
      %s319 = scalar_select %p318, %s21, 1
      %p320 = scmp.lt.s32.totalorder %s317, 35
      %s321 = scalar_select %p320, %s317, 35
      %p322 = scmp.lt.s32.totalorder %s22, 0
      %s323 = scalar_select %p322, %s22, 0
      %s324 = sadd.s32 %s323, %s321
      %s325 = smul.addr %s319, 36
      %s326 = sadd.s32 %s324, %s325
      %s327 = smul.addr %s326, 4
      %s328 = scalar_lea.vmem %s5, %s327
      %s329 = smul.u32 36, %s23
      %v331 = vld [vmem:[%s300] sm:$0xf]
      %v332 = vld [vmem:[%s300 + $0x4] sm:$0xf]
      %v333 = vld [vmem:[%s300 + $0x8] sm:$0xf]
      %v334 = vld [vmem:[%s300 + $0xc] sm:$0xf]
      %v335 = vld [vmem:[%s300 + $0x10] sm:$0xf]
      %v336 = vld [vmem:[%s300 + $0x14] sm:$0xf]
      %v337 = vld [vmem:[%s300 + $0x18] sm:$0xf]
      %v338 = vld [vmem:[%s300 + $0x1c] sm:$0xf]
      %v339 = vld [vmem:[%s300 + $0x20] sm:$0xf]
      %v340 = vld [vmem:[%s300 + $0x24] sm:$0xf]
      %v341 = vld [vmem:[%s300 + $0x28] sm:$0xf]
      %v342 = vld [vmem:[%s300 + $0x2c] sm:$0xf]
      %v343 = vld [vmem:[%s300 + $0x30] sm:$0xf]
      %v344 = vld [vmem:[%s300 + $0x34] sm:$0xf]
      %v345 = vld [vmem:[%s300 + $0x38] sm:$0xf]
      %v346 = vld [vmem:[%s300 + $0x3c] sm:$0xf]
      %v347 = vld [vmem:[%s300 + $0x40] sm:$0xf]
      %v348 = vld [vmem:[%s300 + $0x44] sm:$0xf]
      %v349 = vld [vmem:[%s300 + $0x48] sm:$0xf]
      %v350 = vld [vmem:[%s300 + $0x4c] sm:$0xf]
      %v351 = vld [vmem:[%s300 + $0x50] sm:$0xf]
      %v352 = vld [vmem:[%s300 + $0x54] sm:$0xf]
      %v353 = vld [vmem:[%s300 + $0x58] sm:$0xf]
      %v354 = vld [vmem:[%s300 + $0x5c] sm:$0xf]
      %v355 = vld [vmem:[%s300 + $0x60] sm:$0xf]
      %v356 = vld [vmem:[%s300 + $0x64] sm:$0xf]
      %v357 = vld [vmem:[%s300 + $0x68] sm:$0xf]
      %v358 = vld [vmem:[%s300 + $0x6c] sm:$0xf]
      %v359 = vld [vmem:[%s300 + $0x70] sm:$0xf]
      %v360 = vld [vmem:[%s300 + $0x74] sm:$0xf]
      %v361 = vld [vmem:[%s300 + $0x78] sm:$0xf]
      %v362 = vld [vmem:[%s300 + $0x7c] sm:$0xf]
      %v363 = vld [vmem:[%s300 + $0x80] sm:$0xf]
      %v364 = vld [vmem:[%s300 + $0x84] sm:$0xf]
      %v365 = vld [vmem:[%s300 + $0x88] sm:$0xf]
      %v366 = vld [vmem:[%s300 + $0x8c] sm:$0xf]
      %v367 = vld [vmem:[%s304] sm:$0x3]
      %v368 = vld [vmem:[%s300 + $0x90] sm:$0x1]
      %v369 = vld [vmem:[%s304] sm:$0xc]
      %v407 = vunpack.c.l.b16 %v331
      %v408 = vunpack.c.l.b16 %v332
      %v409 = vunpack.c.l.b16 %v333
      %v410 = vunpack.c.l.b16 %v334
      %v411 = vunpack.c.l.b16 %v335
      %v412 = vunpack.c.l.b16 %v336
      %v413 = vunpack.c.l.b16 %v337
      %v414 = vunpack.c.l.b16 %v338
      %v415 = vunpack.c.l.b16 %v339
      %v416 = vunpack.c.l.b16 %v340
      %v417 = vunpack.c.l.b16 %v341
      %v418 = vunpack.c.l.b16 %v342
      %v419 = vunpack.c.l.b16 %v343
      %v420 = vunpack.c.l.b16 %v344
      %v421 = vunpack.c.l.b16 %v345
      %v422 = vunpack.c.l.b16 %v346
      %v423 = vunpack.c.l.b16 %v347
      %v424 = vunpack.c.l.b16 %v348
      %v425 = vunpack.c.l.b16 %v349
      %v426 = vunpack.c.l.b16 %v350
      %v427 = vunpack.c.l.b16 %v351
      %v428 = vunpack.c.l.b16 %v352
      %v429 = vunpack.c.l.b16 %v353
      %v430 = vunpack.c.l.b16 %v354
      %v431 = vunpack.c.l.b16 %v355
      %v432 = vunpack.c.l.b16 %v356
      %v433 = vunpack.c.l.b16 %v357
      %v434 = vunpack.c.l.b16 %v358
      %v435 = vunpack.c.l.b16 %v359
      %v436 = vunpack.c.l.b16 %v360
      %v437 = vunpack.c.l.b16 %v361
      %v438 = vunpack.c.l.b16 %v362
      %v439 = vunpack.c.l.b16 %v363
      %v440 = vunpack.c.l.b16 %v364
      %v441 = vunpack.c.l.b16 %v365
      %v442 = vunpack.c.l.b16 %v366
      %v443 = vunpack.c.l.b16 %v368
      %v444 = vpack.c.b16 %v408, %v407
      %v445 = vpack.c.b16 %v410, %v409
      %v446 = vpack.c.b16 %v412, %v411
      %v447 = vpack.c.b16 %v414, %v413
      %v448 = vpack.c.b16 %v416, %v415
      %v449 = vpack.c.b16 %v418, %v417
      %v450 = vpack.c.b16 %v420, %v419
      %v451 = vpack.c.b16 %v422, %v421
      %v452 = vpack.c.b16 %v424, %v423
      %v453 = vpack.c.b16 %v426, %v425
      %v454 = vpack.c.b16 %v428, %v427
      %v455 = vpack.c.b16 %v430, %v429
      %v456 = vpack.c.b16 %v432, %v431
      %v457 = vpack.c.b16 %v434, %v433
      %v458 = vpack.c.b16 %v436, %v435
      %v459 = vpack.c.b16 %v438, %v437
      %v460 = vpack.c.b16 %v440, %v439
      %v461 = vpack.c.b16 %v442, %v441
      %v462 = vpack.c.b16 %v443, %v443
      %vm463 = vsmask.f32 7424
      %v465 = vshrl.u32 %v444, 16
      %v467 = vshll.u32 %v444, 16
      %v469 = vrot.slane %v467, 1
      %v470 = vor.u32 %v465, %v469
      %v472 = vshll.u32 %v445, 16
      %v474 = vrot.slane %v472, 1
      %v475 = vsel %vm463, %v470, %v474
      %v476 = vshrl.u32 %v445, 16
      %v478 = vor.u32 %v476, %v474
      %v480 = vshll.u32 %v446, 16
      %v482 = vrot.slane %v480, 1
      %v483 = vsel %vm463, %v478, %v482
      %v484 = vshrl.u32 %v446, 16
      %v486 = vor.u32 %v484, %v482
      %v488 = vshll.u32 %v447, 16
      %v490 = vrot.slane %v488, 1
      %v491 = vsel %vm463, %v486, %v490
      %v492 = vshrl.u32 %v447, 16
      %v494 = vor.u32 %v492, %v490
      %v496 = vshll.u32 %v448, 16
      %v498 = vrot.slane %v496, 1
      %v499 = vsel %vm463, %v494, %v498
      %v500 = vshrl.u32 %v448, 16
      %v502 = vor.u32 %v500, %v498
      %v504 = vshll.u32 %v449, 16
      %v506 = vrot.slane %v504, 1
      %v507 = vsel %vm463, %v502, %v506
      %v508 = vshrl.u32 %v449, 16
      %v510 = vor.u32 %v508, %v506
      %v512 = vshll.u32 %v450, 16
      %v514 = vrot.slane %v512, 1
      %v515 = vsel %vm463, %v510, %v514
      %v516 = vshrl.u32 %v450, 16
      %v518 = vor.u32 %v516, %v514
      %v520 = vshll.u32 %v451, 16
      %v522 = vrot.slane %v520, 1
      %v523 = vsel %vm463, %v518, %v522
      %v524 = vshrl.u32 %v451, 16
      %v526 = vor.u32 %v524, %v522
      %v528 = vshll.u32 %v452, 16
      %v530 = vrot.slane %v528, 1
      %v531 = vsel %vm463, %v526, %v530
      %v532 = vshrl.u32 %v452, 16
      %v534 = vor.u32 %v532, %v530
      %v536 = vshll.u32 %v453, 16
      %v538 = vrot.slane %v536, 1
      %v539 = vsel %vm463, %v534, %v538
      %v540 = vshrl.u32 %v453, 16
      %v542 = vor.u32 %v540, %v538
      %v544 = vshll.u32 %v454, 16
      %v546 = vrot.slane %v544, 1
      %v547 = vsel %vm463, %v542, %v546
      %v548 = vshrl.u32 %v454, 16
      %v550 = vor.u32 %v548, %v546
      %v552 = vshll.u32 %v455, 16
      %v554 = vrot.slane %v552, 1
      %v555 = vsel %vm463, %v550, %v554
      %v556 = vshrl.u32 %v455, 16
      %v558 = vor.u32 %v556, %v554
      %v560 = vshll.u32 %v456, 16
      %v562 = vrot.slane %v560, 1
      %v563 = vsel %vm463, %v558, %v562
      %v564 = vshrl.u32 %v456, 16
      %v566 = vor.u32 %v564, %v562
      %v568 = vshll.u32 %v457, 16
      %v570 = vrot.slane %v568, 1
      %v571 = vsel %vm463, %v566, %v570
      %v572 = vshrl.u32 %v457, 16
      %v574 = vor.u32 %v572, %v570
      %v576 = vshll.u32 %v458, 16
      %v578 = vrot.slane %v576, 1
      %v579 = vsel %vm463, %v574, %v578
      %v580 = vshrl.u32 %v458, 16
      %v582 = vor.u32 %v580, %v578
      %v584 = vshll.u32 %v459, 16
      %v586 = vrot.slane %v584, 1
      %v587 = vsel %vm463, %v582, %v586
      %v588 = vshrl.u32 %v459, 16
      %v590 = vor.u32 %v588, %v586
      %v592 = vshll.u32 %v460, 16
      %v594 = vrot.slane %v592, 1
      %v595 = vsel %vm463, %v590, %v594
      %v596 = vshrl.u32 %v460, 16
      %v598 = vor.u32 %v596, %v594
      %v600 = vshll.u32 %v461, 16
      %v602 = vrot.slane %v600, 1
      %v603 = vsel %vm463, %v598, %v602
      %v604 = vshrl.u32 %v461, 16
      %v606 = vor.u32 %v604, %v602
      %v608 = vshll.u32 %v462, 16
      %v610 = vrot.slane %v608, 1
      %v611 = vsel %vm463, %v606, %v610
      %v613 = vunpack.c.l.b16 %v369
      %v614 = vpack.c.b16 %v613, %v613
      %v615 = vrot.slane %v614, 2
      %vm616 = vcmask 31744
      %v618 = vsel %vm616, %v475, 0
      %v621 = vsel %vm616, %v483, 0
      %v624 = vsel %vm616, %v491, 0
      %v627 = vsel %vm616, %v499, 0
      %v630 = vsel %vm616, %v507, 0
      %v633 = vsel %vm616, %v515, 0
      %v636 = vsel %vm616, %v523, 0
      %v639 = vsel %vm616, %v531, 0
      %v642 = vsel %vm616, %v539, 0
      %v645 = vsel %vm616, %v547, 0
      %v648 = vsel %vm616, %v555, 0
      %v651 = vsel %vm616, %v563, 0
      %v654 = vsel %vm616, %v571, 0
      %v657 = vsel %vm616, %v579, 0
      %v660 = vsel %vm616, %v587, 0
      %v663 = vsel %vm616, %v595, 0
      %v666 = vsel %vm616, %v603, 0
      %v669 = vsel %vm616, %v611, 0
      %vm671 = vcmask 1041408
      %v673 = vsel %vm671, %v615, 0
      %675 = vmatpush.bf16.msra.mxu0 0
      %676 = vmatpush.bf16.msra.mxu0 0
      %677 = vmatpush.bf16.msra.mxu0 0
      %678 = vmatpush.bf16.msra.mxu0 0
      %679 = vmatpush.bf16.msra.mxu0 0
      %680 = vmatpush.bf16.msra.mxu0 0
      %681 = vmatpush.bf16.msra.mxu0 0
      %682 = vmatpush.bf16.msra.mxu0 %v673
      %683 = vmatmul.bf16.gmra.mxu0 %v618
      %v684 = vpop.f32.mrf.mxu0
      %v685 = vadd.f32 0.0, %v684
      %v686 = vpop.f32.mrf.mxu0
      %v687 = vadd.f32 0.0, %v686
      %688 = vmatmul.bf16.gmra.mxu0 %v621
      %v689 = vpop.f32.mrf.mxu0
      %v690 = vadd.f32 0.0, %v689
      %v691 = vpop.f32.mrf.mxu0
      %v692 = vadd.f32 0.0, %v691
      %693 = vmatmul.bf16.gmra.mxu0 %v624
      %v694 = vpop.f32.mrf.mxu0
      %v695 = vadd.f32 0.0, %v694
      %v696 = vpop.f32.mrf.mxu0
      %v697 = vadd.f32 0.0, %v696
      %698 = vmatmul.bf16.gmra.mxu0 %v627
      %v699 = vpop.f32.mrf.mxu0
      %v700 = vadd.f32 0.0, %v699
      %v701 = vpop.f32.mrf.mxu0
      %v702 = vadd.f32 0.0, %v701
      %703 = vmatmul.bf16.gmra.mxu0 %v630
      %v704 = vpop.f32.mrf.mxu0
      %v705 = vadd.f32 0.0, %v704
      %v706 = vpop.f32.mrf.mxu0
      %v707 = vadd.f32 0.0, %v706
      %708 = vmatmul.bf16.gmra.mxu0 %v633
      %v709 = vpop.f32.mrf.mxu0
      %v710 = vadd.f32 0.0, %v709
      %v711 = vpop.f32.mrf.mxu0
      %v712 = vadd.f32 0.0, %v711
      %713 = vmatmul.bf16.gmra.mxu0 %v636
      %v714 = vpop.f32.mrf.mxu0
      %v715 = vadd.f32 0.0, %v714
      %v716 = vpop.f32.mrf.mxu0
      %v717 = vadd.f32 0.0, %v716
      %718 = vmatmul.bf16.gmra.mxu0 %v639
      %v719 = vpop.f32.mrf.mxu0
      %v720 = vadd.f32 0.0, %v719
      %v721 = vpop.f32.mrf.mxu0
      %v722 = vadd.f32 0.0, %v721
      %723 = vmatmul.bf16.gmra.mxu0 %v642
      %v724 = vpop.f32.mrf.mxu0
      %v725 = vadd.f32 0.0, %v724
      %v726 = vpop.f32.mrf.mxu0
      %v727 = vadd.f32 0.0, %v726
      %728 = vmatmul.bf16.gmra.mxu0 %v645
      %v729 = vpop.f32.mrf.mxu0
      %v730 = vadd.f32 0.0, %v729
      %v731 = vpop.f32.mrf.mxu0
      %v732 = vadd.f32 0.0, %v731
      %733 = vmatmul.bf16.gmra.mxu0 %v648
      %v734 = vpop.f32.mrf.mxu0
      %v735 = vadd.f32 0.0, %v734
      %v736 = vpop.f32.mrf.mxu0
      %v737 = vadd.f32 0.0, %v736
      %738 = vmatmul.bf16.gmra.mxu0 %v651
      %v739 = vpop.f32.mrf.mxu0
      %v740 = vadd.f32 0.0, %v739
      %v741 = vpop.f32.mrf.mxu0
      %v742 = vadd.f32 0.0, %v741
      %743 = vmatmul.bf16.gmra.mxu0 %v654
      %v744 = vpop.f32.mrf.mxu0
      %v745 = vadd.f32 0.0, %v744
      %v746 = vpop.f32.mrf.mxu0
      %v747 = vadd.f32 0.0, %v746
      %748 = vmatmul.bf16.gmra.mxu0 %v657
      %v749 = vpop.f32.mrf.mxu0
      %v750 = vadd.f32 0.0, %v749
      %v751 = vpop.f32.mrf.mxu0
      %v752 = vadd.f32 0.0, %v751
      %753 = vmatmul.bf16.gmra.mxu0 %v660
      %v754 = vpop.f32.mrf.mxu0
      %v755 = vadd.f32 0.0, %v754
      %v756 = vpop.f32.mrf.mxu0
      %v757 = vadd.f32 0.0, %v756
      %758 = vmatmul.bf16.gmra.mxu0 %v663
      %v759 = vpop.f32.mrf.mxu0
      %v760 = vadd.f32 0.0, %v759
      %v761 = vpop.f32.mrf.mxu0
      %v762 = vadd.f32 0.0, %v761
      %763 = vmatmul.bf16.gmra.mxu0 %v666
      %v764 = vpop.f32.mrf.mxu0
      %v765 = vadd.f32 0.0, %v764
      %v766 = vpop.f32.mrf.mxu0
      %v767 = vadd.f32 0.0, %v766
      %768 = vmatmul.bf16.gmra.mxu0 %v669
      %v769 = vpop.f32.mrf.mxu0
      %v770 = vadd.f32 0.0, %v769
      %v771 = vpop.f32.mrf.mxu0
      %v772 = vadd.f32 0.0, %v771
      %773 = vdwg.mxu0
      %v774 = vsel %vm616, %v444, 0
      %v776 = vsel %vm616, %v445, 0
      %v778 = vsel %vm616, %v446, 0
      %v780 = vsel %vm616, %v447, 0
      %v782 = vsel %vm616, %v448, 0
      %v784 = vsel %vm616, %v449, 0
      %v786 = vsel %vm616, %v450, 0
      %v788 = vsel %vm616, %v451, 0
      %v790 = vsel %vm616, %v452, 0
      %v792 = vsel %vm616, %v453, 0
      %v794 = vsel %vm616, %v454, 0
      %v796 = vsel %vm616, %v455, 0
      %v798 = vsel %vm616, %v456, 0
      %v800 = vsel %vm616, %v457, 0
      %v802 = vsel %vm616, %v458, 0
      %v804 = vsel %vm616, %v459, 0
      %v806 = vsel %vm616, %v460, 0
      %v808 = vsel %vm616, %v461, 0
      %v811 = vsel %vm671, %v367, 0
      %813 = vmatpush.bf16.msra.mxu0 0
      %814 = vmatpush.bf16.msra.mxu0 0
      %815 = vmatpush.bf16.msra.mxu0 0
      %816 = vmatpush.bf16.msra.mxu0 0
      %817 = vmatpush.bf16.msra.mxu0 0
      %818 = vmatpush.bf16.msra.mxu0 0
      %819 = vmatpush.bf16.msra.mxu0 0
      %820 = vmatpush.bf16.msra.mxu0 %v811
      %821 = vmatmul.bf16.gmra.mxu0 %v774
      %v822 = vpop.f32.mrf.mxu0
      %v823 = vadd.f32 %v685, %v822
      %v824 = vpop.f32.mrf.mxu0
      %v825 = vadd.f32 %v687, %v824
      %826 = vmatmul.bf16.gmra.mxu0 %v776
      %v827 = vpop.f32.mrf.mxu0
      %v828 = vadd.f32 %v690, %v827
      %v829 = vpop.f32.mrf.mxu0
      %v830 = vadd.f32 %v692, %v829
      %831 = vmatmul.bf16.gmra.mxu0 %v778
      %v832 = vpop.f32.mrf.mxu0
      %v833 = vadd.f32 %v695, %v832
      %v834 = vpop.f32.mrf.mxu0
      %v835 = vadd.f32 %v697, %v834
      %836 = vmatmul.bf16.gmra.mxu0 %v780
      %v837 = vpop.f32.mrf.mxu0
      %v838 = vadd.f32 %v700, %v837
      %v839 = vpop.f32.mrf.mxu0
      %v840 = vadd.f32 %v702, %v839
      %841 = vmatmul.bf16.gmra.mxu0 %v782
      %v842 = vpop.f32.mrf.mxu0
      %v843 = vadd.f32 %v705, %v842
      %v844 = vpop.f32.mrf.mxu0
      %v845 = vadd.f32 %v707, %v844
      %846 = vmatmul.bf16.gmra.mxu0 %v784
      %v847 = vpop.f32.mrf.mxu0
      %v848 = vadd.f32 %v710, %v847
      %v849 = vpop.f32.mrf.mxu0
      %v850 = vadd.f32 %v712, %v849
      %851 = vmatmul.bf16.gmra.mxu0 %v786
      %v852 = vpop.f32.mrf.mxu0
      %v853 = vadd.f32 %v715, %v852
      %v854 = vpop.f32.mrf.mxu0
      %v855 = vadd.f32 %v717, %v854
      %856 = vmatmul.bf16.gmra.mxu0 %v788
      %v857 = vpop.f32.mrf.mxu0
      %v858 = vadd.f32 %v720, %v857
      %v859 = vpop.f32.mrf.mxu0
      %v860 = vadd.f32 %v722, %v859
      %861 = vmatmul.bf16.gmra.mxu0 %v790
      %v862 = vpop.f32.mrf.mxu0
      %v863 = vadd.f32 %v725, %v862
      %v864 = vpop.f32.mrf.mxu0
      %v865 = vadd.f32 %v727, %v864
      %866 = vmatmul.bf16.gmra.mxu0 %v792
      %v867 = vpop.f32.mrf.mxu0
      %v868 = vadd.f32 %v730, %v867
      %v869 = vpop.f32.mrf.mxu0
      %v870 = vadd.f32 %v732, %v869
      %871 = vmatmul.bf16.gmra.mxu0 %v794
      %v872 = vpop.f32.mrf.mxu0
      %v873 = vadd.f32 %v735, %v872
      %v874 = vpop.f32.mrf.mxu0
      %v875 = vadd.f32 %v737, %v874
      %876 = vmatmul.bf16.gmra.mxu0 %v796
      %v877 = vpop.f32.mrf.mxu0
      %v878 = vadd.f32 %v740, %v877
      %v879 = vpop.f32.mrf.mxu0
      %v880 = vadd.f32 %v742, %v879
      %881 = vmatmul.bf16.gmra.mxu0 %v798
      %v882 = vpop.f32.mrf.mxu0
      %v883 = vadd.f32 %v745, %v882
      %v884 = vpop.f32.mrf.mxu0
      %v885 = vadd.f32 %v747, %v884
      %886 = vmatmul.bf16.gmra.mxu0 %v800
      %v887 = vpop.f32.mrf.mxu0
      %v888 = vadd.f32 %v750, %v887
      %v889 = vpop.f32.mrf.mxu0
      %v890 = vadd.f32 %v752, %v889
      %891 = vmatmul.bf16.gmra.mxu0 %v802
      %v892 = vpop.f32.mrf.mxu0
      %v893 = vadd.f32 %v755, %v892
      %v894 = vpop.f32.mrf.mxu0
      %v895 = vadd.f32 %v757, %v894
      %896 = vmatmul.bf16.gmra.mxu0 %v804
      %v897 = vpop.f32.mrf.mxu0
      %v898 = vadd.f32 %v760, %v897
      %v899 = vpop.f32.mrf.mxu0
      %v900 = vadd.f32 %v762, %v899
      %901 = vmatmul.bf16.gmra.mxu0 %v806
      %v902 = vpop.f32.mrf.mxu0
      %v903 = vadd.f32 %v765, %v902
      %v904 = vpop.f32.mrf.mxu0
      %v905 = vadd.f32 %v767, %v904
      %906 = vmatmul.bf16.gmra.mxu0 %v808
      %v907 = vpop.f32.mrf.mxu0
      %v908 = vadd.f32 %v770, %v907
      %v909 = vpop.f32.mrf.mxu0
      %v910 = vadd.f32 %v772, %v909
      %911 = vdwg.mxu0
      %v912 = vld [vmem:[%s300] sm:$0xe]
      %v913 = vld [vmem:[%s304 + $0x4] sm:$0x3]
      %v915 = vunpack.c.l.b16 %v912
      %v916 = vpack.c.b16 %v408, %v915
      %vm917 = vcmask 1046528
      %v918 = vrot.slane %v916, 1
      %v919 = vrot.slane %v445, 1
      %v920 = vsel %vm917, %v918, %v919
      %v921 = vrot.slane %v446, 1
      %v922 = vsel %vm917, %v919, %v921
      %v923 = vrot.slane %v447, 1
      %v924 = vsel %vm917, %v921, %v923
      %v925 = vrot.slane %v448, 1
      %v926 = vsel %vm917, %v923, %v925
      %v927 = vrot.slane %v449, 1
      %v928 = vsel %vm917, %v925, %v927
      %v929 = vrot.slane %v450, 1
      %v930 = vsel %vm917, %v927, %v929
      %v931 = vrot.slane %v451, 1
      %v932 = vsel %vm917, %v929, %v931
      %v933 = vrot.slane %v452, 1
      %v934 = vsel %vm917, %v931, %v933
      %v935 = vrot.slane %v453, 1
      %v936 = vsel %vm917, %v933, %v935
      %v937 = vrot.slane %v454, 1
      %v938 = vsel %vm917, %v935, %v937
      %v939 = vrot.slane %v455, 1
      %v940 = vsel %vm917, %v937, %v939
      %v941 = vrot.slane %v456, 1
      %v942 = vsel %vm917, %v939, %v941
      %v943 = vrot.slane %v457, 1
      %v944 = vsel %vm917, %v941, %v943
      %v945 = vrot.slane %v458, 1
      %v946 = vsel %vm917, %v943, %v945
      %v947 = vrot.slane %v459, 1
      %v948 = vsel %vm917, %v945, %v947
      %v949 = vrot.slane %v460, 1
      %v950 = vsel %vm917, %v947, %v949
      %v951 = vrot.slane %v461, 1
      %v952 = vsel %vm917, %v949, %v951
      %v953 = vrot.slane %v462, 1
      %v954 = vsel %vm917, %v951, %v953
      %v956 = vsel %vm616, %v920, 0
      %v959 = vsel %vm616, %v922, 0
      %v962 = vsel %vm616, %v924, 0
      %v965 = vsel %vm616, %v926, 0
      %v968 = vsel %vm616, %v928, 0
      %v971 = vsel %vm616, %v930, 0
      %v974 = vsel %vm616, %v932, 0
      %v977 = vsel %vm616, %v934, 0
      %v980 = vsel %vm616, %v936, 0
      %v983 = vsel %vm616, %v938, 0
      %v986 = vsel %vm616, %v940, 0
      %v989 = vsel %vm616, %v942, 0
      %v992 = vsel %vm616, %v944, 0
      %v995 = vsel %vm616, %v946, 0
      %v998 = vsel %vm616, %v948, 0
      %v1001 = vsel %vm616, %v950, 0
      %v1004 = vsel %vm616, %v952, 0
      %v1007 = vsel %vm616, %v954, 0
      %v1010 = vsel %vm671, %v913, 0
      %1012 = vmatpush.bf16.msra.mxu0 0
      %1013 = vmatpush.bf16.msra.mxu0 0
      %1014 = vmatpush.bf16.msra.mxu0 0
      %1015 = vmatpush.bf16.msra.mxu0 0
      %1016 = vmatpush.bf16.msra.mxu0 0
      %1017 = vmatpush.bf16.msra.mxu0 0
      %1018 = vmatpush.bf16.msra.mxu0 0
      %1019 = vmatpush.bf16.msra.mxu0 %v1010
      %1020 = vmatmul.bf16.gmra.mxu0 %v956
      %v1021 = vpop.f32.mrf.mxu0
      %v1022 = vadd.f32 0.0, %v1021
      %v1023 = vpop.f32.mrf.mxu0
      %v1024 = vadd.f32 0.0, %v1023
      %1025 = vmatmul.bf16.gmra.mxu0 %v959
      %v1026 = vpop.f32.mrf.mxu0
      %v1027 = vadd.f32 0.0, %v1026
      %v1028 = vpop.f32.mrf.mxu0
      %v1029 = vadd.f32 0.0, %v1028
      %1030 = vmatmul.bf16.gmra.mxu0 %v962
      %v1031 = vpop.f32.mrf.mxu0
      %v1032 = vadd.f32 0.0, %v1031
      %v1033 = vpop.f32.mrf.mxu0
      %v1034 = vadd.f32 0.0, %v1033
      %1035 = vmatmul.bf16.gmra.mxu0 %v965
      %v1036 = vpop.f32.mrf.mxu0
      %v1037 = vadd.f32 0.0, %v1036
      %v1038 = vpop.f32.mrf.mxu0
      %v1039 = vadd.f32 0.0, %v1038
      %1040 = vmatmul.bf16.gmra.mxu0 %v968
      %v1041 = vpop.f32.mrf.mxu0
      %v1042 = vadd.f32 0.0, %v1041
      %v1043 = vpop.f32.mrf.mxu0
      %v1044 = vadd.f32 0.0, %v1043
      %1045 = vmatmul.bf16.gmra.mxu0 %v971
      %v1046 = vpop.f32.mrf.mxu0
      %v1047 = vadd.f32 0.0, %v1046
      %v1048 = vpop.f32.mrf.mxu0
      %v1049 = vadd.f32 0.0, %v1048
      %1050 = vmatmul.bf16.gmra.mxu0 %v974
      %v1051 = vpop.f32.mrf.mxu0
      %v1052 = vadd.f32 0.0, %v1051
      %v1053 = vpop.f32.mrf.mxu0
      %v1054 = vadd.f32 0.0, %v1053
      %1055 = vmatmul.bf16.gmra.mxu0 %v977
      %v1056 = vpop.f32.mrf.mxu0
      %v1057 = vadd.f32 0.0, %v1056
      %v1058 = vpop.f32.mrf.mxu0
      %v1059 = vadd.f32 0.0, %v1058
      %1060 = vmatmul.bf16.gmra.mxu0 %v980
      %v1061 = vpop.f32.mrf.mxu0
      %v1062 = vadd.f32 0.0, %v1061
      %v1063 = vpop.f32.mrf.mxu0
      %v1064 = vadd.f32 0.0, %v1063
      %1065 = vmatmul.bf16.gmra.mxu0 %v983
      %v1066 = vpop.f32.mrf.mxu0
      %v1067 = vadd.f32 0.0, %v1066
      %v1068 = vpop.f32.mrf.mxu0
      %v1069 = vadd.f32 0.0, %v1068
      %1070 = vmatmul.bf16.gmra.mxu0 %v986
      %v1071 = vpop.f32.mrf.mxu0
      %v1072 = vadd.f32 0.0, %v1071
      %v1073 = vpop.f32.mrf.mxu0
      %v1074 = vadd.f32 0.0, %v1073
      %1075 = vmatmul.bf16.gmra.mxu0 %v989
      %v1076 = vpop.f32.mrf.mxu0
      %v1077 = vadd.f32 0.0, %v1076
      %v1078 = vpop.f32.mrf.mxu0
      %v1079 = vadd.f32 0.0, %v1078
      %1080 = vmatmul.bf16.gmra.mxu0 %v992
      %v1081 = vpop.f32.mrf.mxu0
      %v1082 = vadd.f32 0.0, %v1081
      %v1083 = vpop.f32.mrf.mxu0
      %v1084 = vadd.f32 0.0, %v1083
      %1085 = vmatmul.bf16.gmra.mxu0 %v995
      %v1086 = vpop.f32.mrf.mxu0
      %v1087 = vadd.f32 0.0, %v1086
      %v1088 = vpop.f32.mrf.mxu0
      %v1089 = vadd.f32 0.0, %v1088
      %1090 = vmatmul.bf16.gmra.mxu0 %v998
      %v1091 = vpop.f32.mrf.mxu0
      %v1092 = vadd.f32 0.0, %v1091
      %v1093 = vpop.f32.mrf.mxu0
      %v1094 = vadd.f32 0.0, %v1093
      %1095 = vmatmul.bf16.gmra.mxu0 %v1001
      %v1096 = vpop.f32.mrf.mxu0
      %v1097 = vadd.f32 0.0, %v1096
      %v1098 = vpop.f32.mrf.mxu0
      %v1099 = vadd.f32 0.0, %v1098
      %1100 = vmatmul.bf16.gmra.mxu0 %v1004
      %v1101 = vpop.f32.mrf.mxu0
      %v1102 = vadd.f32 0.0, %v1101
      %v1103 = vpop.f32.mrf.mxu0
      %v1104 = vadd.f32 0.0, %v1103
      %1105 = vmatmul.bf16.gmra.mxu0 %v1007
      %v1106 = vpop.f32.mrf.mxu0
      %v1107 = vadd.f32 0.0, %v1106
      %v1108 = vpop.f32.mrf.mxu0
      %v1109 = vadd.f32 0.0, %v1108
      %1110 = vdwg.mxu0
      %v1111 = vadd.f32 %v823, %v1022
      %v1112 = vadd.f32 %v825, %v1024
      %v1113 = vadd.f32 %v828, %v1027
      %v1114 = vadd.f32 %v830, %v1029
      %v1115 = vadd.f32 %v833, %v1032
      %v1116 = vadd.f32 %v835, %v1034
      %v1117 = vadd.f32 %v838, %v1037
      %v1118 = vadd.f32 %v840, %v1039
      %v1119 = vadd.f32 %v843, %v1042
      %v1120 = vadd.f32 %v845, %v1044
      %v1121 = vadd.f32 %v848, %v1047
      %v1122 = vadd.f32 %v850, %v1049
      %v1123 = vadd.f32 %v853, %v1052
      %v1124 = vadd.f32 %v855, %v1054
      %v1125 = vadd.f32 %v858, %v1057
      %v1126 = vadd.f32 %v860, %v1059
      %v1127 = vadd.f32 %v863, %v1062
      %v1128 = vadd.f32 %v865, %v1064
      %v1129 = vadd.f32 %v868, %v1067
      %v1130 = vadd.f32 %v870, %v1069
      %v1131 = vadd.f32 %v873, %v1072
      %v1132 = vadd.f32 %v875, %v1074
      %v1133 = vadd.f32 %v878, %v1077
      %v1134 = vadd.f32 %v880, %v1079
      %v1135 = vadd.f32 %v883, %v1082
      %v1136 = vadd.f32 %v885, %v1084
      %v1137 = vadd.f32 %v888, %v1087
      %v1138 = vadd.f32 %v890, %v1089
      %v1139 = vadd.f32 %v893, %v1092
      %v1140 = vadd.f32 %v895, %v1094
      %v1141 = vadd.f32 %v898, %v1097
      %v1142 = vadd.f32 %v900, %v1099
      %v1143 = vadd.f32 %v903, %v1102
      %v1144 = vadd.f32 %v905, %v1104
      %v1145 = vadd.f32 %v908, %v1107
      %v1146 = vadd.f32 %v910, %v1109
      %v1147 = vld [vmem:[%s300 + $0x8] sm:$0xe]
      %v1148 = vld [vmem:[%s300 + $0xc] sm:$0xf]
      %v1149 = vld [vmem:[%s300 + $0x10] sm:$0xf]
      %v1150 = vld [vmem:[%s300 + $0x14] sm:$0xf]
      %v1151 = vld [vmem:[%s300 + $0x18] sm:$0xf]
      %v1152 = vld [vmem:[%s300 + $0x1c] sm:$0xf]
      %v1153 = vld [vmem:[%s300 + $0x20] sm:$0xf]
      %v1154 = vld [vmem:[%s300 + $0x24] sm:$0xf]
      %v1155 = vld [vmem:[%s300 + $0x28] sm:$0xf]
      %v1156 = vld [vmem:[%s300 + $0x2c] sm:$0xf]
      %v1157 = vld [vmem:[%s300 + $0x30] sm:$0xf]
      %v1158 = vld [vmem:[%s300 + $0x34] sm:$0xf]
      %v1159 = vld [vmem:[%s300 + $0x38] sm:$0xf]
      %v1160 = vld [vmem:[%s300 + $0x3c] sm:$0xf]
      %v1161 = vld [vmem:[%s300 + $0x40] sm:$0xf]
      %v1162 = vld [vmem:[%s300 + $0x44] sm:$0xf]
      %v1163 = vld [vmem:[%s300 + $0x48] sm:$0xf]
      %v1164 = vld [vmem:[%s300 + $0x4c] sm:$0xf]
      %v1165 = vld [vmem:[%s300 + $0x50] sm:$0xf]
      %v1166 = vld [vmem:[%s300 + $0x54] sm:$0xf]
      %v1167 = vld [vmem:[%s300 + $0x58] sm:$0xf]
      %v1168 = vld [vmem:[%s300 + $0x5c] sm:$0xf]
      %v1169 = vld [vmem:[%s300 + $0x60] sm:$0xf]
      %v1170 = vld [vmem:[%s300 + $0x64] sm:$0xf]
      %v1171 = vld [vmem:[%s300 + $0x68] sm:$0xf]
      %v1172 = vld [vmem:[%s300 + $0x6c] sm:$0xf]
      %v1173 = vld [vmem:[%s300 + $0x70] sm:$0xf]
      %v1174 = vld [vmem:[%s300 + $0x74] sm:$0xf]
      %v1175 = vld [vmem:[%s300 + $0x78] sm:$0xf]
      %v1176 = vld [vmem:[%s300 + $0x7c] sm:$0xf]
      %v1177 = vld [vmem:[%s300 + $0x80] sm:$0xf]
      %v1178 = vld [vmem:[%s300 + $0x84] sm:$0xf]
      %v1179 = vld [vmem:[%s300 + $0x88] sm:$0xf]
      %v1180 = vld [vmem:[%s300 + $0x8c] sm:$0xf]
      %v1181 = vld [vmem:[%s300 + $0x90] sm:$0xf]
      %v1182 = vld [vmem:[%s300 + $0x94] sm:$0xf]
      %v1183 = vld [vmem:[%s300 + $0x98] sm:$0x1]
      %v1184 = vld [vmem:[%s304 + $0x4] sm:$0xc]
      %v1222 = vunpack.c.l.b16 %v1147
      %v1223 = vunpack.c.l.b16 %v1148
      %v1224 = vunpack.c.l.b16 %v1149
      %v1225 = vunpack.c.l.b16 %v1150
      %v1226 = vunpack.c.l.b16 %v1151
      %v1227 = vunpack.c.l.b16 %v1152
      %v1228 = vunpack.c.l.b16 %v1153
      %v1229 = vunpack.c.l.b16 %v1154
      %v1230 = vunpack.c.l.b16 %v1155
      %v1231 = vunpack.c.l.b16 %v1156
      %v1232 = vunpack.c.l.b16 %v1157
      %v1233 = vunpack.c.l.b16 %v1158
      %v1234 = vunpack.c.l.b16 %v1159
      %v1235 = vunpack.c.l.b16 %v1160
      %v1236 = vunpack.c.l.b16 %v1161
      %v1237 = vunpack.c.l.b16 %v1162
      %v1238 = vunpack.c.l.b16 %v1163
      %v1239 = vunpack.c.l.b16 %v1164
      %v1240 = vunpack.c.l.b16 %v1165
      %v1241 = vunpack.c.l.b16 %v1166
      %v1242 = vunpack.c.l.b16 %v1167
      %v1243 = vunpack.c.l.b16 %v1168
      %v1244 = vunpack.c.l.b16 %v1169
      %v1245 = vunpack.c.l.b16 %v1170
      %v1246 = vunpack.c.l.b16 %v1171
      %v1247 = vunpack.c.l.b16 %v1172
      %v1248 = vunpack.c.l.b16 %v1173
      %v1249 = vunpack.c.l.b16 %v1174
      %v1250 = vunpack.c.l.b16 %v1175
      %v1251 = vunpack.c.l.b16 %v1176
      %v1252 = vunpack.c.l.b16 %v1177
      %v1253 = vunpack.c.l.b16 %v1178
      %v1254 = vunpack.c.l.b16 %v1179
      %v1255 = vunpack.c.l.b16 %v1180
      %v1256 = vunpack.c.l.b16 %v1181
      %v1257 = vunpack.c.l.b16 %v1182
      %v1258 = vunpack.c.l.b16 %v1183
      %v1259 = vpack.c.b16 %v1223, %v1222
      %v1260 = vpack.c.b16 %v1225, %v1224
      %v1261 = vpack.c.b16 %v1227, %v1226
      %v1262 = vpack.c.b16 %v1229, %v1228
      %v1263 = vpack.c.b16 %v1231, %v1230
      %v1264 = vpack.c.b16 %v1233, %v1232
      %v1265 = vpack.c.b16 %v1235, %v1234
      %v1266 = vpack.c.b16 %v1237, %v1236
      %v1267 = vpack.c.b16 %v1239, %v1238
      %v1268 = vpack.c.b16 %v1241, %v1240
      %v1269 = vpack.c.b16 %v1243, %v1242
      %v1270 = vpack.c.b16 %v1245, %v1244
      %v1271 = vpack.c.b16 %v1247, %v1246
      %v1272 = vpack.c.b16 %v1249, %v1248
      %v1273 = vpack.c.b16 %v1251, %v1250
      %v1274 = vpack.c.b16 %v1253, %v1252
      %v1275 = vpack.c.b16 %v1255, %v1254
      %v1276 = vpack.c.b16 %v1257, %v1256
      %v1277 = vpack.c.b16 %v1258, %v1258
      %v1278 = vrot.slane %v1259, 1
      %v1279 = vrot.slane %v1260, 1
      %v1280 = vsel %vm917, %v1278, %v1279
      %v1281 = vrot.slane %v1261, 1
      %v1282 = vsel %vm917, %v1279, %v1281
      %v1283 = vrot.slane %v1262, 1
      %v1284 = vsel %vm917, %v1281, %v1283
      %v1285 = vrot.slane %v1263, 1
      %v1286 = vsel %vm917, %v1283, %v1285
      %v1287 = vrot.slane %v1264, 1
      %v1288 = vsel %vm917, %v1285, %v1287
      %v1289 = vrot.slane %v1265, 1
      %v1290 = vsel %vm917, %v1287, %v1289
      %v1291 = vrot.slane %v1266, 1
      %v1292 = vsel %vm917, %v1289, %v1291
      %v1293 = vrot.slane %v1267, 1
      %v1294 = vsel %vm917, %v1291, %v1293
      %v1295 = vrot.slane %v1268, 1
      %v1296 = vsel %vm917, %v1293, %v1295
      %v1297 = vrot.slane %v1269, 1
      %v1298 = vsel %vm917, %v1295, %v1297
      %v1299 = vrot.slane %v1270, 1
      %v1300 = vsel %vm917, %v1297, %v1299
      %v1301 = vrot.slane %v1271, 1
      %v1302 = vsel %vm917, %v1299, %v1301
      %v1303 = vrot.slane %v1272, 1
      %v1304 = vsel %vm917, %v1301, %v1303
      %v1305 = vrot.slane %v1273, 1
      %v1306 = vsel %vm917, %v1303, %v1305
      %v1307 = vrot.slane %v1274, 1
      %v1308 = vsel %vm917, %v1305, %v1307
      %v1309 = vrot.slane %v1275, 1
      %v1310 = vsel %vm917, %v1307, %v1309
      %v1311 = vrot.slane %v1276, 1
      %v1312 = vsel %vm917, %v1309, %v1311
      %v1313 = vrot.slane %v1277, 1
      %v1314 = vsel %vm917, %v1311, %v1313
      %v1316 = vunpack.c.l.b16 %v1184
      %v1317 = vpack.c.b16 %v1316, %v1316
      %v1318 = vrot.slane %v1317, 2
      %v1320 = vsel %vm616, %v1280, 0
      %v1323 = vsel %vm616, %v1282, 0
      %v1326 = vsel %vm616, %v1284, 0
      %v1329 = vsel %vm616, %v1286, 0
      %v1332 = vsel %vm616, %v1288, 0
      %v1335 = vsel %vm616, %v1290, 0
      %v1338 = vsel %vm616, %v1292, 0
      %v1341 = vsel %vm616, %v1294, 0
      %v1344 = vsel %vm616, %v1296, 0
      %v1347 = vsel %vm616, %v1298, 0
      %v1350 = vsel %vm616, %v1300, 0
      %v1353 = vsel %vm616, %v1302, 0
      %v1356 = vsel %vm616, %v1304, 0
      %v1359 = vsel %vm616, %v1306, 0
      %v1362 = vsel %vm616, %v1308, 0
      %v1365 = vsel %vm616, %v1310, 0
      %v1368 = vsel %vm616, %v1312, 0
      %v1371 = vsel %vm616, %v1314, 0
      %v1374 = vsel %vm671, %v1318, 0
      %1376 = vmatpush.bf16.msra.mxu0 0
      %1377 = vmatpush.bf16.msra.mxu0 0
      %1378 = vmatpush.bf16.msra.mxu0 0
      %1379 = vmatpush.bf16.msra.mxu0 0
      %1380 = vmatpush.bf16.msra.mxu0 0
      %1381 = vmatpush.bf16.msra.mxu0 0
      %1382 = vmatpush.bf16.msra.mxu0 0
      %1383 = vmatpush.bf16.msra.mxu0 %v1374
      %1384 = vmatmul.bf16.gmra.mxu0 %v1320
      %v1385 = vpop.f32.mrf.mxu0
      %v1386 = vadd.f32 0.0, %v1385
      %v1387 = vpop.f32.mrf.mxu0
      %v1388 = vadd.f32 0.0, %v1387
      %1389 = vmatmul.bf16.gmra.mxu0 %v1323
      %v1390 = vpop.f32.mrf.mxu0
      %v1391 = vadd.f32 0.0, %v1390
      %v1392 = vpop.f32.mrf.mxu0
      %v1393 = vadd.f32 0.0, %v1392
      %1394 = vmatmul.bf16.gmra.mxu0 %v1326
      %v1395 = vpop.f32.mrf.mxu0
      %v1396 = vadd.f32 0.0, %v1395
      %v1397 = vpop.f32.mrf.mxu0
      %v1398 = vadd.f32 0.0, %v1397
      %1399 = vmatmul.bf16.gmra.mxu0 %v1329
      %v1400 = vpop.f32.mrf.mxu0
      %v1401 = vadd.f32 0.0, %v1400
      %v1402 = vpop.f32.mrf.mxu0
      %v1403 = vadd.f32 0.0, %v1402
      %1404 = vmatmul.bf16.gmra.mxu0 %v1332
      %v1405 = vpop.f32.mrf.mxu0
      %v1406 = vadd.f32 0.0, %v1405
      %v1407 = vpop.f32.mrf.mxu0
      %v1408 = vadd.f32 0.0, %v1407
      %1409 = vmatmul.bf16.gmra.mxu0 %v1335
      %v1410 = vpop.f32.mrf.mxu0
      %v1411 = vadd.f32 0.0, %v1410
      %v1412 = vpop.f32.mrf.mxu0
      %v1413 = vadd.f32 0.0, %v1412
      %1414 = vmatmul.bf16.gmra.mxu0 %v1338
      %v1415 = vpop.f32.mrf.mxu0
      %v1416 = vadd.f32 0.0, %v1415
      %v1417 = vpop.f32.mrf.mxu0
      %v1418 = vadd.f32 0.0, %v1417
      %1419 = vmatmul.bf16.gmra.mxu0 %v1341
      %v1420 = vpop.f32.mrf.mxu0
      %v1421 = vadd.f32 0.0, %v1420
      %v1422 = vpop.f32.mrf.mxu0
      %v1423 = vadd.f32 0.0, %v1422
      %1424 = vmatmul.bf16.gmra.mxu0 %v1344
      %v1425 = vpop.f32.mrf.mxu0
      %v1426 = vadd.f32 0.0, %v1425
      %v1427 = vpop.f32.mrf.mxu0
      %v1428 = vadd.f32 0.0, %v1427
      %1429 = vmatmul.bf16.gmra.mxu0 %v1347
      %v1430 = vpop.f32.mrf.mxu0
      %v1431 = vadd.f32 0.0, %v1430
      %v1432 = vpop.f32.mrf.mxu0
      %v1433 = vadd.f32 0.0, %v1432
      %1434 = vmatmul.bf16.gmra.mxu0 %v1350
      %v1435 = vpop.f32.mrf.mxu0
      %v1436 = vadd.f32 0.0, %v1435
      %v1437 = vpop.f32.mrf.mxu0
      %v1438 = vadd.f32 0.0, %v1437
      %1439 = vmatmul.bf16.gmra.mxu0 %v1353
      %v1440 = vpop.f32.mrf.mxu0
      %v1441 = vadd.f32 0.0, %v1440
      %v1442 = vpop.f32.mrf.mxu0
      %v1443 = vadd.f32 0.0, %v1442
      %1444 = vmatmul.bf16.gmra.mxu0 %v1356
      %v1445 = vpop.f32.mrf.mxu0
      %v1446 = vadd.f32 0.0, %v1445
      %v1447 = vpop.f32.mrf.mxu0
      %v1448 = vadd.f32 0.0, %v1447
      %1449 = vmatmul.bf16.gmra.mxu0 %v1359
      %v1450 = vpop.f32.mrf.mxu0
      %v1451 = vadd.f32 0.0, %v1450
      %v1452 = vpop.f32.mrf.mxu0
      %v1453 = vadd.f32 0.0, %v1452
      %1454 = vmatmul.bf16.gmra.mxu0 %v1362
      %v1455 = vpop.f32.mrf.mxu0
      %v1456 = vadd.f32 0.0, %v1455
      %v1457 = vpop.f32.mrf.mxu0
      %v1458 = vadd.f32 0.0, %v1457
      %1459 = vmatmul.bf16.gmra.mxu0 %v1365
      %v1460 = vpop.f32.mrf.mxu0
      %v1461 = vadd.f32 0.0, %v1460
      %v1462 = vpop.f32.mrf.mxu0
      %v1463 = vadd.f32 0.0, %v1462
      %1464 = vmatmul.bf16.gmra.mxu0 %v1368
      %v1465 = vpop.f32.mrf.mxu0
      %v1466 = vadd.f32 0.0, %v1465
      %v1467 = vpop.f32.mrf.mxu0
      %v1468 = vadd.f32 0.0, %v1467
      %1469 = vmatmul.bf16.gmra.mxu0 %v1371
      %v1470 = vpop.f32.mrf.mxu0
      %v1471 = vadd.f32 0.0, %v1470
      %v1472 = vpop.f32.mrf.mxu0
      %v1473 = vadd.f32 0.0, %v1472
      %1474 = vdwg.mxu0
      %v1475 = vadd.f32 %v1111, %v1386
      %v1476 = vadd.f32 %v1112, %v1388
      %v1477 = vadd.f32 %v1113, %v1391
      %v1478 = vadd.f32 %v1114, %v1393
      %v1479 = vadd.f32 %v1115, %v1396
      %v1480 = vadd.f32 %v1116, %v1398
      %v1481 = vadd.f32 %v1117, %v1401
      %v1482 = vadd.f32 %v1118, %v1403
      %v1483 = vadd.f32 %v1119, %v1406
      %v1484 = vadd.f32 %v1120, %v1408
      %v1485 = vadd.f32 %v1121, %v1411
      %v1486 = vadd.f32 %v1122, %v1413
      %v1487 = vadd.f32 %v1123, %v1416
      %v1488 = vadd.f32 %v1124, %v1418
      %v1489 = vadd.f32 %v1125, %v1421
      %v1490 = vadd.f32 %v1126, %v1423
      %v1491 = vadd.f32 %v1127, %v1426
      %v1492 = vadd.f32 %v1128, %v1428
      %v1493 = vadd.f32 %v1129, %v1431
      %v1494 = vadd.f32 %v1130, %v1433
      %v1495 = vadd.f32 %v1131, %v1436
      %v1496 = vadd.f32 %v1132, %v1438
      %v1497 = vadd.f32 %v1133, %v1441
      %v1498 = vadd.f32 %v1134, %v1443
      %v1499 = vadd.f32 %v1135, %v1446
      %v1500 = vadd.f32 %v1136, %v1448
      %v1501 = vadd.f32 %v1137, %v1451
      %v1502 = vadd.f32 %v1138, %v1453
      %v1503 = vadd.f32 %v1139, %v1456
      %v1504 = vadd.f32 %v1140, %v1458
      %v1505 = vadd.f32 %v1141, %v1461
      %v1506 = vadd.f32 %v1142, %v1463
      %v1507 = vadd.f32 %v1143, %v1466
      %v1508 = vadd.f32 %v1144, %v1468
      %v1509 = vadd.f32 %v1145, %v1471
      %v1510 = vadd.f32 %v1146, %v1473
      %v1511 = vld [vmem:[%s300 + $0x98] sm:$0x3]
      %v1512 = vld [vmem:[%s304 + $0x8] sm:$0x3]
      %v1514 = vunpack.c.l.b16 %v1511
      %v1515 = vpack.c.b16 %v1514, %v1514
      %vm1516 = vsmask.f32 6400
      %v1518 = vshrl.u32 %v1259, 16
      %v1520 = vrot.slane %v1518, 1
      %v1521 = vshll.u32 %v1259, 16
      %v1523 = vrot.slane %v1521, 2
      %v1524 = vor.u32 %v1520, %v1523
      %v1526 = vshrl.u32 %v1260, 16
      %v1528 = vrot.slane %v1526, 1
      %v1529 = vshll.u32 %v1260, 16
      %v1531 = vrot.slane %v1529, 2
      %v1532 = vor.u32 %v1528, %v1531
      %v1533 = vsel %vm1516, %v1524, %v1532
      %v1535 = vshrl.u32 %v1261, 16
      %v1537 = vrot.slane %v1535, 1
      %v1538 = vshll.u32 %v1261, 16
      %v1540 = vrot.slane %v1538, 2
      %v1541 = vor.u32 %v1537, %v1540
      %v1542 = vsel %vm1516, %v1532, %v1541
      %v1544 = vshrl.u32 %v1262, 16
      %v1546 = vrot.slane %v1544, 1
      %v1547 = vshll.u32 %v1262, 16
      %v1549 = vrot.slane %v1547, 2
      %v1550 = vor.u32 %v1546, %v1549
      %v1551 = vsel %vm1516, %v1541, %v1550
      %v1553 = vshrl.u32 %v1263, 16
      %v1555 = vrot.slane %v1553, 1
      %v1556 = vshll.u32 %v1263, 16
      %v1558 = vrot.slane %v1556, 2
      %v1559 = vor.u32 %v1555, %v1558
      %v1560 = vsel %vm1516, %v1550, %v1559
      %v1562 = vshrl.u32 %v1264, 16
      %v1564 = vrot.slane %v1562, 1
      %v1565 = vshll.u32 %v1264, 16
      %v1567 = vrot.slane %v1565, 2
      %v1568 = vor.u32 %v1564, %v1567
      %v1569 = vsel %vm1516, %v1559, %v1568
      %v1571 = vshrl.u32 %v1265, 16
      %v1573 = vrot.slane %v1571, 1
      %v1574 = vshll.u32 %v1265, 16
      %v1576 = vrot.slane %v1574, 2
      %v1577 = vor.u32 %v1573, %v1576
      %v1578 = vsel %vm1516, %v1568, %v1577
      %v1580 = vshrl.u32 %v1266, 16
      %v1582 = vrot.slane %v1580, 1
      %v1583 = vshll.u32 %v1266, 16
      %v1585 = vrot.slane %v1583, 2
      %v1586 = vor.u32 %v1582, %v1585
      %v1587 = vsel %vm1516, %v1577, %v1586
      %v1589 = vshrl.u32 %v1267, 16
      %v1591 = vrot.slane %v1589, 1
      %v1592 = vshll.u32 %v1267, 16
      %v1594 = vrot.slane %v1592, 2
      %v1595 = vor.u32 %v1591, %v1594
      %v1596 = vsel %vm1516, %v1586, %v1595
      %v1598 = vshrl.u32 %v1268, 16
      %v1600 = vrot.slane %v1598, 1
      %v1601 = vshll.u32 %v1268, 16
      %v1603 = vrot.slane %v1601, 2
      %v1604 = vor.u32 %v1600, %v1603
      %v1605 = vsel %vm1516, %v1595, %v1604
      %v1607 = vshrl.u32 %v1269, 16
      %v1609 = vrot.slane %v1607, 1
      %v1610 = vshll.u32 %v1269, 16
      %v1612 = vrot.slane %v1610, 2
      %v1613 = vor.u32 %v1609, %v1612
      %v1614 = vsel %vm1516, %v1604, %v1613
      %v1616 = vshrl.u32 %v1270, 16
      %v1618 = vrot.slane %v1616, 1
      %v1619 = vshll.u32 %v1270, 16
      %v1621 = vrot.slane %v1619, 2
      %v1622 = vor.u32 %v1618, %v1621
      %v1623 = vsel %vm1516, %v1613, %v1622
      %v1625 = vshrl.u32 %v1271, 16
      %v1627 = vrot.slane %v1625, 1
      %v1628 = vshll.u32 %v1271, 16
      %v1630 = vrot.slane %v1628, 2
      %v1631 = vor.u32 %v1627, %v1630
      %v1632 = vsel %vm1516, %v1622, %v1631
      %v1634 = vshrl.u32 %v1272, 16
      %v1636 = vrot.slane %v1634, 1
      %v1637 = vshll.u32 %v1272, 16
      %v1639 = vrot.slane %v1637, 2
      %v1640 = vor.u32 %v1636, %v1639
      %v1641 = vsel %vm1516, %v1631, %v1640
      %v1643 = vshrl.u32 %v1273, 16
      %v1645 = vrot.slane %v1643, 1
      %v1646 = vshll.u32 %v1273, 16
      %v1648 = vrot.slane %v1646, 2
      %v1649 = vor.u32 %v1645, %v1648
      %v1650 = vsel %vm1516, %v1640, %v1649
      %v1652 = vshrl.u32 %v1274, 16
      %v1654 = vrot.slane %v1652, 1
      %v1655 = vshll.u32 %v1274, 16
      %v1657 = vrot.slane %v1655, 2
      %v1658 = vor.u32 %v1654, %v1657
      %v1659 = vsel %vm1516, %v1649, %v1658
      %v1661 = vshrl.u32 %v1275, 16
      %v1663 = vrot.slane %v1661, 1
      %v1664 = vshll.u32 %v1275, 16
      %v1666 = vrot.slane %v1664, 2
      %v1667 = vor.u32 %v1663, %v1666
      %v1668 = vsel %vm1516, %v1658, %v1667
      %v1670 = vshrl.u32 %v1276, 16
      %v1672 = vrot.slane %v1670, 1
      %v1673 = vshll.u32 %v1276, 16
      %v1675 = vrot.slane %v1673, 2
      %v1676 = vor.u32 %v1672, %v1675
      %v1677 = vsel %vm1516, %v1667, %v1676
      %v1679 = vshrl.u32 %v1515, 16
      %v1681 = vrot.slane %v1679, 1
      %v1682 = vshll.u32 %v1515, 16
      %v1684 = vrot.slane %v1682, 2
      %v1685 = vor.u32 %v1681, %v1684
      %v1686 = vsel %vm1516, %v1676, %v1685
      %v1688 = vsel %vm616, %v1533, 0
      %v1691 = vsel %vm616, %v1542, 0
      %v1694 = vsel %vm616, %v1551, 0
      %v1697 = vsel %vm616, %v1560, 0
      %v1700 = vsel %vm616, %v1569, 0
      %v1703 = vsel %vm616, %v1578, 0
      %v1706 = vsel %vm616, %v1587, 0
      %v1709 = vsel %vm616, %v1596, 0
      %v1712 = vsel %vm616, %v1605, 0
      %v1715 = vsel %vm616, %v1614, 0
      %v1718 = vsel %vm616, %v1623, 0
      %v1721 = vsel %vm616, %v1632, 0
      %v1724 = vsel %vm616, %v1641, 0
      %v1727 = vsel %vm616, %v1650, 0
      %v1730 = vsel %vm616, %v1659, 0
      %v1733 = vsel %vm616, %v1668, 0
      %v1736 = vsel %vm616, %v1677, 0
      %v1739 = vsel %vm616, %v1686, 0
      %v1742 = vsel %vm671, %v1512, 0
      %1744 = vmatpush.bf16.msra.mxu0 0
      %1745 = vmatpush.bf16.msra.mxu0 0
      %1746 = vmatpush.bf16.msra.mxu0 0
      %1747 = vmatpush.bf16.msra.mxu0 0
      %1748 = vmatpush.bf16.msra.mxu0 0
      %1749 = vmatpush.bf16.msra.mxu0 0
      %1750 = vmatpush.bf16.msra.mxu0 0
      %1751 = vmatpush.bf16.msra.mxu0 %v1742
      %1752 = vmatmul.bf16.gmra.mxu0 %v1688
      %v1753 = vpop.f32.mrf.mxu0
      %v1754 = vadd.f32 0.0, %v1753
      %v1755 = vpop.f32.mrf.mxu0
      %v1756 = vadd.f32 0.0, %v1755
      %1757 = vmatmul.bf16.gmra.mxu0 %v1691
      %v1758 = vpop.f32.mrf.mxu0
      %v1759 = vadd.f32 0.0, %v1758
      %v1760 = vpop.f32.mrf.mxu0
      %v1761 = vadd.f32 0.0, %v1760
      %1762 = vmatmul.bf16.gmra.mxu0 %v1694
      %v1763 = vpop.f32.mrf.mxu0
      %v1764 = vadd.f32 0.0, %v1763
      %v1765 = vpop.f32.mrf.mxu0
      %v1766 = vadd.f32 0.0, %v1765
      %1767 = vmatmul.bf16.gmra.mxu0 %v1697
      %v1768 = vpop.f32.mrf.mxu0
      %v1769 = vadd.f32 0.0, %v1768
      %v1770 = vpop.f32.mrf.mxu0
      %v1771 = vadd.f32 0.0, %v1770
      %1772 = vmatmul.bf16.gmra.mxu0 %v1700
      %v1773 = vpop.f32.mrf.mxu0
      %v1774 = vadd.f32 0.0, %v1773
      %v1775 = vpop.f32.mrf.mxu0
      %v1776 = vadd.f32 0.0, %v1775
      %1777 = vmatmul.bf16.gmra.mxu0 %v1703
      %v1778 = vpop.f32.mrf.mxu0
      %v1779 = vadd.f32 0.0, %v1778
      %v1780 = vpop.f32.mrf.mxu0
      %v1781 = vadd.f32 0.0, %v1780
      %1782 = vmatmul.bf16.gmra.mxu0 %v1706
      %v1783 = vpop.f32.mrf.mxu0
      %v1784 = vadd.f32 0.0, %v1783
      %v1785 = vpop.f32.mrf.mxu0
      %v1786 = vadd.f32 0.0, %v1785
      %1787 = vmatmul.bf16.gmra.mxu0 %v1709
      %v1788 = vpop.f32.mrf.mxu0
      %v1789 = vadd.f32 0.0, %v1788
      %v1790 = vpop.f32.mrf.mxu0
      %v1791 = vadd.f32 0.0, %v1790
      %1792 = vmatmul.bf16.gmra.mxu0 %v1712
      %v1793 = vpop.f32.mrf.mxu0
      %v1794 = vadd.f32 0.0, %v1793
      %v1795 = vpop.f32.mrf.mxu0
      %v1796 = vadd.f32 0.0, %v1795
      %1797 = vmatmul.bf16.gmra.mxu0 %v1715
      %v1798 = vpop.f32.mrf.mxu0
      %v1799 = vadd.f32 0.0, %v1798
      %v1800 = vpop.f32.mrf.mxu0
      %v1801 = vadd.f32 0.0, %v1800
      %1802 = vmatmul.bf16.gmra.mxu0 %v1718
      %v1803 = vpop.f32.mrf.mxu0
      %v1804 = vadd.f32 0.0, %v1803
      %v1805 = vpop.f32.mrf.mxu0
      %v1806 = vadd.f32 0.0, %v1805
      %1807 = vmatmul.bf16.gmra.mxu0 %v1721
      %v1808 = vpop.f32.mrf.mxu0
      %v1809 = vadd.f32 0.0, %v1808
      %v1810 = vpop.f32.mrf.mxu0
      %v1811 = vadd.f32 0.0, %v1810
      %1812 = vmatmul.bf16.gmra.mxu0 %v1724
      %v1813 = vpop.f32.mrf.mxu0
      %v1814 = vadd.f32 0.0, %v1813
      %v1815 = vpop.f32.mrf.mxu0
      %v1816 = vadd.f32 0.0, %v1815
      %1817 = vmatmul.bf16.gmra.mxu0 %v1727
      %v1818 = vpop.f32.mrf.mxu0
      %v1819 = vadd.f32 0.0, %v1818
      %v1820 = vpop.f32.mrf.mxu0
      %v1821 = vadd.f32 0.0, %v1820
      %1822 = vmatmul.bf16.gmra.mxu0 %v1730
      %v1823 = vpop.f32.mrf.mxu0
      %v1824 = vadd.f32 0.0, %v1823
      %v1825 = vpop.f32.mrf.mxu0
      %v1826 = vadd.f32 0.0, %v1825
      %1827 = vmatmul.bf16.gmra.mxu0 %v1733
      %v1828 = vpop.f32.mrf.mxu0
      %v1829 = vadd.f32 0.0, %v1828
      %v1830 = vpop.f32.mrf.mxu0
      %v1831 = vadd.f32 0.0, %v1830
      %1832 = vmatmul.bf16.gmra.mxu0 %v1736
      %v1833 = vpop.f32.mrf.mxu0
      %v1834 = vadd.f32 0.0, %v1833
      %v1835 = vpop.f32.mrf.mxu0
      %v1836 = vadd.f32 0.0, %v1835
      %1837 = vmatmul.bf16.gmra.mxu0 %v1739
      %v1838 = vpop.f32.mrf.mxu0
      %v1839 = vadd.f32 0.0, %v1838
      %v1840 = vpop.f32.mrf.mxu0
      %v1841 = vadd.f32 0.0, %v1840
      %1842 = vdwg.mxu0
      %v1843 = vadd.f32 %v1475, %v1754
      %v1844 = vadd.f32 %v1476, %v1756
      %v1845 = vadd.f32 %v1477, %v1759
      %v1846 = vadd.f32 %v1478, %v1761
      %v1847 = vadd.f32 %v1479, %v1764
      %v1848 = vadd.f32 %v1480, %v1766
      %v1849 = vadd.f32 %v1481, %v1769
      %v1850 = vadd.f32 %v1482, %v1771
      %v1851 = vadd.f32 %v1483, %v1774
      %v1852 = vadd.f32 %v1484, %v1776
      %v1853 = vadd.f32 %v1485, %v1779
      %v1854 = vadd.f32 %v1486, %v1781
      %v1855 = vadd.f32 %v1487, %v1784
      %v1856 = vadd.f32 %v1488, %v1786
      %v1857 = vadd.f32 %v1489, %v1789
      %v1858 = vadd.f32 %v1490, %v1791
      %v1859 = vadd.f32 %v1491, %v1794
      %v1860 = vadd.f32 %v1492, %v1796
      %v1861 = vadd.f32 %v1493, %v1799
      %v1862 = vadd.f32 %v1494, %v1801
      %v1863 = vadd.f32 %v1495, %v1804
      %v1864 = vadd.f32 %v1496, %v1806
      %v1865 = vadd.f32 %v1497, %v1809
      %v1866 = vadd.f32 %v1498, %v1811
      %v1867 = vadd.f32 %v1499, %v1814
      %v1868 = vadd.f32 %v1500, %v1816
      %v1869 = vadd.f32 %v1501, %v1819
      %v1870 = vadd.f32 %v1502, %v1821
      %v1871 = vadd.f32 %v1503, %v1824
      %v1872 = vadd.f32 %v1504, %v1826
      %v1873 = vadd.f32 %v1505, %v1829
      %v1874 = vadd.f32 %v1506, %v1831
      %v1875 = vadd.f32 %v1507, %v1834
      %v1876 = vadd.f32 %v1508, %v1836
      %v1877 = vadd.f32 %v1509, %v1839
      %v1878 = vadd.f32 %v1510, %v1841
      %v1879 = vld [vmem:[%s300 + $0x8] sm:$0xc]
      %v1880 = vld [vmem:[%s304 + $0x8] sm:$0xc]
      %v1882 = vunpack.c.l.b16 %v1879
      %v1883 = vpack.c.b16 %v1223, %v1882
      %vm1884 = vcmask 1045504
      %v1885 = vrot.slane %v1883, 2
      %v1886 = vrot.slane %v1260, 2
      %v1887 = vsel %vm1884, %v1885, %v1886
      %v1888 = vrot.slane %v1261, 2
      %v1889 = vsel %vm1884, %v1886, %v1888
      %v1890 = vrot.slane %v1262, 2
      %v1891 = vsel %vm1884, %v1888, %v1890
      %v1892 = vrot.slane %v1263, 2
      %v1893 = vsel %vm1884, %v1890, %v1892
      %v1894 = vrot.slane %v1264, 2
      %v1895 = vsel %vm1884, %v1892, %v1894
      %v1896 = vrot.slane %v1265, 2
      %v1897 = vsel %vm1884, %v1894, %v1896
      %v1898 = vrot.slane %v1266, 2
      %v1899 = vsel %vm1884, %v1896, %v1898
      %v1900 = vrot.slane %v1267, 2
      %v1901 = vsel %vm1884, %v1898, %v1900
      %v1902 = vrot.slane %v1268, 2
      %v1903 = vsel %vm1884, %v1900, %v1902
      %v1904 = vrot.slane %v1269, 2
      %v1905 = vsel %vm1884, %v1902, %v1904
      %v1906 = vrot.slane %v1270, 2
      %v1907 = vsel %vm1884, %v1904, %v1906
      %v1908 = vrot.slane %v1271, 2
      %v1909 = vsel %vm1884, %v1906, %v1908
      %v1910 = vrot.slane %v1272, 2
      %v1911 = vsel %vm1884, %v1908, %v1910
      %v1912 = vrot.slane %v1273, 2
      %v1913 = vsel %vm1884, %v1910, %v1912
      %v1914 = vrot.slane %v1274, 2
      %v1915 = vsel %vm1884, %v1912, %v1914
      %v1916 = vrot.slane %v1275, 2
      %v1917 = vsel %vm1884, %v1914, %v1916
      %v1918 = vrot.slane %v1276, 2
      %v1919 = vsel %vm1884, %v1916, %v1918
      %v1920 = vrot.slane %v1515, 2
      %v1921 = vsel %vm1884, %v1918, %v1920
      %v1923 = vunpack.c.l.b16 %v1880
      %v1924 = vpack.c.b16 %v1923, %v1923
      %v1925 = vrot.slane %v1924, 2
      %v1927 = vsel %vm616, %v1887, 0
      %v1930 = vsel %vm616, %v1889, 0
      %v1933 = vsel %vm616, %v1891, 0
      %v1936 = vsel %vm616, %v1893, 0
      %v1939 = vsel %vm616, %v1895, 0
      %v1942 = vsel %vm616, %v1897, 0
      %v1945 = vsel %vm616, %v1899, 0
      %v1948 = vsel %vm616, %v1901, 0
      %v1951 = vsel %vm616, %v1903, 0
      %v1954 = vsel %vm616, %v1905, 0
      %v1957 = vsel %vm616, %v1907, 0
      %v1960 = vsel %vm616, %v1909, 0
      %v1963 = vsel %vm616, %v1911, 0
      %v1966 = vsel %vm616, %v1913, 0
      %v1969 = vsel %vm616, %v1915, 0
      %v1972 = vsel %vm616, %v1917, 0
      %v1975 = vsel %vm616, %v1919, 0
      %v1978 = vsel %vm616, %v1921, 0
      %v1981 = vsel %vm671, %v1925, 0
      %1983 = vmatpush.bf16.msra.mxu0 0
      %1984 = vmatpush.bf16.msra.mxu0 0
      %1985 = vmatpush.bf16.msra.mxu0 0
      %1986 = vmatpush.bf16.msra.mxu0 0
      %1987 = vmatpush.bf16.msra.mxu0 0
      %1988 = vmatpush.bf16.msra.mxu0 0
      %1989 = vmatpush.bf16.msra.mxu0 0
      %1990 = vmatpush.bf16.msra.mxu0 %v1981
      %1991 = vmatmul.bf16.gmra.mxu0 %v1927
      %v1992 = vpop.f32.mrf.mxu0
      %v1993 = vadd.f32 0.0, %v1992
      %v1994 = vpop.f32.mrf.mxu0
      %v1995 = vadd.f32 0.0, %v1994
      %1996 = vmatmul.bf16.gmra.mxu0 %v1930
      %v1997 = vpop.f32.mrf.mxu0
      %v1998 = vadd.f32 0.0, %v1997
      %v1999 = vpop.f32.mrf.mxu0
      %v2000 = vadd.f32 0.0, %v1999
      %2001 = vmatmul.bf16.gmra.mxu0 %v1933
      %v2002 = vpop.f32.mrf.mxu0
      %v2003 = vadd.f32 0.0, %v2002
      %v2004 = vpop.f32.mrf.mxu0
      %v2005 = vadd.f32 0.0, %v2004
      %2006 = vmatmul.bf16.gmra.mxu0 %v1936
      %v2007 = vpop.f32.mrf.mxu0
      %v2008 = vadd.f32 0.0, %v2007
      %v2009 = vpop.f32.mrf.mxu0
      %v2010 = vadd.f32 0.0, %v2009
      %2011 = vmatmul.bf16.gmra.mxu0 %v1939
      %v2012 = vpop.f32.mrf.mxu0
      %v2013 = vadd.f32 0.0, %v2012
      %v2014 = vpop.f32.mrf.mxu0
      %v2015 = vadd.f32 0.0, %v2014
      %2016 = vmatmul.bf16.gmra.mxu0 %v1942
      %v2017 = vpop.f32.mrf.mxu0
      %v2018 = vadd.f32 0.0, %v2017
      %v2019 = vpop.f32.mrf.mxu0
      %v2020 = vadd.f32 0.0, %v2019
      %2021 = vmatmul.bf16.gmra.mxu0 %v1945
      %v2022 = vpop.f32.mrf.mxu0
      %v2023 = vadd.f32 0.0, %v2022
      %v2024 = vpop.f32.mrf.mxu0
      %v2025 = vadd.f32 0.0, %v2024
      %2026 = vmatmul.bf16.gmra.mxu0 %v1948
      %v2027 = vpop.f32.mrf.mxu0
      %v2028 = vadd.f32 0.0, %v2027
      %v2029 = vpop.f32.mrf.mxu0
      %v2030 = vadd.f32 0.0, %v2029
      %2031 = vmatmul.bf16.gmra.mxu0 %v1951
      %v2032 = vpop.f32.mrf.mxu0
      %v2033 = vadd.f32 0.0, %v2032
      %v2034 = vpop.f32.mrf.mxu0
      %v2035 = vadd.f32 0.0, %v2034
      %2036 = vmatmul.bf16.gmra.mxu0 %v1954
      %v2037 = vpop.f32.mrf.mxu0
      %v2038 = vadd.f32 0.0, %v2037
      %v2039 = vpop.f32.mrf.mxu0
      %v2040 = vadd.f32 0.0, %v2039
      %2041 = vmatmul.bf16.gmra.mxu0 %v1957
      %v2042 = vpop.f32.mrf.mxu0
      %v2043 = vadd.f32 0.0, %v2042
      %v2044 = vpop.f32.mrf.mxu0
      %v2045 = vadd.f32 0.0, %v2044
      %2046 = vmatmul.bf16.gmra.mxu0 %v1960
      %v2047 = vpop.f32.mrf.mxu0
      %v2048 = vadd.f32 0.0, %v2047
      %v2049 = vpop.f32.mrf.mxu0
      %v2050 = vadd.f32 0.0, %v2049
      %2051 = vmatmul.bf16.gmra.mxu0 %v1963
      %v2052 = vpop.f32.mrf.mxu0
      %v2053 = vadd.f32 0.0, %v2052
      %v2054 = vpop.f32.mrf.mxu0
      %v2055 = vadd.f32 0.0, %v2054
      %2056 = vmatmul.bf16.gmra.mxu0 %v1966
      %v2057 = vpop.f32.mrf.mxu0
      %v2058 = vadd.f32 0.0, %v2057
      %v2059 = vpop.f32.mrf.mxu0
      %v2060 = vadd.f32 0.0, %v2059
      %2061 = vmatmul.bf16.gmra.mxu0 %v1969
      %v2062 = vpop.f32.mrf.mxu0
      %v2063 = vadd.f32 0.0, %v2062
      %v2064 = vpop.f32.mrf.mxu0
      %v2065 = vadd.f32 0.0, %v2064
      %2066 = vmatmul.bf16.gmra.mxu0 %v1972
      %v2067 = vpop.f32.mrf.mxu0
      %v2068 = vadd.f32 0.0, %v2067
      %v2069 = vpop.f32.mrf.mxu0
      %v2070 = vadd.f32 0.0, %v2069
      %2071 = vmatmul.bf16.gmra.mxu0 %v1975
      %v2072 = vpop.f32.mrf.mxu0
      %v2073 = vadd.f32 0.0, %v2072
      %v2074 = vpop.f32.mrf.mxu0
      %v2075 = vadd.f32 0.0, %v2074
      %2076 = vmatmul.bf16.gmra.mxu0 %v1978
      %v2077 = vpop.f32.mrf.mxu0
      %v2078 = vadd.f32 0.0, %v2077
      %v2079 = vpop.f32.mrf.mxu0
      %v2080 = vadd.f32 0.0, %v2079
      %2081 = vdwg.mxu0
      %v2082 = vadd.f32 %v1843, %v1993
      %v2083 = vadd.f32 %v1844, %v1995
      %v2084 = vadd.f32 %v1845, %v1998
      %v2085 = vadd.f32 %v1846, %v2000
      %v2086 = vadd.f32 %v1847, %v2003
      %v2087 = vadd.f32 %v1848, %v2005
      %v2088 = vadd.f32 %v1849, %v2008
      %v2089 = vadd.f32 %v1850, %v2010
      %v2090 = vadd.f32 %v1851, %v2013
      %v2091 = vadd.f32 %v1852, %v2015
      %v2092 = vadd.f32 %v1853, %v2018
      %v2093 = vadd.f32 %v1854, %v2020
      %v2094 = vadd.f32 %v1855, %v2023
      %v2095 = vadd.f32 %v1856, %v2025
      %v2096 = vadd.f32 %v1857, %v2028
      %v2097 = vadd.f32 %v1858, %v2030
      %v2098 = vadd.f32 %v1859, %v2033
      %v2099 = vadd.f32 %v1860, %v2035
      %v2100 = vadd.f32 %v1861, %v2038
      %v2101 = vadd.f32 %v1862, %v2040
      %v2102 = vadd.f32 %v1863, %v2043
      %v2103 = vadd.f32 %v1864, %v2045
      %v2104 = vadd.f32 %v1865, %v2048
      %v2105 = vadd.f32 %v1866, %v2050
      %v2106 = vadd.f32 %v1867, %v2053
      %v2107 = vadd.f32 %v1868, %v2055
      %v2108 = vadd.f32 %v1869, %v2058
      %v2109 = vadd.f32 %v1870, %v2060
      %v2110 = vadd.f32 %v1871, %v2063
      %v2111 = vadd.f32 %v1872, %v2065
      %v2112 = vadd.f32 %v1873, %v2068
      %v2113 = vadd.f32 %v1874, %v2070
      %v2114 = vadd.f32 %v1875, %v2073
      %v2115 = vadd.f32 %v1876, %v2075
      %v2116 = vadd.f32 %v1877, %v2078
      %v2117 = vadd.f32 %v1878, %v2080
      %v2118 = vld [vmem:[%s300 + $0x10] sm:$0xc]
      %v2119 = vld [vmem:[%s300 + $0x14] sm:$0xf]
      %v2120 = vld [vmem:[%s300 + $0x18] sm:$0xf]
      %v2121 = vld [vmem:[%s300 + $0x1c] sm:$0xf]
      %v2122 = vld [vmem:[%s300 + $0x20] sm:$0xf]
      %v2123 = vld [vmem:[%s300 + $0x24] sm:$0xf]
      %v2124 = vld [vmem:[%s300 + $0x28] sm:$0xf]
      %v2125 = vld [vmem:[%s300 + $0x2c] sm:$0xf]
      %v2126 = vld [vmem:[%s300 + $0x30] sm:$0xf]
      %v2127 = vld [vmem:[%s300 + $0x34] sm:$0xf]
      %v2128 = vld [vmem:[%s300 + $0x38] sm:$0xf]
      %v2129 = vld [vmem:[%s300 + $0x3c] sm:$0xf]
      %v2130 = vld [vmem:[%s300 + $0x40] sm:$0xf]
      %v2131 = vld [vmem:[%s300 + $0x44] sm:$0xf]
      %v2132 = vld [vmem:[%s300 + $0x48] sm:$0xf]
      %v2133 = vld [vmem:[%s300 + $0x4c] sm:$0xf]
      %v2134 = vld [vmem:[%s300 + $0x50] sm:$0xf]
      %v2135 = vld [vmem:[%s300 + $0x54] sm:$0xf]
      %v2136 = vld [vmem:[%s300 + $0x58] sm:$0xf]
      %v2137 = vld [vmem:[%s300 + $0x5c] sm:$0xf]
      %v2138 = vld [vmem:[%s300 + $0x60] sm:$0xf]
      %v2139 = vld [vmem:[%s300 + $0x64] sm:$0xf]
      %v2140 = vld [vmem:[%s300 + $0x68] sm:$0xf]
      %v2141 = vld [vmem:[%s300 + $0x6c] sm:$0xf]
      %v2142 = vld [vmem:[%s300 + $0x70] sm:$0xf]
      %v2143 = vld [vmem:[%s300 + $0x74] sm:$0xf]
      %v2144 = vld [vmem:[%s300 + $0x78] sm:$0xf]
      %v2145 = vld [vmem:[%s300 + $0x7c] sm:$0xf]
      %v2146 = vld [vmem:[%s300 + $0x80] sm:$0xf]
      %v2147 = vld [vmem:[%s300 + $0x84] sm:$0xf]
      %v2148 = vld [vmem:[%s300 + $0x88] sm:$0xf]
      %v2149 = vld [vmem:[%s300 + $0x8c] sm:$0xf]
      %v2150 = vld [vmem:[%s300 + $0x90] sm:$0xf]
      %v2151 = vld [vmem:[%s300 + $0x94] sm:$0xf]
      %v2152 = vld [vmem:[%s300 + $0x98] sm:$0xf]
      %v2153 = vld [vmem:[%s300 + $0x9c] sm:$0xf]
      %v2154 = vld [vmem:[%s300 + $0xa0] sm:$0x3]
      %v2155 = vld [vmem:[%s304 + $0xc] sm:$0x3]
      %v2193 = vunpack.c.l.b16 %v2118
      %v2194 = vunpack.c.l.b16 %v2119
      %v2195 = vunpack.c.l.b16 %v2120
      %v2196 = vunpack.c.l.b16 %v2121
      %v2197 = vunpack.c.l.b16 %v2122
      %v2198 = vunpack.c.l.b16 %v2123
      %v2199 = vunpack.c.l.b16 %v2124
      %v2200 = vunpack.c.l.b16 %v2125
      %v2201 = vunpack.c.l.b16 %v2126
      %v2202 = vunpack.c.l.b16 %v2127
      %v2203 = vunpack.c.l.b16 %v2128
      %v2204 = vunpack.c.l.b16 %v2129
      %v2205 = vunpack.c.l.b16 %v2130
      %v2206 = vunpack.c.l.b16 %v2131
      %v2207 = vunpack.c.l.b16 %v2132
      %v2208 = vunpack.c.l.b16 %v2133
      %v2209 = vunpack.c.l.b16 %v2134
      %v2210 = vunpack.c.l.b16 %v2135
      %v2211 = vunpack.c.l.b16 %v2136
      %v2212 = vunpack.c.l.b16 %v2137
      %v2213 = vunpack.c.l.b16 %v2138
      %v2214 = vunpack.c.l.b16 %v2139
      %v2215 = vunpack.c.l.b16 %v2140
      %v2216 = vunpack.c.l.b16 %v2141
      %v2217 = vunpack.c.l.b16 %v2142
      %v2218 = vunpack.c.l.b16 %v2143
      %v2219 = vunpack.c.l.b16 %v2144
      %v2220 = vunpack.c.l.b16 %v2145
      %v2221 = vunpack.c.l.b16 %v2146
      %v2222 = vunpack.c.l.b16 %v2147
      %v2223 = vunpack.c.l.b16 %v2148
      %v2224 = vunpack.c.l.b16 %v2149
      %v2225 = vunpack.c.l.b16 %v2150
      %v2226 = vunpack.c.l.b16 %v2151
      %v2227 = vunpack.c.l.b16 %v2152
      %v2228 = vunpack.c.l.b16 %v2153
      %v2229 = vunpack.c.l.b16 %v2154
      %v2230 = vpack.c.b16 %v2194, %v2193
      %v2231 = vpack.c.b16 %v2196, %v2195
      %v2232 = vpack.c.b16 %v2198, %v2197
      %v2233 = vpack.c.b16 %v2200, %v2199
      %v2234 = vpack.c.b16 %v2202, %v2201
      %v2235 = vpack.c.b16 %v2204, %v2203
      %v2236 = vpack.c.b16 %v2206, %v2205
      %v2237 = vpack.c.b16 %v2208, %v2207
      %v2238 = vpack.c.b16 %v2210, %v2209
      %v2239 = vpack.c.b16 %v2212, %v2211
      %v2240 = vpack.c.b16 %v2214, %v2213
      %v2241 = vpack.c.b16 %v2216, %v2215
      %v2242 = vpack.c.b16 %v2218, %v2217
      %v2243 = vpack.c.b16 %v2220, %v2219
      %v2244 = vpack.c.b16 %v2222, %v2221
      %v2245 = vpack.c.b16 %v2224, %v2223
      %v2246 = vpack.c.b16 %v2226, %v2225
      %v2247 = vpack.c.b16 %v2228, %v2227
      %v2248 = vpack.c.b16 %v2229, %v2229
      %v2249 = vrot.slane %v2230, 2
      %v2250 = vrot.slane %v2231, 2
      %v2251 = vsel %vm1884, %v2249, %v2250
      %v2252 = vrot.slane %v2232, 2
      %v2253 = vsel %vm1884, %v2250, %v2252
      %v2254 = vrot.slane %v2233, 2
      %v2255 = vsel %vm1884, %v2252, %v2254
      %v2256 = vrot.slane %v2234, 2
      %v2257 = vsel %vm1884, %v2254, %v2256
      %v2258 = vrot.slane %v2235, 2
      %v2259 = vsel %vm1884, %v2256, %v2258
      %v2260 = vrot.slane %v2236, 2
      %v2261 = vsel %vm1884, %v2258, %v2260
      %v2262 = vrot.slane %v2237, 2
      %v2263 = vsel %vm1884, %v2260, %v2262
      %v2264 = vrot.slane %v2238, 2
      %v2265 = vsel %vm1884, %v2262, %v2264
      %v2266 = vrot.slane %v2239, 2
      %v2267 = vsel %vm1884, %v2264, %v2266
      %v2268 = vrot.slane %v2240, 2
      %v2269 = vsel %vm1884, %v2266, %v2268
      %v2270 = vrot.slane %v2241, 2
      %v2271 = vsel %vm1884, %v2268, %v2270
      %v2272 = vrot.slane %v2242, 2
      %v2273 = vsel %vm1884, %v2270, %v2272
      %v2274 = vrot.slane %v2243, 2
      %v2275 = vsel %vm1884, %v2272, %v2274
      %v2276 = vrot.slane %v2244, 2
      %v2277 = vsel %vm1884, %v2274, %v2276
      %v2278 = vrot.slane %v2245, 2
      %v2279 = vsel %vm1884, %v2276, %v2278
      %v2280 = vrot.slane %v2246, 2
      %v2281 = vsel %vm1884, %v2278, %v2280
      %v2282 = vrot.slane %v2247, 2
      %v2283 = vsel %vm1884, %v2280, %v2282
      %v2284 = vrot.slane %v2248, 2
      %v2285 = vsel %vm1884, %v2282, %v2284
      %v2287 = vsel %vm616, %v2251, 0
      %v2290 = vsel %vm616, %v2253, 0
      %v2293 = vsel %vm616, %v2255, 0
      %v2296 = vsel %vm616, %v2257, 0
      %v2299 = vsel %vm616, %v2259, 0
      %v2302 = vsel %vm616, %v2261, 0
      %v2305 = vsel %vm616, %v2263, 0
      %v2308 = vsel %vm616, %v2265, 0
      %v2311 = vsel %vm616, %v2267, 0
      %v2314 = vsel %vm616, %v2269, 0
      %v2317 = vsel %vm616, %v2271, 0
      %v2320 = vsel %vm616, %v2273, 0
      %v2323 = vsel %vm616, %v2275, 0
      %v2326 = vsel %vm616, %v2277, 0
      %v2329 = vsel %vm616, %v2279, 0
      %v2332 = vsel %vm616, %v2281, 0
      %v2335 = vsel %vm616, %v2283, 0
      %v2338 = vsel %vm616, %v2285, 0
      %v2341 = vsel %vm671, %v2155, 0
      %2343 = vmatpush.bf16.msra.mxu0 0
      %2344 = vmatpush.bf16.msra.mxu0 0
      %2345 = vmatpush.bf16.msra.mxu0 0
      %2346 = vmatpush.bf16.msra.mxu0 0
      %2347 = vmatpush.bf16.msra.mxu0 0
      %2348 = vmatpush.bf16.msra.mxu0 0
      %2349 = vmatpush.bf16.msra.mxu0 0
      %2350 = vmatpush.bf16.msra.mxu0 %v2341
      %2351 = vmatmul.bf16.gmra.mxu0 %v2287
      %v2352 = vpop.f32.mrf.mxu0
      %v2353 = vadd.f32 0.0, %v2352
      %v2354 = vpop.f32.mrf.mxu0
      %v2355 = vadd.f32 0.0, %v2354
      %2356 = vmatmul.bf16.gmra.mxu0 %v2290
      %v2357 = vpop.f32.mrf.mxu0
      %v2358 = vadd.f32 0.0, %v2357
      %v2359 = vpop.f32.mrf.mxu0
      %v2360 = vadd.f32 0.0, %v2359
      %2361 = vmatmul.bf16.gmra.mxu0 %v2293
      %v2362 = vpop.f32.mrf.mxu0
      %v2363 = vadd.f32 0.0, %v2362
      %v2364 = vpop.f32.mrf.mxu0
      %v2365 = vadd.f32 0.0, %v2364
      %2366 = vmatmul.bf16.gmra.mxu0 %v2296
      %v2367 = vpop.f32.mrf.mxu0
      %v2368 = vadd.f32 0.0, %v2367
      %v2369 = vpop.f32.mrf.mxu0
      %v2370 = vadd.f32 0.0, %v2369
      %2371 = vmatmul.bf16.gmra.mxu0 %v2299
      %v2372 = vpop.f32.mrf.mxu0
      %v2373 = vadd.f32 0.0, %v2372
      %v2374 = vpop.f32.mrf.mxu0
      %v2375 = vadd.f32 0.0, %v2374
      %2376 = vmatmul.bf16.gmra.mxu0 %v2302
      %v2377 = vpop.f32.mrf.mxu0
      %v2378 = vadd.f32 0.0, %v2377
      %v2379 = vpop.f32.mrf.mxu0
      %v2380 = vadd.f32 0.0, %v2379
      %2381 = vmatmul.bf16.gmra.mxu0 %v2305
      %v2382 = vpop.f32.mrf.mxu0
      %v2383 = vadd.f32 0.0, %v2382
      %v2384 = vpop.f32.mrf.mxu0
      %v2385 = vadd.f32 0.0, %v2384
      %2386 = vmatmul.bf16.gmra.mxu0 %v2308
      %v2387 = vpop.f32.mrf.mxu0
      %v2388 = vadd.f32 0.0, %v2387
      %v2389 = vpop.f32.mrf.mxu0
      %v2390 = vadd.f32 0.0, %v2389
      %2391 = vmatmul.bf16.gmra.mxu0 %v2311
      %v2392 = vpop.f32.mrf.mxu0
      %v2393 = vadd.f32 0.0, %v2392
      %v2394 = vpop.f32.mrf.mxu0
      %v2395 = vadd.f32 0.0, %v2394
      %2396 = vmatmul.bf16.gmra.mxu0 %v2314
      %v2397 = vpop.f32.mrf.mxu0
      %v2398 = vadd.f32 0.0, %v2397
      %v2399 = vpop.f32.mrf.mxu0
      %v2400 = vadd.f32 0.0, %v2399
      %2401 = vmatmul.bf16.gmra.mxu0 %v2317
      %v2402 = vpop.f32.mrf.mxu0
      %v2403 = vadd.f32 0.0, %v2402
      %v2404 = vpop.f32.mrf.mxu0
      %v2405 = vadd.f32 0.0, %v2404
      %2406 = vmatmul.bf16.gmra.mxu0 %v2320
      %v2407 = vpop.f32.mrf.mxu0
      %v2408 = vadd.f32 0.0, %v2407
      %v2409 = vpop.f32.mrf.mxu0
      %v2410 = vadd.f32 0.0, %v2409
      %2411 = vmatmul.bf16.gmra.mxu0 %v2323
      %v2412 = vpop.f32.mrf.mxu0
      %v2413 = vadd.f32 0.0, %v2412
      %v2414 = vpop.f32.mrf.mxu0
      %v2415 = vadd.f32 0.0, %v2414
      %2416 = vmatmul.bf16.gmra.mxu0 %v2326
      %v2417 = vpop.f32.mrf.mxu0
      %v2418 = vadd.f32 0.0, %v2417
      %v2419 = vpop.f32.mrf.mxu0
      %v2420 = vadd.f32 0.0, %v2419
      %2421 = vmatmul.bf16.gmra.mxu0 %v2329
      %v2422 = vpop.f32.mrf.mxu0
      %v2423 = vadd.f32 0.0, %v2422
      %v2424 = vpop.f32.mrf.mxu0
      %v2425 = vadd.f32 0.0, %v2424
      %2426 = vmatmul.bf16.gmra.mxu0 %v2332
      %v2427 = vpop.f32.mrf.mxu0
      %v2428 = vadd.f32 0.0, %v2427
      %v2429 = vpop.f32.mrf.mxu0
      %v2430 = vadd.f32 0.0, %v2429
      %2431 = vmatmul.bf16.gmra.mxu0 %v2335
      %v2432 = vpop.f32.mrf.mxu0
      %v2433 = vadd.f32 0.0, %v2432
      %v2434 = vpop.f32.mrf.mxu0
      %v2435 = vadd.f32 0.0, %v2434
      %2436 = vmatmul.bf16.gmra.mxu0 %v2338
      %v2437 = vpop.f32.mrf.mxu0
      %v2438 = vadd.f32 0.0, %v2437
      %v2439 = vpop.f32.mrf.mxu0
      %v2440 = vadd.f32 0.0, %v2439
      %2441 = vdwg.mxu0
      %v2442 = vadd.f32 %v2082, %v2353
      %v2443 = vadd.f32 %v2083, %v2355
      %v2444 = vadd.f32 %v2084, %v2358
      %v2445 = vadd.f32 %v2085, %v2360
      %v2446 = vadd.f32 %v2086, %v2363
      %v2447 = vadd.f32 %v2087, %v2365
      %v2448 = vadd.f32 %v2088, %v2368
      %v2449 = vadd.f32 %v2089, %v2370
      %v2450 = vadd.f32 %v2090, %v2373
      %v2451 = vadd.f32 %v2091, %v2375
      %v2452 = vadd.f32 %v2092, %v2378
      %v2453 = vadd.f32 %v2093, %v2380
      %v2454 = vadd.f32 %v2094, %v2383
      %v2455 = vadd.f32 %v2095, %v2385
      %v2456 = vadd.f32 %v2096, %v2388
      %v2457 = vadd.f32 %v2097, %v2390
      %v2458 = vadd.f32 %v2098, %v2393
      %v2459 = vadd.f32 %v2099, %v2395
      %v2460 = vadd.f32 %v2100, %v2398
      %v2461 = vadd.f32 %v2101, %v2400
      %v2462 = vadd.f32 %v2102, %v2403
      %v2463 = vadd.f32 %v2103, %v2405
      %v2464 = vadd.f32 %v2104, %v2408
      %v2465 = vadd.f32 %v2105, %v2410
      %v2466 = vadd.f32 %v2106, %v2413
      %v2467 = vadd.f32 %v2107, %v2415
      %v2468 = vadd.f32 %v2108, %v2418
      %v2469 = vadd.f32 %v2109, %v2420
      %v2470 = vadd.f32 %v2110, %v2423
      %v2471 = vadd.f32 %v2111, %v2425
      %v2472 = vadd.f32 %v2112, %v2428
      %v2473 = vadd.f32 %v2113, %v2430
      %v2474 = vadd.f32 %v2114, %v2433
      %v2475 = vadd.f32 %v2115, %v2435
      %v2476 = vadd.f32 %v2116, %v2438
      %v2477 = vadd.f32 %v2117, %v2440
      %v2478 = vld [vmem:[%s300 + $0xa0] sm:$0x7]
      %v2479 = vld [vmem:[%s304 + $0xc] sm:$0xc]
      %v2481 = vunpack.c.l.b16 %v2478
      %v2482 = vpack.c.b16 %v2481, %v2481
      %vm2483 = vsmask.f32 5376
      %v2485 = vshrl.u32 %v2230, 16
      %v2487 = vrot.slane %v2485, 2
      %v2488 = vshll.u32 %v2230, 16
      %v2490 = vrot.slane %v2488, 3
      %v2491 = vor.u32 %v2487, %v2490
      %v2493 = vshrl.u32 %v2231, 16
      %v2495 = vrot.slane %v2493, 2
      %v2496 = vshll.u32 %v2231, 16
      %v2498 = vrot.slane %v2496, 3
      %v2499 = vor.u32 %v2495, %v2498
      %v2500 = vsel %vm2483, %v2491, %v2499
      %v2502 = vshrl.u32 %v2232, 16
      %v2504 = vrot.slane %v2502, 2
      %v2505 = vshll.u32 %v2232, 16
      %v2507 = vrot.slane %v2505, 3
      %v2508 = vor.u32 %v2504, %v2507
      %v2509 = vsel %vm2483, %v2499, %v2508
      %v2511 = vshrl.u32 %v2233, 16
      %v2513 = vrot.slane %v2511, 2
      %v2514 = vshll.u32 %v2233, 16
      %v2516 = vrot.slane %v2514, 3
      %v2517 = vor.u32 %v2513, %v2516
      %v2518 = vsel %vm2483, %v2508, %v2517
      %v2520 = vshrl.u32 %v2234, 16
      %v2522 = vrot.slane %v2520, 2
      %v2523 = vshll.u32 %v2234, 16
      %v2525 = vrot.slane %v2523, 3
      %v2526 = vor.u32 %v2522, %v2525
      %v2527 = vsel %vm2483, %v2517, %v2526
      %v2529 = vshrl.u32 %v2235, 16
      %v2531 = vrot.slane %v2529, 2
      %v2532 = vshll.u32 %v2235, 16
      %v2534 = vrot.slane %v2532, 3
      %v2535 = vor.u32 %v2531, %v2534
      %v2536 = vsel %vm2483, %v2526, %v2535
      %v2538 = vshrl.u32 %v2236, 16
      %v2540 = vrot.slane %v2538, 2
      %v2541 = vshll.u32 %v2236, 16
      %v2543 = vrot.slane %v2541, 3
      %v2544 = vor.u32 %v2540, %v2543
      %v2545 = vsel %vm2483, %v2535, %v2544
      %v2547 = vshrl.u32 %v2237, 16
      %v2549 = vrot.slane %v2547, 2
      %v2550 = vshll.u32 %v2237, 16
      %v2552 = vrot.slane %v2550, 3
      %v2553 = vor.u32 %v2549, %v2552
      %v2554 = vsel %vm2483, %v2544, %v2553
      %v2556 = vshrl.u32 %v2238, 16
      %v2558 = vrot.slane %v2556, 2
      %v2559 = vshll.u32 %v2238, 16
      %v2561 = vrot.slane %v2559, 3
      %v2562 = vor.u32 %v2558, %v2561
      %v2563 = vsel %vm2483, %v2553, %v2562
      %v2565 = vshrl.u32 %v2239, 16
      %v2567 = vrot.slane %v2565, 2
      %v2568 = vshll.u32 %v2239, 16
      %v2570 = vrot.slane %v2568, 3
      %v2571 = vor.u32 %v2567, %v2570
      %v2572 = vsel %vm2483, %v2562, %v2571
      %v2574 = vshrl.u32 %v2240, 16
      %v2576 = vrot.slane %v2574, 2
      %v2577 = vshll.u32 %v2240, 16
      %v2579 = vrot.slane %v2577, 3
      %v2580 = vor.u32 %v2576, %v2579
      %v2581 = vsel %vm2483, %v2571, %v2580
      %v2583 = vshrl.u32 %v2241, 16
      %v2585 = vrot.slane %v2583, 2
      %v2586 = vshll.u32 %v2241, 16
      %v2588 = vrot.slane %v2586, 3
      %v2589 = vor.u32 %v2585, %v2588
      %v2590 = vsel %vm2483, %v2580, %v2589
      %v2592 = vshrl.u32 %v2242, 16
      %v2594 = vrot.slane %v2592, 2
      %v2595 = vshll.u32 %v2242, 16
      %v2597 = vrot.slane %v2595, 3
      %v2598 = vor.u32 %v2594, %v2597
      %v2599 = vsel %vm2483, %v2589, %v2598
      %v2601 = vshrl.u32 %v2243, 16
      %v2603 = vrot.slane %v2601, 2
      %v2604 = vshll.u32 %v2243, 16
      %v2606 = vrot.slane %v2604, 3
      %v2607 = vor.u32 %v2603, %v2606
      %v2608 = vsel %vm2483, %v2598, %v2607
      %v2610 = vshrl.u32 %v2244, 16
      %v2612 = vrot.slane %v2610, 2
      %v2613 = vshll.u32 %v2244, 16
      %v2615 = vrot.slane %v2613, 3
      %v2616 = vor.u32 %v2612, %v2615
      %v2617 = vsel %vm2483, %v2607, %v2616
      %v2619 = vshrl.u32 %v2245, 16
      %v2621 = vrot.slane %v2619, 2
      %v2622 = vshll.u32 %v2245, 16
      %v2624 = vrot.slane %v2622, 3
      %v2625 = vor.u32 %v2621, %v2624
      %v2626 = vsel %vm2483, %v2616, %v2625
      %v2628 = vshrl.u32 %v2246, 16
      %v2630 = vrot.slane %v2628, 2
      %v2631 = vshll.u32 %v2246, 16
      %v2633 = vrot.slane %v2631, 3
      %v2634 = vor.u32 %v2630, %v2633
      %v2635 = vsel %vm2483, %v2625, %v2634
      %v2637 = vshrl.u32 %v2247, 16
      %v2639 = vrot.slane %v2637, 2
      %v2640 = vshll.u32 %v2247, 16
      %v2642 = vrot.slane %v2640, 3
      %v2643 = vor.u32 %v2639, %v2642
      %v2644 = vsel %vm2483, %v2634, %v2643
      %v2646 = vshrl.u32 %v2482, 16
      %v2648 = vrot.slane %v2646, 2
      %v2649 = vshll.u32 %v2482, 16
      %v2651 = vrot.slane %v2649, 3
      %v2652 = vor.u32 %v2648, %v2651
      %v2653 = vsel %vm2483, %v2643, %v2652
      %v2655 = vunpack.c.l.b16 %v2479
      %v2656 = vpack.c.b16 %v2655, %v2655
      %v2657 = vrot.slane %v2656, 2
      %v2659 = vsel %vm616, %v2500, 0
      %v2662 = vsel %vm616, %v2509, 0
      %v2665 = vsel %vm616, %v2518, 0
      %v2668 = vsel %vm616, %v2527, 0
      %v2671 = vsel %vm616, %v2536, 0
      %v2674 = vsel %vm616, %v2545, 0
      %v2677 = vsel %vm616, %v2554, 0
      %v2680 = vsel %vm616, %v2563, 0
      %v2683 = vsel %vm616, %v2572, 0
      %v2686 = vsel %vm616, %v2581, 0
      %v2689 = vsel %vm616, %v2590, 0
      %v2692 = vsel %vm616, %v2599, 0
      %v2695 = vsel %vm616, %v2608, 0
      %v2698 = vsel %vm616, %v2617, 0
      %v2701 = vsel %vm616, %v2626, 0
      %v2704 = vsel %vm616, %v2635, 0
      %v2707 = vsel %vm616, %v2644, 0
      %v2710 = vsel %vm616, %v2653, 0
      %v2713 = vsel %vm671, %v2657, 0
      %2715 = vmatpush.bf16.msra.mxu0 0
      %2716 = vmatpush.bf16.msra.mxu0 0
      %2717 = vmatpush.bf16.msra.mxu0 0
      %2718 = vmatpush.bf16.msra.mxu0 0
      %2719 = vmatpush.bf16.msra.mxu0 0
      %2720 = vmatpush.bf16.msra.mxu0 0
      %2721 = vmatpush.bf16.msra.mxu0 0
      %2722 = vmatpush.bf16.msra.mxu0 %v2713
      %2723 = vmatmul.bf16.gmra.mxu0 %v2659
      %v2724 = vpop.f32.mrf.mxu0
      %v2725 = vadd.f32 0.0, %v2724
      %v2726 = vpop.f32.mrf.mxu0
      %v2727 = vadd.f32 0.0, %v2726
      %2728 = vmatmul.bf16.gmra.mxu0 %v2662
      %v2729 = vpop.f32.mrf.mxu0
      %v2730 = vadd.f32 0.0, %v2729
      %v2731 = vpop.f32.mrf.mxu0
      %v2732 = vadd.f32 0.0, %v2731
      %2733 = vmatmul.bf16.gmra.mxu0 %v2665
      %v2734 = vpop.f32.mrf.mxu0
      %v2735 = vadd.f32 0.0, %v2734
      %v2736 = vpop.f32.mrf.mxu0
      %v2737 = vadd.f32 0.0, %v2736
      %2738 = vmatmul.bf16.gmra.mxu0 %v2668
      %v2739 = vpop.f32.mrf.mxu0
      %v2740 = vadd.f32 0.0, %v2739
      %v2741 = vpop.f32.mrf.mxu0
      %v2742 = vadd.f32 0.0, %v2741
      %2743 = vmatmul.bf16.gmra.mxu0 %v2671
      %v2744 = vpop.f32.mrf.mxu0
      %v2745 = vadd.f32 0.0, %v2744
      %v2746 = vpop.f32.mrf.mxu0
      %v2747 = vadd.f32 0.0, %v2746
      %2748 = vmatmul.bf16.gmra.mxu0 %v2674
      %v2749 = vpop.f32.mrf.mxu0
      %v2750 = vadd.f32 0.0, %v2749
      %v2751 = vpop.f32.mrf.mxu0
      %v2752 = vadd.f32 0.0, %v2751
      %2753 = vmatmul.bf16.gmra.mxu0 %v2677
      %v2754 = vpop.f32.mrf.mxu0
      %v2755 = vadd.f32 0.0, %v2754
      %v2756 = vpop.f32.mrf.mxu0
      %v2757 = vadd.f32 0.0, %v2756
      %2758 = vmatmul.bf16.gmra.mxu0 %v2680
      %v2759 = vpop.f32.mrf.mxu0
      %v2760 = vadd.f32 0.0, %v2759
      %v2761 = vpop.f32.mrf.mxu0
      %v2762 = vadd.f32 0.0, %v2761
      %2763 = vmatmul.bf16.gmra.mxu0 %v2683
      %v2764 = vpop.f32.mrf.mxu0
      %v2765 = vadd.f32 0.0, %v2764
      %v2766 = vpop.f32.mrf.mxu0
      %v2767 = vadd.f32 0.0, %v2766
      %2768 = vmatmul.bf16.gmra.mxu0 %v2686
      %v2769 = vpop.f32.mrf.mxu0
      %v2770 = vadd.f32 0.0, %v2769
      %v2771 = vpop.f32.mrf.mxu0
      %v2772 = vadd.f32 0.0, %v2771
      %2773 = vmatmul.bf16.gmra.mxu0 %v2689
      %v2774 = vpop.f32.mrf.mxu0
      %v2775 = vadd.f32 0.0, %v2774
      %v2776 = vpop.f32.mrf.mxu0
      %v2777 = vadd.f32 0.0, %v2776
      %2778 = vmatmul.bf16.gmra.mxu0 %v2692
      %v2779 = vpop.f32.mrf.mxu0
      %v2780 = vadd.f32 0.0, %v2779
      %v2781 = vpop.f32.mrf.mxu0
      %v2782 = vadd.f32 0.0, %v2781
      %2783 = vmatmul.bf16.gmra.mxu0 %v2695
      %v2784 = vpop.f32.mrf.mxu0
      %v2785 = vadd.f32 0.0, %v2784
      %v2786 = vpop.f32.mrf.mxu0
      %v2787 = vadd.f32 0.0, %v2786
      %2788 = vmatmul.bf16.gmra.mxu0 %v2698
      %v2789 = vpop.f32.mrf.mxu0
      %v2790 = vadd.f32 0.0, %v2789
      %v2791 = vpop.f32.mrf.mxu0
      %v2792 = vadd.f32 0.0, %v2791
      %2793 = vmatmul.bf16.gmra.mxu0 %v2701
      %v2794 = vpop.f32.mrf.mxu0
      %v2795 = vadd.f32 0.0, %v2794
      %v2796 = vpop.f32.mrf.mxu0
      %v2797 = vadd.f32 0.0, %v2796
      %2798 = vmatmul.bf16.gmra.mxu0 %v2704
      %v2799 = vpop.f32.mrf.mxu0
      %v2800 = vadd.f32 0.0, %v2799
      %v2801 = vpop.f32.mrf.mxu0
      %v2802 = vadd.f32 0.0, %v2801
      %2803 = vmatmul.bf16.gmra.mxu0 %v2707
      %v2804 = vpop.f32.mrf.mxu0
      %v2805 = vadd.f32 0.0, %v2804
      %v2806 = vpop.f32.mrf.mxu0
      %v2807 = vadd.f32 0.0, %v2806
      %2808 = vmatmul.bf16.gmra.mxu0 %v2710
      %v2809 = vpop.f32.mrf.mxu0
      %v2810 = vadd.f32 0.0, %v2809
      %v2811 = vpop.f32.mrf.mxu0
      %v2812 = vadd.f32 0.0, %v2811
      %2813 = vdwg.mxu0
      %v2814 = vadd.f32 %v2442, %v2725
      %v2815 = vadd.f32 %v2443, %v2727
      %v2816 = vadd.f32 %v2444, %v2730
      %v2817 = vadd.f32 %v2445, %v2732
      %v2818 = vadd.f32 %v2446, %v2735
      %v2819 = vadd.f32 %v2447, %v2737
      %v2820 = vadd.f32 %v2448, %v2740
      %v2821 = vadd.f32 %v2449, %v2742
      %v2822 = vadd.f32 %v2450, %v2745
      %v2823 = vadd.f32 %v2451, %v2747
      %v2824 = vadd.f32 %v2452, %v2750
      %v2825 = vadd.f32 %v2453, %v2752
      %v2826 = vadd.f32 %v2454, %v2755
      %v2827 = vadd.f32 %v2455, %v2757
      %v2828 = vadd.f32 %v2456, %v2760
      %v2829 = vadd.f32 %v2457, %v2762
      %v2830 = vadd.f32 %v2458, %v2765
      %v2831 = vadd.f32 %v2459, %v2767
      %v2832 = vadd.f32 %v2460, %v2770
      %v2833 = vadd.f32 %v2461, %v2772
      %v2834 = vadd.f32 %v2462, %v2775
      %v2835 = vadd.f32 %v2463, %v2777
      %v2836 = vadd.f32 %v2464, %v2780
      %v2837 = vadd.f32 %v2465, %v2782
      %v2838 = vadd.f32 %v2466, %v2785
      %v2839 = vadd.f32 %v2467, %v2787
      %v2840 = vadd.f32 %v2468, %v2790
      %v2841 = vadd.f32 %v2469, %v2792
      %v2842 = vadd.f32 %v2470, %v2795
      %v2843 = vadd.f32 %v2471, %v2797
      %v2844 = vadd.f32 %v2472, %v2800
      %v2845 = vadd.f32 %v2473, %v2802
      %v2846 = vadd.f32 %v2474, %v2805
      %v2847 = vadd.f32 %v2475, %v2807
      %v2848 = vadd.f32 %v2476, %v2810
      %v2849 = vadd.f32 %v2477, %v2812
      %v2850 = vld [vmem:[%s300 + $0x10] sm:$0x8]
      %v2851 = vld [vmem:[%s304 + $0x10] sm:$0x3]
      %v2853 = vunpack.c.l.b16 %v2850
      %v2854 = vpack.c.b16 %v2194, %v2853
      %vm2855 = vcmask 1044480
      %v2856 = vrot.slane %v2854, 3
      %v2857 = vrot.slane %v2231, 3
      %v2858 = vsel %vm2855, %v2856, %v2857
      %v2859 = vrot.slane %v2232, 3
      %v2860 = vsel %vm2855, %v2857, %v2859
      %v2861 = vrot.slane %v2233, 3
      %v2862 = vsel %vm2855, %v2859, %v2861
      %v2863 = vrot.slane %v2234, 3
      %v2864 = vsel %vm2855, %v2861, %v2863
      %v2865 = vrot.slane %v2235, 3
      %v2866 = vsel %vm2855, %v2863, %v2865
      %v2867 = vrot.slane %v2236, 3
      %v2868 = vsel %vm2855, %v2865, %v2867
      %v2869 = vrot.slane %v2237, 3
      %v2870 = vsel %vm2855, %v2867, %v2869
      %v2871 = vrot.slane %v2238, 3
      %v2872 = vsel %vm2855, %v2869, %v2871
      %v2873 = vrot.slane %v2239, 3
      %v2874 = vsel %vm2855, %v2871, %v2873
      %v2875 = vrot.slane %v2240, 3
      %v2876 = vsel %vm2855, %v2873, %v2875
      %v2877 = vrot.slane %v2241, 3
      %v2878 = vsel %vm2855, %v2875, %v2877
      %v2879 = vrot.slane %v2242, 3
      %v2880 = vsel %vm2855, %v2877, %v2879
      %v2881 = vrot.slane %v2243, 3
      %v2882 = vsel %vm2855, %v2879, %v2881
      %v2883 = vrot.slane %v2244, 3
      %v2884 = vsel %vm2855, %v2881, %v2883
      %v2885 = vrot.slane %v2245, 3
      %v2886 = vsel %vm2855, %v2883, %v2885
      %v2887 = vrot.slane %v2246, 3
      %v2888 = vsel %vm2855, %v2885, %v2887
      %v2889 = vrot.slane %v2247, 3
      %v2890 = vsel %vm2855, %v2887, %v2889
      %v2891 = vrot.slane %v2482, 3
      %v2892 = vsel %vm2855, %v2889, %v2891
      %v2894 = vsel %vm616, %v2858, 0
      %v2897 = vsel %vm616, %v2860, 0
      %v2900 = vsel %vm616, %v2862, 0
      %v2903 = vsel %vm616, %v2864, 0
      %v2906 = vsel %vm616, %v2866, 0
      %v2909 = vsel %vm616, %v2868, 0
      %v2912 = vsel %vm616, %v2870, 0
      %v2915 = vsel %vm616, %v2872, 0
      %v2918 = vsel %vm616, %v2874, 0
      %v2921 = vsel %vm616, %v2876, 0
      %v2924 = vsel %vm616, %v2878, 0
      %v2927 = vsel %vm616, %v2880, 0
      %v2930 = vsel %vm616, %v2882, 0
      %v2933 = vsel %vm616, %v2884, 0
      %v2936 = vsel %vm616, %v2886, 0
      %v2939 = vsel %vm616, %v2888, 0
      %v2942 = vsel %vm616, %v2890, 0
      %v2945 = vsel %vm616, %v2892, 0
      %v2948 = vsel %vm671, %v2851, 0
      %2950 = vmatpush.bf16.msra.mxu0 0
      %2951 = vmatpush.bf16.msra.mxu0 0
      %2952 = vmatpush.bf16.msra.mxu0 0
      %2953 = vmatpush.bf16.msra.mxu0 0
      %2954 = vmatpush.bf16.msra.mxu0 0
      %2955 = vmatpush.bf16.msra.mxu0 0
      %2956 = vmatpush.bf16.msra.mxu0 0
      %2957 = vmatpush.bf16.msra.mxu0 %v2948
      %2958 = vmatmul.bf16.gmra.mxu0 %v2894
      %v2959 = vpop.f32.mrf.mxu0
      %v2960 = vadd.f32 0.0, %v2959
      %v2961 = vpop.f32.mrf.mxu0
      %v2962 = vadd.f32 0.0, %v2961
      %2963 = vmatmul.bf16.gmra.mxu0 %v2897
      %v2964 = vpop.f32.mrf.mxu0
      %v2965 = vadd.f32 0.0, %v2964
      %v2966 = vpop.f32.mrf.mxu0
      %v2967 = vadd.f32 0.0, %v2966
      %2968 = vmatmul.bf16.gmra.mxu0 %v2900
      %v2969 = vpop.f32.mrf.mxu0
      %v2970 = vadd.f32 0.0, %v2969
      %v2971 = vpop.f32.mrf.mxu0
      %v2972 = vadd.f32 0.0, %v2971
      %2973 = vmatmul.bf16.gmra.mxu0 %v2903
      %v2974 = vpop.f32.mrf.mxu0
      %v2975 = vadd.f32 0.0, %v2974
      %v2976 = vpop.f32.mrf.mxu0
      %v2977 = vadd.f32 0.0, %v2976
      %2978 = vmatmul.bf16.gmra.mxu0 %v2906
      %v2979 = vpop.f32.mrf.mxu0
      %v2980 = vadd.f32 0.0, %v2979
      %v2981 = vpop.f32.mrf.mxu0
      %v2982 = vadd.f32 0.0, %v2981
      %2983 = vmatmul.bf16.gmra.mxu0 %v2909
      %v2984 = vpop.f32.mrf.mxu0
      %v2985 = vadd.f32 0.0, %v2984
      %v2986 = vpop.f32.mrf.mxu0
      %v2987 = vadd.f32 0.0, %v2986
      %2988 = vmatmul.bf16.gmra.mxu0 %v2912
      %v2989 = vpop.f32.mrf.mxu0
      %v2990 = vadd.f32 0.0, %v2989
      %v2991 = vpop.f32.mrf.mxu0
      %v2992 = vadd.f32 0.0, %v2991
      %2993 = vmatmul.bf16.gmra.mxu0 %v2915
      %v2994 = vpop.f32.mrf.mxu0
      %v2995 = vadd.f32 0.0, %v2994
      %v2996 = vpop.f32.mrf.mxu0
      %v2997 = vadd.f32 0.0, %v2996
      %2998 = vmatmul.bf16.gmra.mxu0 %v2918
      %v2999 = vpop.f32.mrf.mxu0
      %v3000 = vadd.f32 0.0, %v2999
      %v3001 = vpop.f32.mrf.mxu0
      %v3002 = vadd.f32 0.0, %v3001
      %3003 = vmatmul.bf16.gmra.mxu0 %v2921
      %v3004 = vpop.f32.mrf.mxu0
      %v3005 = vadd.f32 0.0, %v3004
      %v3006 = vpop.f32.mrf.mxu0
      %v3007 = vadd.f32 0.0, %v3006
      %3008 = vmatmul.bf16.gmra.mxu0 %v2924
      %v3009 = vpop.f32.mrf.mxu0
      %v3010 = vadd.f32 0.0, %v3009
      %v3011 = vpop.f32.mrf.mxu0
      %v3012 = vadd.f32 0.0, %v3011
      %3013 = vmatmul.bf16.gmra.mxu0 %v2927
      %v3014 = vpop.f32.mrf.mxu0
      %v3015 = vadd.f32 0.0, %v3014
      %v3016 = vpop.f32.mrf.mxu0
      %v3017 = vadd.f32 0.0, %v3016
      %3018 = vmatmul.bf16.gmra.mxu0 %v2930
      %v3019 = vpop.f32.mrf.mxu0
      %v3020 = vadd.f32 0.0, %v3019
      %v3021 = vpop.f32.mrf.mxu0
      %v3022 = vadd.f32 0.0, %v3021
      %3023 = vmatmul.bf16.gmra.mxu0 %v2933
      %v3024 = vpop.f32.mrf.mxu0
      %v3025 = vadd.f32 0.0, %v3024
      %v3026 = vpop.f32.mrf.mxu0
      %v3027 = vadd.f32 0.0, %v3026
      %3028 = vmatmul.bf16.gmra.mxu0 %v2936
      %v3029 = vpop.f32.mrf.mxu0
      %v3030 = vadd.f32 0.0, %v3029
      %v3031 = vpop.f32.mrf.mxu0
      %v3032 = vadd.f32 0.0, %v3031
      %3033 = vmatmul.bf16.gmra.mxu0 %v2939
      %v3034 = vpop.f32.mrf.mxu0
      %v3035 = vadd.f32 0.0, %v3034
      %v3036 = vpop.f32.mrf.mxu0
      %v3037 = vadd.f32 0.0, %v3036
      %3038 = vmatmul.bf16.gmra.mxu0 %v2942
      %v3039 = vpop.f32.mrf.mxu0
      %v3040 = vadd.f32 0.0, %v3039
      %v3041 = vpop.f32.mrf.mxu0
      %v3042 = vadd.f32 0.0, %v3041
      %3043 = vmatmul.bf16.gmra.mxu0 %v2945
      %v3044 = vpop.f32.mrf.mxu0
      %v3045 = vadd.f32 0.0, %v3044
      %v3046 = vpop.f32.mrf.mxu0
      %v3047 = vadd.f32 0.0, %v3046
      %3048 = vdwg.mxu0
      %v3049 = vadd.f32 %v2814, %v2960
      %v3050 = vadd.f32 %v2815, %v2962
      %v3051 = vadd.f32 %v2816, %v2965
      %v3052 = vadd.f32 %v2817, %v2967
      %v3053 = vadd.f32 %v2818, %v2970
      %v3054 = vadd.f32 %v2819, %v2972
      %v3055 = vadd.f32 %v2820, %v2975
      %v3056 = vadd.f32 %v2821, %v2977
      %v3057 = vadd.f32 %v2822, %v2980
      %v3058 = vadd.f32 %v2823, %v2982
      %v3059 = vadd.f32 %v2824, %v2985
      %v3060 = vadd.f32 %v2825, %v2987
      %v3061 = vadd.f32 %v2826, %v2990
      %v3062 = vadd.f32 %v2827, %v2992
      %v3063 = vadd.f32 %v2828, %v2995
      %v3064 = vadd.f32 %v2829, %v2997
      %v3065 = vadd.f32 %v2830, %v3000
      %v3066 = vadd.f32 %v2831, %v3002
      %v3067 = vadd.f32 %v2832, %v3005
      %v3068 = vadd.f32 %v2833, %v3007
      %v3069 = vadd.f32 %v2834, %v3010
      %v3070 = vadd.f32 %v2835, %v3012
      %v3071 = vadd.f32 %v2836, %v3015
      %v3072 = vadd.f32 %v2837, %v3017
      %v3073 = vadd.f32 %v2838, %v3020
      %v3074 = vadd.f32 %v2839, %v3022
      %v3075 = vadd.f32 %v2840, %v3025
      %v3076 = vadd.f32 %v2841, %v3027
      %v3077 = vadd.f32 %v2842, %v3030
      %v3078 = vadd.f32 %v2843, %v3032
      %v3079 = vadd.f32 %v2844, %v3035
      %v3080 = vadd.f32 %v2845, %v3037
      %v3081 = vadd.f32 %v2846, %v3040
      %v3082 = vadd.f32 %v2847, %v3042
      %v3083 = vadd.f32 %v2848, %v3045
      %v3084 = vadd.f32 %v2849, %v3047
      %v3085 = vld [vmem:[%s307] sm:$0x1]
      %v3087 = vperm.slane %v3085, 0
      %v3089 = vmul.f32 %v3049, %v3087
      %v3090 = vmul.f32 %v3050, %v3087
      %v3091 = vmul.f32 %v3051, %v3087
      %v3092 = vmul.f32 %v3052, %v3087
      %v3093 = vmul.f32 %v3053, %v3087
      %v3094 = vmul.f32 %v3054, %v3087
      %v3095 = vmul.f32 %v3055, %v3087
      %v3096 = vmul.f32 %v3056, %v3087
      %v3097 = vmul.f32 %v3057, %v3087
      %v3098 = vmul.f32 %v3058, %v3087
      %v3099 = vmul.f32 %v3059, %v3087
      %v3100 = vmul.f32 %v3060, %v3087
      %v3101 = vmul.f32 %v3061, %v3087
      %v3102 = vmul.f32 %v3062, %v3087
      %v3103 = vmul.f32 %v3063, %v3087
      %v3104 = vmul.f32 %v3064, %v3087
      %v3105 = vmul.f32 %v3065, %v3087
      %v3106 = vmul.f32 %v3066, %v3087
      %v3107 = vmul.f32 %v3067, %v3087
      %v3108 = vmul.f32 %v3068, %v3087
      %v3109 = vmul.f32 %v3069, %v3087
      %v3110 = vmul.f32 %v3070, %v3087
      %v3111 = vmul.f32 %v3071, %v3087
      %v3112 = vmul.f32 %v3072, %v3087
      %v3113 = vmul.f32 %v3073, %v3087
      %v3114 = vmul.f32 %v3074, %v3087
      %v3115 = vmul.f32 %v3075, %v3087
      %v3116 = vmul.f32 %v3076, %v3087
      %v3117 = vmul.f32 %v3077, %v3087
      %v3118 = vmul.f32 %v3078, %v3087
      %v3119 = vmul.f32 %v3079, %v3087
      %v3120 = vmul.f32 %v3080, %v3087
      %v3121 = vmul.f32 %v3081, %v3087
      %v3122 = vmul.f32 %v3082, %v3087
      %v3123 = vmul.f32 %v3083, %v3087
      %v3124 = vmul.f32 %v3084, %v3087
      %v3125 = vld [vmem:[%s310] sm:$0x1]
      %v3127 = vperm.slane %v3125, 0
      %v3129 = vadd.f32 %v3089, %v3127
      %v3130 = vadd.f32 %v3090, %v3127
      %v3131 = vadd.f32 %v3091, %v3127
      %v3132 = vadd.f32 %v3092, %v3127
      %v3133 = vadd.f32 %v3093, %v3127
      %v3134 = vadd.f32 %v3094, %v3127
      %v3135 = vadd.f32 %v3095, %v3127
      %v3136 = vadd.f32 %v3096, %v3127
      %v3137 = vadd.f32 %v3097, %v3127
      %v3138 = vadd.f32 %v3098, %v3127
      %v3139 = vadd.f32 %v3099, %v3127
      %v3140 = vadd.f32 %v3100, %v3127
      %v3141 = vadd.f32 %v3101, %v3127
      %v3142 = vadd.f32 %v3102, %v3127
      %v3143 = vadd.f32 %v3103, %v3127
      %v3144 = vadd.f32 %v3104, %v3127
      %v3145 = vadd.f32 %v3105, %v3127
      %v3146 = vadd.f32 %v3106, %v3127
      %v3147 = vadd.f32 %v3107, %v3127
      %v3148 = vadd.f32 %v3108, %v3127
      %v3149 = vadd.f32 %v3109, %v3127
      %v3150 = vadd.f32 %v3110, %v3127
      %v3151 = vadd.f32 %v3111, %v3127
      %v3152 = vadd.f32 %v3112, %v3127
      %v3153 = vadd.f32 %v3113, %v3127
      %v3154 = vadd.f32 %v3114, %v3127
      %v3155 = vadd.f32 %v3115, %v3127
      %v3156 = vadd.f32 %v3116, %v3127
      %v3157 = vadd.f32 %v3117, %v3127
      %v3158 = vadd.f32 %v3118, %v3127
      %v3159 = vadd.f32 %v3119, %v3127
      %v3160 = vadd.f32 %v3120, %v3127
      %v3161 = vadd.f32 %v3121, %v3127
      %v3162 = vadd.f32 %v3122, %v3127
      %v3163 = vadd.f32 %v3123, %v3127
      %v3164 = vadd.f32 %v3124, %v3127
      %v3165 = vmax.f32 %v3129, 0.0
      %v3166 = vmax.f32 %v3130, 0.0
      %v3167 = vmax.f32 %v3131, 0.0
      %v3168 = vmax.f32 %v3132, 0.0
      %v3169 = vmax.f32 %v3133, 0.0
      %v3170 = vmax.f32 %v3134, 0.0
      %v3171 = vmax.f32 %v3135, 0.0
      %v3172 = vmax.f32 %v3136, 0.0
      %v3173 = vmax.f32 %v3137, 0.0
      %v3174 = vmax.f32 %v3138, 0.0
      %v3175 = vmax.f32 %v3139, 0.0
      %v3176 = vmax.f32 %v3140, 0.0
      %v3177 = vmax.f32 %v3141, 0.0
      %v3178 = vmax.f32 %v3142, 0.0
      %v3179 = vmax.f32 %v3143, 0.0
      %v3180 = vmax.f32 %v3144, 0.0
      %v3181 = vmax.f32 %v3145, 0.0
      %v3182 = vmax.f32 %v3146, 0.0
      %v3183 = vmax.f32 %v3147, 0.0
      %v3184 = vmax.f32 %v3148, 0.0
      %v3185 = vmax.f32 %v3149, 0.0
      %v3186 = vmax.f32 %v3150, 0.0
      %v3187 = vmax.f32 %v3151, 0.0
      %v3188 = vmax.f32 %v3152, 0.0
      %v3189 = vmax.f32 %v3153, 0.0
      %v3190 = vmax.f32 %v3154, 0.0
      %v3191 = vmax.f32 %v3155, 0.0
      %v3192 = vmax.f32 %v3156, 0.0
      %v3193 = vmax.f32 %v3157, 0.0
      %v3194 = vmax.f32 %v3158, 0.0
      %v3195 = vmax.f32 %v3159, 0.0
      %v3196 = vmax.f32 %v3160, 0.0
      %v3197 = vmax.f32 %v3161, 0.0
      %v3198 = vmax.f32 %v3162, 0.0
      %v3199 = vmax.f32 %v3163, 0.0
      %v3200 = vmax.f32 %v3164, 0.0
      %v3201 = vld [vmem:[%s315] sm:$0xff]
      %v3202 = vld [vmem:[%s315 + $0x8] sm:$0xff]
      %v3203 = vld [vmem:[%s315 + $0x10] sm:$0xff]
      %v3204 = vld [vmem:[%s315 + $0x18] sm:$0xff]
      %v3205 = vld [vmem:[%s315 + $0x20] sm:$0xff]
      %v3206 = vld [vmem:[%s315 + $0x28] sm:$0xff]
      %v3207 = vld [vmem:[%s315 + $0x30] sm:$0xff]
      %v3208 = vld [vmem:[%s315 + $0x38] sm:$0xff]
      %v3209 = vld [vmem:[%s315 + $0x40] sm:$0xff]
      %v3210 = vld [vmem:[%s315 + $0x48] sm:$0xff]
      %v3211 = vld [vmem:[%s315 + $0x50] sm:$0xff]
      %v3212 = vld [vmem:[%s315 + $0x58] sm:$0xff]
      %v3213 = vld [vmem:[%s315 + $0x60] sm:$0xff]
      %v3214 = vld [vmem:[%s315 + $0x68] sm:$0xff]
      %v3215 = vld [vmem:[%s315 + $0x70] sm:$0xff]
      %v3216 = vld [vmem:[%s315 + $0x78] sm:$0xff]
      %v3217 = vld [vmem:[%s315 + $0x80] sm:$0xff]
      %v3218 = vld [vmem:[%s315 + $0x88] sm:$0xff]
      %v3219 = vld [vmem:[%s315 + $0x90] sm:$0xff]
      %v3220 = vld [vmem:[%s315 + $0x98] sm:$0xff]
      %v3221 = vld [vmem:[%s315 + $0xa0] sm:$0xff]
      %v3222 = vld [vmem:[%s315 + $0xa8] sm:$0xff]
      %v3223 = vld [vmem:[%s315 + $0xb0] sm:$0xff]
      %v3224 = vld [vmem:[%s315 + $0xb8] sm:$0xff]
      %v3225 = vld [vmem:[%s315 + $0xc0] sm:$0xff]
      %v3226 = vld [vmem:[%s315 + $0xc8] sm:$0xff]
      %v3227 = vld [vmem:[%s315 + $0xd0] sm:$0xff]
      %v3228 = vld [vmem:[%s315 + $0xd8] sm:$0xff]
      %v3229 = vld [vmem:[%s315 + $0xe0] sm:$0xff]
      %v3230 = vld [vmem:[%s315 + $0xe8] sm:$0xff]
      %v3231 = vld [vmem:[%s315 + $0xf0] sm:$0xff]
      %v3232 = vld [vmem:[%s315 + $0xf8] sm:$0xff]
      %v3233 = vld [vmem:[%s315 + $0x100] sm:$0xff]
      %v3234 = vld [vmem:[%s315 + $0x108] sm:$0xff]
      %v3235 = vld [vmem:[%s315 + $0x110] sm:$0xff]
      %v3236 = vld [vmem:[%s315 + $0x118] sm:$0xff]
      %3238 = vset.pattern.permute.xlu0 0
      %3239 = vperm.xlu0 %3238, %v3201
      %v3240 = vpop.permute.xlu0 %3239
      %3243 = vset.pattern.permute.xlu0 0
      %3244 = vperm.xlu0 %3243, %v3202
      %v3245 = vpop.permute.xlu0 %3244
      %3248 = vset.pattern.permute.xlu0 0
      %3249 = vperm.xlu0 %3248, %v3203
      %v3250 = vpop.permute.xlu0 %3249
      %3253 = vset.pattern.permute.xlu0 0
      %3254 = vperm.xlu0 %3253, %v3204
      %v3255 = vpop.permute.xlu0 %3254
      %3258 = vset.pattern.permute.xlu0 0
      %3259 = vperm.xlu0 %3258, %v3205
      %v3260 = vpop.permute.xlu0 %3259
      %3263 = vset.pattern.permute.xlu0 0
      %3264 = vperm.xlu0 %3263, %v3206
      %v3265 = vpop.permute.xlu0 %3264
      %3268 = vset.pattern.permute.xlu0 0
      %3269 = vperm.xlu0 %3268, %v3207
      %v3270 = vpop.permute.xlu0 %3269
      %3273 = vset.pattern.permute.xlu0 0
      %3274 = vperm.xlu0 %3273, %v3208
      %v3275 = vpop.permute.xlu0 %3274
      %3278 = vset.pattern.permute.xlu0 0
      %3279 = vperm.xlu0 %3278, %v3209
      %v3280 = vpop.permute.xlu0 %3279
      %3283 = vset.pattern.permute.xlu0 0
      %3284 = vperm.xlu0 %3283, %v3210
      %v3285 = vpop.permute.xlu0 %3284
      %3288 = vset.pattern.permute.xlu0 0
      %3289 = vperm.xlu0 %3288, %v3211
      %v3290 = vpop.permute.xlu0 %3289
      %3293 = vset.pattern.permute.xlu0 0
      %3294 = vperm.xlu0 %3293, %v3212
      %v3295 = vpop.permute.xlu0 %3294
      %3298 = vset.pattern.permute.xlu0 0
      %3299 = vperm.xlu0 %3298, %v3213
      %v3300 = vpop.permute.xlu0 %3299
      %3303 = vset.pattern.permute.xlu0 0
      %3304 = vperm.xlu0 %3303, %v3214
      %v3305 = vpop.permute.xlu0 %3304
      %3308 = vset.pattern.permute.xlu0 0
      %3309 = vperm.xlu0 %3308, %v3215
      %v3310 = vpop.permute.xlu0 %3309
      %3313 = vset.pattern.permute.xlu0 0
      %3314 = vperm.xlu0 %3313, %v3216
      %v3315 = vpop.permute.xlu0 %3314
      %3318 = vset.pattern.permute.xlu0 0
      %3319 = vperm.xlu0 %3318, %v3217
      %v3320 = vpop.permute.xlu0 %3319
      %3323 = vset.pattern.permute.xlu0 0
      %3324 = vperm.xlu0 %3323, %v3218
      %v3325 = vpop.permute.xlu0 %3324
      %3328 = vset.pattern.permute.xlu0 0
      %3329 = vperm.xlu0 %3328, %v3219
      %v3330 = vpop.permute.xlu0 %3329
      %3333 = vset.pattern.permute.xlu0 0
      %3334 = vperm.xlu0 %3333, %v3220
      %v3335 = vpop.permute.xlu0 %3334
      %3338 = vset.pattern.permute.xlu0 0
      %3339 = vperm.xlu0 %3338, %v3221
      %v3340 = vpop.permute.xlu0 %3339
      %3343 = vset.pattern.permute.xlu0 0
      %3344 = vperm.xlu0 %3343, %v3222
      %v3345 = vpop.permute.xlu0 %3344
      %3348 = vset.pattern.permute.xlu0 0
      %3349 = vperm.xlu0 %3348, %v3223
      %v3350 = vpop.permute.xlu0 %3349
      %3353 = vset.pattern.permute.xlu0 0
      %3354 = vperm.xlu0 %3353, %v3224
      %v3355 = vpop.permute.xlu0 %3354
      %3358 = vset.pattern.permute.xlu0 0
      %3359 = vperm.xlu0 %3358, %v3225
      %v3360 = vpop.permute.xlu0 %3359
      %3363 = vset.pattern.permute.xlu0 0
      %3364 = vperm.xlu0 %3363, %v3226
      %v3365 = vpop.permute.xlu0 %3364
      %3368 = vset.pattern.permute.xlu0 0
      %3369 = vperm.xlu0 %3368, %v3227
      %v3370 = vpop.permute.xlu0 %3369
      %3373 = vset.pattern.permute.xlu0 0
      %3374 = vperm.xlu0 %3373, %v3228
      %v3375 = vpop.permute.xlu0 %3374
      %3378 = vset.pattern.permute.xlu0 0
      %3379 = vperm.xlu0 %3378, %v3229
      %v3380 = vpop.permute.xlu0 %3379
      %3383 = vset.pattern.permute.xlu0 0
      %3384 = vperm.xlu0 %3383, %v3230
      %v3385 = vpop.permute.xlu0 %3384
      %3388 = vset.pattern.permute.xlu0 0
      %3389 = vperm.xlu0 %3388, %v3231
      %v3390 = vpop.permute.xlu0 %3389
      %3393 = vset.pattern.permute.xlu0 0
      %3394 = vperm.xlu0 %3393, %v3232
      %v3395 = vpop.permute.xlu0 %3394
      %3398 = vset.pattern.permute.xlu0 0
      %3399 = vperm.xlu0 %3398, %v3233
      %v3400 = vpop.permute.xlu0 %3399
      %3403 = vset.pattern.permute.xlu0 0
      %3404 = vperm.xlu0 %3403, %v3234
      %v3405 = vpop.permute.xlu0 %3404
      %3408 = vset.pattern.permute.xlu0 0
      %3409 = vperm.xlu0 %3408, %v3235
      %v3410 = vpop.permute.xlu0 %3409
      %3413 = vset.pattern.permute.xlu0 0
      %3414 = vperm.xlu0 %3413, %v3236
      %v3415 = vpop.permute.xlu0 %3414
      %v3417 = vmul.f32 %v3165, %v3240
      %v3418 = vmul.f32 %v3166, %v3245
      %v3419 = vmul.f32 %v3167, %v3250
      %v3420 = vmul.f32 %v3168, %v3255
      %v3421 = vmul.f32 %v3169, %v3260
      %v3422 = vmul.f32 %v3170, %v3265
      %v3423 = vmul.f32 %v3171, %v3270
      %v3424 = vmul.f32 %v3172, %v3275
      %v3425 = vmul.f32 %v3173, %v3280
      %v3426 = vmul.f32 %v3174, %v3285
      %v3427 = vmul.f32 %v3175, %v3290
      %v3428 = vmul.f32 %v3176, %v3295
      %v3429 = vmul.f32 %v3177, %v3300
      %v3430 = vmul.f32 %v3178, %v3305
      %v3431 = vmul.f32 %v3179, %v3310
      %v3432 = vmul.f32 %v3180, %v3315
      %v3433 = vmul.f32 %v3181, %v3320
      %v3434 = vmul.f32 %v3182, %v3325
      %v3435 = vmul.f32 %v3183, %v3330
      %v3436 = vmul.f32 %v3184, %v3335
      %v3437 = vmul.f32 %v3185, %v3340
      %v3438 = vmul.f32 %v3186, %v3345
      %v3439 = vmul.f32 %v3187, %v3350
      %v3440 = vmul.f32 %v3188, %v3355
      %v3441 = vmul.f32 %v3189, %v3360
      %v3442 = vmul.f32 %v3190, %v3365
      %v3443 = vmul.f32 %v3191, %v3370
      %v3444 = vmul.f32 %v3192, %v3375
      %v3445 = vmul.f32 %v3193, %v3380
      %v3446 = vmul.f32 %v3194, %v3385
      %v3447 = vmul.f32 %v3195, %v3390
      %v3448 = vmul.f32 %v3196, %v3395
      %v3449 = vmul.f32 %v3197, %v3400
      %v3450 = vmul.f32 %v3198, %v3405
      %v3451 = vmul.f32 %v3199, %v3410
      %v3452 = vmul.f32 %v3200, %v3415
      %v3453 = vpack.c.bf16 %v3417, %v3417
      %v3454 = vpack.c.bf16 %v3418, %v3418
      %v3455 = vpack.c.bf16 %v3419, %v3419
      %v3456 = vpack.c.bf16 %v3420, %v3420
      %v3457 = vpack.c.bf16 %v3421, %v3421
      %v3458 = vpack.c.bf16 %v3422, %v3422
      %v3459 = vpack.c.bf16 %v3423, %v3423
      %v3460 = vpack.c.bf16 %v3424, %v3424
      %v3461 = vpack.c.bf16 %v3425, %v3425
      %v3462 = vpack.c.bf16 %v3426, %v3426
      %v3463 = vpack.c.bf16 %v3427, %v3427
      %v3464 = vpack.c.bf16 %v3428, %v3428
      %v3465 = vpack.c.bf16 %v3429, %v3429
      %v3466 = vpack.c.bf16 %v3430, %v3430
      %v3467 = vpack.c.bf16 %v3431, %v3431
      %v3468 = vpack.c.bf16 %v3432, %v3432
      %v3469 = vpack.c.bf16 %v3433, %v3433
      %v3470 = vpack.c.bf16 %v3434, %v3434
      %v3471 = vpack.c.bf16 %v3435, %v3435
      %v3472 = vpack.c.bf16 %v3436, %v3436
      %v3473 = vpack.c.bf16 %v3437, %v3437
      %v3474 = vpack.c.bf16 %v3438, %v3438
      %v3475 = vpack.c.bf16 %v3439, %v3439
      %v3476 = vpack.c.bf16 %v3440, %v3440
      %v3477 = vpack.c.bf16 %v3441, %v3441
      %v3478 = vpack.c.bf16 %v3442, %v3442
      %v3479 = vpack.c.bf16 %v3443, %v3443
      %v3480 = vpack.c.bf16 %v3444, %v3444
      %v3481 = vpack.c.bf16 %v3445, %v3445
      %v3482 = vpack.c.bf16 %v3446, %v3446
      %v3483 = vpack.c.bf16 %v3447, %v3447
      %v3484 = vpack.c.bf16 %v3448, %v3448
      %v3485 = vpack.c.bf16 %v3449, %v3449
      %v3486 = vpack.c.bf16 %v3450, %v3450
      %v3487 = vpack.c.bf16 %v3451, %v3451
      %v3488 = vpack.c.bf16 %v3452, %v3452
      %3489 = vst [vmem:[%s328] sm:$0xf] %v3453
      %3490 = vst [vmem:[%s328 + $0x4] sm:$0xf] %v3454
      %3491 = vst [vmem:[%s328 + $0x8] sm:$0xf] %v3455
      %3492 = vst [vmem:[%s328 + $0xc] sm:$0xf] %v3456
      %3493 = vst [vmem:[%s328 + $0x10] sm:$0xf] %v3457
      %3494 = vst [vmem:[%s328 + $0x14] sm:$0xf] %v3458
      %3495 = vst [vmem:[%s328 + $0x18] sm:$0xf] %v3459
      %3496 = vst [vmem:[%s328 + $0x1c] sm:$0xf] %v3460
      %3497 = vst [vmem:[%s328 + $0x20] sm:$0xf] %v3461
      %3498 = vst [vmem:[%s328 + $0x24] sm:$0xf] %v3462
      %3499 = vst [vmem:[%s328 + $0x28] sm:$0xf] %v3463
      %3500 = vst [vmem:[%s328 + $0x2c] sm:$0xf] %v3464
      %3501 = vst [vmem:[%s328 + $0x30] sm:$0xf] %v3465
      %3502 = vst [vmem:[%s328 + $0x34] sm:$0xf] %v3466
      %3503 = vst [vmem:[%s328 + $0x38] sm:$0xf] %v3467
      %3504 = vst [vmem:[%s328 + $0x3c] sm:$0xf] %v3468
      %3505 = vst [vmem:[%s328 + $0x40] sm:$0xf] %v3469
      %3506 = vst [vmem:[%s328 + $0x44] sm:$0xf] %v3470
      %3507 = vst [vmem:[%s328 + $0x48] sm:$0xf] %v3471
      %3508 = vst [vmem:[%s328 + $0x4c] sm:$0xf] %v3472
      %3509 = vst [vmem:[%s328 + $0x50] sm:$0xf] %v3473
      %3510 = vst [vmem:[%s328 + $0x54] sm:$0xf] %v3474
      %3511 = vst [vmem:[%s328 + $0x58] sm:$0xf] %v3475
      %3512 = vst [vmem:[%s328 + $0x5c] sm:$0xf] %v3476
      %3513 = vst [vmem:[%s328 + $0x60] sm:$0xf] %v3477
      %3514 = vst [vmem:[%s328 + $0x64] sm:$0xf] %v3478
      %3515 = vst [vmem:[%s328 + $0x68] sm:$0xf] %v3479
      %3516 = vst [vmem:[%s328 + $0x6c] sm:$0xf] %v3480
      %3517 = vst [vmem:[%s328 + $0x70] sm:$0xf] %v3481
      %3518 = vst [vmem:[%s328 + $0x74] sm:$0xf] %v3482
      %3519 = vst [vmem:[%s328 + $0x78] sm:$0xf] %v3483
      %3520 = vst [vmem:[%s328 + $0x7c] sm:$0xf] %v3484
      %3521 = vst [vmem:[%s328 + $0x80] sm:$0xf] %v3485
      %3522 = vst [vmem:[%s328 + $0x84] sm:$0xf] %v3486
      %3523 = vst [vmem:[%s328 + $0x88] sm:$0xf] %v3487
      %3524 = vst [vmem:[%s328 + $0x8c] sm:$0xf] %v3488
      %s3525 = smul.u32 36, %s23
      %p3526 = scmp.lt.s32.totalorder %s21, 1
      %s3527 = scalar_select %p3526, %s21, 1
      %p3528 = scmp.lt.s32.totalorder %s3525, 35
      %s3529 = scalar_select %p3528, %s3525, 35
      %p3530 = scmp.lt.s32.totalorder %s22, 0
      %s3531 = scalar_select %p3530, %s22, 0
      %s3532 = sadd.s32 %s3531, %s3529
      %s3533 = smul.addr %s3527, 36
      %s3534 = sadd.s32 %s3532, %s3533
      %s3535 = smul.addr %s3534, 4
      %s3536 = scalar_lea.vmem %s5, %s3535
      // Predicated region
      $region41: #{resblock_forward.2} parent=39 // pred_check
        %p3537 = pneg %p187
      $region42: #{resblock_forward.2} parent=39 // pred_check_branch
        %3539 = sbr.rel (%p3537) target = $region44
      $region43: #{resblock_forward.2} parent=39 // pred_region
        %s3540 = smul.u32 36, %s23
      $region44: #{resblock_forward.2} parent=39 // pred_fallthru
        _
    $region40: #{resblock_forward.2} parent=5 // pred_fallthru
      _
    %p3541 = scmp.le.s32.totalorder 2, %s11
    // Predicated region
    $region45: #{resblock_forward.2} parent=5 // pred_check
      %p3542 = pneg %p3541
    $region46: #{resblock_forward.2} parent=5 // pred_check_branch
      %3544 = sbr.rel (%p3542) target = $region48
    $region47: #{resblock_forward.2} parent=5 // pred_region
      %s3545 = ssub.s32 %s11, 2
      // Predicated region
      $region49: #{resblock_forward.2} parent=47 // pred_check
        %p3546 = pneg %p193
      $region50: #{resblock_forward.2} parent=47 // pred_check_branch
        %3548 = sbr.rel (%p3546) target = $region52
      $region51: #{resblock_forward.2} parent=47 // pred_region
        %s3549 = smul.u32 36, %s26
        %p3550 = scmp.lt.s32.totalorder %s24, 1
        %s3551 = scalar_select %p3550, %s24, 1
        %p3552 = scmp.lt.s32.totalorder %s3549, 35
        %s3553 = scalar_select %p3552, %s3549, 35
        %p3554 = scmp.lt.s32.totalorder %s25, 0
        %s3555 = scalar_select %p3554, %s25, 0
        %s3556 = sadd.s32 %s3555, %s3553
        %s3557 = smul.addr %s3551, 36
        %s3558 = sadd.s32 %s3556, %s3557
        %s3559 = smul.addr %s3558, 4
        %s3560 = scalar_lea.vmem %s5, %s3559
      $region52: #{resblock_forward.2} parent=47 // pred_fallthru
        _
    $region48: #{resblock_forward.2} parent=5 // pred_fallthru
      _
  $region6: #{resblock_forward.2} parent=0 // loop_footer
    %s15 = sadd.s32 1, %s11
  $region7: #{resblock_forward.2} parent=0 // loop_footer_branch
    %10 = sbr.rel target = $region3
  $region8: #{resblock_forward.2} parent=0 // loop_exit
    _

// kernel: resblock_forward.3
$region0: #{resblock_forward.3}
  #allocation0 [shape = 'u32[]', space=smem, size = 0x4, offset = 0x4, fixed_abs, tag = 'smem constant byte address 0x4 - core index']
  #allocation1 [shape = 'u32[72,128]{1,0:T(1,128)}', space=vmem, size = 0x9000, scoped, tag = 'internal scratch']
  %s0 = inlined_call_operand.vmem [shape: bf16[2,328,128], index: 0, kind: input, shape index: {}]
  %s1 = inlined_call_operand.vmem [shape: bf16[1152,128], index: 1, kind: input, shape index: {}]
  %s2 = inlined_call_operand.vmem [shape: f32[1,128], index: 2, kind: input, shape index: {}]
  %s3 = inlined_call_operand.vmem [shape: f32[1,128], index: 3, kind: input, shape index: {}]
  %s4 = inlined_call_operand.vmem [shape: bf16[2,288,4], index: 4, kind: input, shape index: {}]
  %s5 = inlined_call_operand.vmem [shape: bf16[4,128], index: 5, kind: input, shape index: {}]
  %s6 = inlined_call_operand.vmem [shape: f32[1,128], index: 6, kind: input, shape index: {}]
  %s7 = inlined_call_operand.vmem [shape: f32[1,128], index: 7, kind: input, shape index: {}]
  %s8 = inlined_call_operand.vmem [shape: bf16[2,288,128], index: 8, kind: output, shape index: {}]
  %s9 = sld [smem:[#allocation0]]
  $region65: #{resblock_forward.3} parent=0
    _
  %s11 = ssub.s32 1, %s9
  %s12 = scalar_select 0, %s11, %s9
  loop: start=0, step=1, limit=4
  $region2: #{resblock_forward.3} parent=0 // loop_pre_header
    _
  $region3: #{resblock_forward.3} parent=0 // loop_header
    %s14 = sphi 0, %s18
    %p15 = scmp.ge.s32.totalorder %s14, 4
    %s21 = sphi 0, %s40
    %s22 = sphi 0, %s36
    %s23 = sphi 0, %s32
    %s24 = sphi 0, %s21
    %s25 = sphi 0, %s22
    %s26 = sphi 0, %s23
    %s27 = sphi 0, %s24
    %s28 = sphi 0, %s25
    %s29 = sphi 0, %s26
    %s43 = sphi 0, %s45
    %s46 = sphi 0, %s43
    %s47 = sphi 0, %s46
    %s63 = sphi 0, %s47
    %s69 = sphi 0, %s71
    %s72 = sphi 0, %s69
    %s73 = sphi 0, %s72
    %s89 = sphi 0, %s73
    %s95 = sphi 0, %s97
    %s98 = sphi 0, %s95
    %s99 = sphi 0, %s98
    %s115 = sphi 0, %s99
    %s121 = sphi 0, %s123
    %s124 = sphi 0, %s121
    %s125 = sphi 0, %s124
    %s141 = sphi 0, %s125
    %s149 = sphi 0, %s151
    %s152 = sphi 0, %s149
    %s153 = sphi 0, %s152
    %s169 = sphi 0, %s153
    %s175 = sphi 0, %s177
    %s178 = sphi 0, %s175
    %s179 = sphi 0, %s178
    %s195 = sphi 0, %s179
    %s201 = sphi 0, %s203
    %s204 = sphi 0, %s201
    %s205 = sphi 0, %s204
    %s221 = sphi 0, %s205
    %s227 = sphi 0, %s229
    %s230 = sphi 0, %s227
    %s231 = sphi 0, %s230
    %s247 = sphi 0, %s231
    %s257 = sphi 0, %s259
    %s260 = sphi 0, %s257
    %s261 = sphi 0, %s260
    %s277 = sphi 0, %s261
  $region4: #{resblock_forward.3} parent=0 // loop_header_branch
    %17 = sbr.rel (%p15) target = $region8
  $region5: #{resblock_forward.3} parent=0 // loop_body
    %s19 = ssub.s32 %s14, 1
    %s20 = ssub.s32 %s14, 2
    %s30 = sadd.s32 1, %s23
    %p31 = scmp.ge.s32.totalorder %s30, 1
    %s32 = scalar_select %p31, 0, %s30
    %s33 = sadd.s32 1, %s22
    %s34 = scalar_select %p31, %s33, %s22
    %p35 = scmp.ge.s32.totalorder %s34, 1
    %s36 = scalar_select %p35, 0, %s34
    %s37 = sadd.s32 1, %s21
    %s38 = scalar_select %p35, %s37, %s21
    %p39 = scmp.ge.s32.totalorder %s38, 2
    %s40 = scalar_select %p39, 0, %s38
    %s41 = ssub.s32 %s21, %s40
    %p42 = scmp.eq.s32.totalorder %s41, 0
    %s44 = sadd.s32 %s43, 1
    %s45 = scalar_select %p42, %s43, %s44
    %p48 = pneg %p42
    %p49 = scmp.eq.s32.totalorder %s14, 1
    %p50 = por %p48, %p49
    %p51 = scmp.ne.s32.totalorder %s43, %s46
    %p52 = scmp.eq.s32.totalorder %s14, 0
    %p53 = por %p51, %p52
    %p54 = scmp.ne.s32.totalorder %s43, %s46
    %p55 = scmp.eq.s32.totalorder %s19, 1
    %p56 = por %p54, %p55
    %p57 = scmp.ne.s32.totalorder %s46, %s47
    %p58 = scmp.eq.s32.totalorder %s19, 0
    %p59 = por %p57, %p58
    %p60 = scmp.ne.s32.totalorder %s46, %s47
    %p61 = scmp.eq.s32.totalorder %s20, 1
    %p62 = por %p60, %p61
    %p64 = scmp.ne.s32.totalorder %s47, %s63
    %p65 = scmp.eq.s32.totalorder %s20, 0
    %p66 = por %p64, %p65
    %s67 = ssub.s32 %s22, %s36
    %p68 = scmp.eq.s32.totalorder %s67, 0
    %s70 = sadd.s32 %s69, 1
    %s71 = scalar_select %p68, %s69, %s70
    %p74 = pneg %p68
    %p75 = scmp.eq.s32.totalorder %s14, 1
    %p76 = por %p74, %p75
    %p77 = scmp.ne.s32.totalorder %s69, %s72
    %p78 = scmp.eq.s32.totalorder %s14, 0
    %p79 = por %p77, %p78
    %p80 = scmp.ne.s32.totalorder %s69, %s72
    %p81 = scmp.eq.s32.totalorder %s19, 1
    %p82 = por %p80, %p81
    %p83 = scmp.ne.s32.totalorder %s72, %s73
    %p84 = scmp.eq.s32.totalorder %s19, 0
    %p85 = por %p83, %p84
    %p86 = scmp.ne.s32.totalorder %s72, %s73
    %p87 = scmp.eq.s32.totalorder %s20, 1
    %p88 = por %p86, %p87
    %p90 = scmp.ne.s32.totalorder %s73, %s89
    %p91 = scmp.eq.s32.totalorder %s20, 0
    %p92 = por %p90, %p91
    %s93 = ssub.s32 %s22, %s36
    %p94 = scmp.eq.s32.totalorder %s93, 0
    %s96 = sadd.s32 %s95, 1
    %s97 = scalar_select %p94, %s95, %s96
    %p100 = pneg %p94
    %p101 = scmp.eq.s32.totalorder %s14, 1
    %p102 = por %p100, %p101
    %p103 = scmp.ne.s32.totalorder %s95, %s98
    %p104 = scmp.eq.s32.totalorder %s14, 0
    %p105 = por %p103, %p104
    %p106 = scmp.ne.s32.totalorder %s95, %s98
    %p107 = scmp.eq.s32.totalorder %s19, 1
    %p108 = por %p106, %p107
    %p109 = scmp.ne.s32.totalorder %s98, %s99
    %p110 = scmp.eq.s32.totalorder %s19, 0
    %p111 = por %p109, %p110
    %p112 = scmp.ne.s32.totalorder %s98, %s99
    %p113 = scmp.eq.s32.totalorder %s20, 1
    %p114 = por %p112, %p113
    %p116 = scmp.ne.s32.totalorder %s99, %s115
    %p117 = scmp.eq.s32.totalorder %s20, 0
    %p118 = por %p116, %p117
    %s119 = ssub.s32 %s22, %s36
    %p120 = scmp.eq.s32.totalorder %s119, 0
    %s122 = sadd.s32 %s121, 1
    %s123 = scalar_select %p120, %s121, %s122
    %p126 = pneg %p120
    %p127 = scmp.eq.s32.totalorder %s14, 1
    %p128 = por %p126, %p127
    %p129 = scmp.ne.s32.totalorder %s121, %s124
    %p130 = scmp.eq.s32.totalorder %s14, 0
    %p131 = por %p129, %p130
    %p132 = scmp.ne.s32.totalorder %s121, %s124
    %p133 = scmp.eq.s32.totalorder %s19, 1
    %p134 = por %p132, %p133
    %p135 = scmp.ne.s32.totalorder %s124, %s125
    %p136 = scmp.eq.s32.totalorder %s19, 0
    %p137 = por %p135, %p136
    %p138 = scmp.ne.s32.totalorder %s124, %s125
    %p139 = scmp.eq.s32.totalorder %s20, 1
    %p140 = por %p138, %p139
    %p142 = scmp.ne.s32.totalorder %s125, %s141
    %p143 = scmp.eq.s32.totalorder %s20, 0
    %p144 = por %p142, %p143
    %s145 = ssub.s32 %s21, %s40
    %s146 = ssub.s32 %s23, %s32
    %s147 = sor.u32 %s145, %s146
    %p148 = scmp.eq.s32.totalorder %s147, 0
    %s150 = sadd.s32 %s149, 1
    %s151 = scalar_select %p148, %s149, %s150
    %p154 = pneg %p148
    %p155 = scmp.eq.s32.totalorder %s14, 1
    %p156 = por %p154, %p155
    %p157 = scmp.ne.s32.totalorder %s149, %s152
    %p158 = scmp.eq.s32.totalorder %s14, 0
    %p159 = por %p157, %p158
    %p160 = scmp.ne.s32.totalorder %s149, %s152
    %p161 = scmp.eq.s32.totalorder %s19, 1
    %p162 = por %p160, %p161
    %p163 = scmp.ne.s32.totalorder %s152, %s153
    %p164 = scmp.eq.s32.totalorder %s19, 0
    %p165 = por %p163, %p164
    %p166 = scmp.ne.s32.totalorder %s152, %s153
    %p167 = scmp.eq.s32.totalorder %s20, 1
    %p168 = por %p166, %p167
    %p170 = scmp.ne.s32.totalorder %s153, %s169
    %p171 = scmp.eq.s32.totalorder %s20, 0
    %p172 = por %p170, %p171
    %s173 = ssub.s32 %s22, %s36
    %p174 = scmp.eq.s32.totalorder %s173, 0
    %s176 = sadd.s32 %s175, 1
    %s177 = scalar_select %p174, %s175, %s176
    %p180 = pneg %p174
    %p181 = scmp.eq.s32.totalorder %s14, 1
    %p182 = por %p180, %p181
    %p183 = scmp.ne.s32.totalorder %s175, %s178
    %p184 = scmp.eq.s32.totalorder %s14, 0
    %p185 = por %p183, %p184
    %p186 = scmp.ne.s32.totalorder %s175, %s178
    %p187 = scmp.eq.s32.totalorder %s19, 1
    %p188 = por %p186, %p187
    %p189 = scmp.ne.s32.totalorder %s178, %s179
    %p190 = scmp.eq.s32.totalorder %s19, 0
    %p191 = por %p189, %p190
    %p192 = scmp.ne.s32.totalorder %s178, %s179
    %p193 = scmp.eq.s32.totalorder %s20, 1
    %p194 = por %p192, %p193
    %p196 = scmp.ne.s32.totalorder %s179, %s195
    %p197 = scmp.eq.s32.totalorder %s20, 0
    %p198 = por %p196, %p197
    %s199 = ssub.s32 %s22, %s36
    %p200 = scmp.eq.s32.totalorder %s199, 0
    %s202 = sadd.s32 %s201, 1
    %s203 = scalar_select %p200, %s201, %s202
    %p206 = pneg %p200
    %p207 = scmp.eq.s32.totalorder %s14, 1
    %p208 = por %p206, %p207
    %p209 = scmp.ne.s32.totalorder %s201, %s204
    %p210 = scmp.eq.s32.totalorder %s14, 0
    %p211 = por %p209, %p210
    %p212 = scmp.ne.s32.totalorder %s201, %s204
    %p213 = scmp.eq.s32.totalorder %s19, 1
    %p214 = por %p212, %p213
    %p215 = scmp.ne.s32.totalorder %s204, %s205
    %p216 = scmp.eq.s32.totalorder %s19, 0
    %p217 = por %p215, %p216
    %p218 = scmp.ne.s32.totalorder %s204, %s205
    %p219 = scmp.eq.s32.totalorder %s20, 1
    %p220 = por %p218, %p219
    %p222 = scmp.ne.s32.totalorder %s205, %s221
    %p223 = scmp.eq.s32.totalorder %s20, 0
    %p224 = por %p222, %p223
    %s225 = ssub.s32 %s22, %s36
    %p226 = scmp.eq.s32.totalorder %s225, 0
    %s228 = sadd.s32 %s227, 1
    %s229 = scalar_select %p226, %s227, %s228
    %p232 = pneg %p226
    %p233 = scmp.eq.s32.totalorder %s14, 1
    %p234 = por %p232, %p233
    %p235 = scmp.ne.s32.totalorder %s227, %s230
    %p236 = scmp.eq.s32.totalorder %s14, 0
    %p237 = por %p235, %p236
    %p238 = scmp.ne.s32.totalorder %s227, %s230
    %p239 = scmp.eq.s32.totalorder %s19, 1
    %p240 = por %p238, %p239
    %p241 = scmp.ne.s32.totalorder %s230, %s231
    %p242 = scmp.eq.s32.totalorder %s19, 0
    %p243 = por %p241, %p242
    %p244 = scmp.ne.s32.totalorder %s230, %s231
    %p245 = scmp.eq.s32.totalorder %s20, 1
    %p246 = por %p244, %p245
    %p248 = scmp.ne.s32.totalorder %s231, %s247
    %p249 = scmp.eq.s32.totalorder %s20, 0
    %p250 = por %p248, %p249
    %s251 = ssub.s32 %s21, %s40
    %s252 = ssub.s32 %s23, %s32
    %s253 = sor.u32 %s251, %s252
    %s254 = ssub.s32 %s22, %s36
    %s255 = sor.u32 %s253, %s254
    %p256 = scmp.eq.s32.totalorder %s255, 0
    %s258 = sadd.s32 %s257, 1
    %s259 = scalar_select %p256, %s257, %s258
    %p262 = pneg %p256
    %p263 = scmp.eq.s32.totalorder %s14, 1
    %p264 = por %p262, %p263
    %p265 = scmp.ne.s32.totalorder %s257, %s260
    %p266 = scmp.eq.s32.totalorder %s14, 0
    %p267 = por %p265, %p266
    %p268 = scmp.ne.s32.totalorder %s257, %s260
    %p269 = scmp.eq.s32.totalorder %s19, 1
    %p270 = por %p268, %p269
    %p271 = scmp.ne.s32.totalorder %s260, %s261
    %p272 = scmp.eq.s32.totalorder %s19, 0
    %p273 = por %p271, %p272
    %p274 = scmp.ne.s32.totalorder %s260, %s261
    %p275 = scmp.eq.s32.totalorder %s20, 1
    %p276 = por %p274, %p275
    %p278 = scmp.ne.s32.totalorder %s261, %s277
    %p279 = scmp.eq.s32.totalorder %s20, 0
    %p280 = por %p278, %p279
    %p281 = scmp.le.s32.totalorder 1, %s14
    %p282 = scmp.lt.s32.totalorder %s14, 3
    %p283 = pnand %p281, %p282
    %p284 = pneg %p283
    // Predicated region
    $region9: #{resblock_forward.3} parent=5 // pred_check
      _
    $region10: #{resblock_forward.3} parent=5 // pred_check_branch
      %286 = sbr.rel (%p283) target = $region12
    $region11: #{resblock_forward.3} parent=5 // pred_region
      %s287 = ssub.s32 %s14, 1
      // Predicated region
      $region13: #{resblock_forward.3} parent=11 // pred_check
        %p288 = pneg %p85
      $region14: #{resblock_forward.3} parent=11 // pred_check_branch
        %290 = sbr.rel (%p288) target = $region16
      $region15: #{resblock_forward.3} parent=11 // pred_region
        %p291 = scmp.lt.s32.totalorder %s25, 0
        %s292 = scalar_select %p291, %s25, 0
        %s293 = smul.addr %s292, 4
        %s294 = scalar_lea.vmem %s1, %s293
      $region16: #{resblock_forward.3} parent=11 // pred_fallthru
        _
      // Predicated region
      $region17: #{resblock_forward.3} parent=11 // pred_check
        %p295 = pneg %p111
      $region18: #{resblock_forward.3} parent=11 // pred_check_branch
        %297 = sbr.rel (%p295) target = $region20
      $region19: #{resblock_forward.3} parent=11 // pred_region
        %p298 = scmp.lt.s32.totalorder %s25, 0
        %s299 = scalar_select %p298, %s25, 0
        %s300 = scalar_lea.vmem %s2, %s299
      $region20: #{resblock_forward.3} parent=11 // pred_fallthru
        _
      // Predicated region
      $region21: #{resblock_forward.3} parent=11 // pred_check
        %p301 = pneg %p137
      $region22: #{resblock_forward.3} parent=11 // pred_check_branch
        %303 = sbr.rel (%p301) target = $region24
      $region23: #{resblock_forward.3} parent=11 // pred_region
        %p304 = scmp.lt.s32.totalorder %s25, 0
        %s305 = scalar_select %p304, %s25, 0
        %s306 = scalar_lea.vmem %s3, %s305
      $region24: #{resblock_forward.3} parent=11 // pred_fallthru
        _
      // Predicated region
      $region25: #{resblock_forward.3} parent=11 // pred_check
        %p307 = pneg %p191
      $region26: #{resblock_forward.3} parent=11 // pred_check_branch
        %309 = sbr.rel (%p307) target = $region28
      $region27: #{resblock_forward.3} parent=11 // pred_region
        %p310 = scmp.lt.s32.totalorder %s25, 0
        %s311 = scalar_select %p310, %s25, 0
        %s312 = smul.addr %s311, 2
        %s313 = scalar_lea.vmem %s5, %s312
      $region28: #{resblock_forward.3} parent=11 // pred_fallthru
        _
      // Predicated region
      $region29: #{resblock_forward.3} parent=11 // pred_check
        %p314 = pneg %p217
      $region30: #{resblock_forward.3} parent=11 // pred_check_branch
        %316 = sbr.rel (%p314) target = $region32
      $region31: #{resblock_forward.3} parent=11 // pred_region
        %p317 = scmp.lt.s32.totalorder %s25, 0
        %s318 = scalar_select %p317, %s25, 0
        %s319 = scalar_lea.vmem %s6, %s318
      $region32: #{resblock_forward.3} parent=11 // pred_fallthru
        _
      // Predicated region
      $region33: #{resblock_forward.3} parent=11 // pred_check
        %p320 = pneg %p243
      $region34: #{resblock_forward.3} parent=11 // pred_check_branch
        %322 = sbr.rel (%p320) target = $region36
      $region35: #{resblock_forward.3} parent=11 // pred_region
        %p323 = scmp.lt.s32.totalorder %s25, 0
        %s324 = scalar_select %p323, %s25, 0
        %s325 = scalar_lea.vmem %s7, %s324
      $region36: #{resblock_forward.3} parent=11 // pred_fallthru
        _
    $region12: #{resblock_forward.3} parent=5 // pred_fallthru
      _
    %p326 = scmp.lt.s32.totalorder %s14, 2
    // Predicated region
    $region37: #{resblock_forward.3} parent=5 // pred_check
      %p327 = pneg %p326
    $region38: #{resblock_forward.3} parent=5 // pred_check_branch
      %329 = sbr.rel (%p327) target = $region40
    $region39: #{resblock_forward.3} parent=5 // pred_region
      // Predicated region
      $region41: #{resblock_forward.3} parent=39 // pred_check
        %p330 = pneg %p53
      $region42: #{resblock_forward.3} parent=39 // pred_check_branch
        %332 = sbr.rel (%p330) target = $region44
      $region43: #{resblock_forward.3} parent=39 // pred_region
        %p333 = scmp.lt.s32.totalorder %s21, 1
        %s334 = scalar_select %p333, %s21, 1
        %s335 = smul.addr %s334, 41
        %s336 = smul.addr %s335, 4
        %s337 = scalar_lea.vmem %s0, %s336
      $region44: #{resblock_forward.3} parent=39 // pred_fallthru
        _
      // Predicated region
      $region45: #{resblock_forward.3} parent=39 // pred_check
        %p338 = pneg %p159
      $region46: #{resblock_forward.3} parent=39 // pred_check_branch
        %340 = sbr.rel (%p338) target = $region48
      $region47: #{resblock_forward.3} parent=39 // pred_region
        %s341 = smul.u32 36, %s23
        %p342 = scmp.lt.s32.totalorder %s21, 1
        %s343 = scalar_select %p342, %s21, 1
        %p344 = scmp.lt.s32.totalorder %s341, 35
        %s345 = scalar_select %p344, %s341, 35
        %s346 = smul.addr %s343, 36
        %s347 = sadd.s32 %s345, %s346
        %s348 = smul.addr %s347, 4
        %s349 = scalar_lea.vmem %s4, %s348
        %s350 = smul.u32 36, %s23
      $region48: #{resblock_forward.3} parent=39 // pred_fallthru
        _
    $region40: #{resblock_forward.3} parent=5 // pred_fallthru
      _
    %p351 = scmp.le.s32.totalorder 1, %s14
    %p352 = scmp.lt.s32.totalorder %s14, 3
    %p353 = pnand %p351, %p352
    %p354 = pneg %p353
    // Predicated region
    $region49: #{resblock_forward.3} parent=5 // pred_check
      _
    $region50: #{resblock_forward.3} parent=5 // pred_check_branch
      %356 = sbr.rel (%p353) target = $region52
    $region51: #{resblock_forward.3} parent=5 // pred_region
      %s357 = ssub.s32 %s14, 1
      %p358 = scmp.lt.s32.totalorder %s24, 1
      %s359 = scalar_select %p358, %s24, 1
      %s360 = smul.addr %s359, 41
      %s361 = smul.addr %s360, 4
      %s362 = scalar_lea.vmem %s0, %s361
      %p363 = pneg %p59
      %p364 = pneg %p56
      %p365 = scmp.lt.s32.totalorder %s25, 0
      %s366 = scalar_select %p365, %s25, 0
      %s367 = smul.addr %s366, 4
      %s368 = scalar_lea.vmem %s1, %s367
      %p369 = pneg %p85
      %p370 = pneg %p82
      %p371 = scmp.lt.s32.totalorder %s25, 0
      %s372 = scalar_select %p371, %s25, 0
      %s373 = scalar_lea.vmem %s2, %s372
      %p374 = pneg %p111
      %p375 = pneg %p108
      %p376 = scmp.lt.s32.totalorder %s25, 0
      %s377 = scalar_select %p376, %s25, 0
      %s378 = scalar_lea.vmem %s3, %s377
      %p379 = pneg %p137
      %p380 = pneg %p134
      %s381 = smul.u32 36, %s26
      %p382 = scmp.lt.s32.totalorder %s24, 1
      %s383 = scalar_select %p382, %s24, 1
      %p384 = scmp.lt.s32.totalorder %s381, 35
      %s385 = scalar_select %p384, %s381, 35
      %s386 = smul.addr %s383, 36
      %s387 = sadd.s32 %s385, %s386
      %s388 = smul.addr %s387, 4
      %s389 = scalar_lea.vmem %s4, %s388
      %p390 = pneg %p165
      %p391 = pneg %p162
      %p392 = scmp.lt.s32.totalorder %s25, 0
      %s393 = scalar_select %p392, %s25, 0
      %s394 = smul.addr %s393, 2
      %s395 = scalar_lea.vmem %s5, %s394
      %p396 = pneg %p191
      %p397 = pneg %p188
      %p398 = scmp.lt.s32.totalorder %s25, 0
      %s399 = scalar_select %p398, %s25, 0
      %s400 = scalar_lea.vmem %s6, %s399
      %p401 = pneg %p217
      %p402 = pneg %p214
      %p403 = scmp.lt.s32.totalorder %s25, 0
      %s404 = scalar_select %p403, %s25, 0
      %s405 = scalar_lea.vmem %s7, %s404
      %p406 = pneg %p243
      %p407 = pneg %p240
      %p408 = pneg %p273
      %p409 = pneg %p270
      %s410 = smul.u32 36, %s26
      %p411 = scmp.lt.s32.totalorder %s24, 1
      %s412 = scalar_select %p411, %s24, 1
      %p413 = scmp.lt.s32.totalorder %s410, 35
      %s414 = scalar_select %p413, %s410, 35
      %p415 = scmp.lt.s32.totalorder %s25, 0
      %s416 = scalar_select %p415, %s25, 0
      %s417 = sadd.s32 %s416, %s414
      %s418 = smul.addr %s412, 36
      %s419 = sadd.s32 %s417, %s418
      %s420 = smul.addr %s419, 4
      %s421 = scalar_lea.vmem %s8, %s420
      %p422 = scmp.lt.s32.totalorder %s24, 1
      %s423 = scalar_select %p422, %s24, 1
      %s424 = smul.addr %s423, 41
      %s425 = smul.addr %s424, 4
      %s426 = scalar_lea.vmem %s0, %s425
      %p427 = scmp.lt.s32.totalorder %s25, 0
      %s428 = scalar_select %p427, %s25, 0
      %s429 = smul.addr %s428, 4
      %s430 = scalar_lea.vmem %s1, %s429
      %p431 = scmp.lt.s32.totalorder %s25, 0
      %s432 = scalar_select %p431, %s25, 0
      %s433 = scalar_lea.vmem %s2, %s432
      %p434 = scmp.lt.s32.totalorder %s25, 0
      %s435 = scalar_select %p434, %s25, 0
      %s436 = scalar_lea.vmem %s3, %s435
      %s437 = smul.u32 36, %s26
      %p438 = scmp.lt.s32.totalorder %s24, 1
      %s439 = scalar_select %p438, %s24, 1
      %p440 = scmp.lt.s32.totalorder %s437, 35
      %s441 = scalar_select %p440, %s437, 35
      %s442 = smul.addr %s439, 36
      %s443 = sadd.s32 %s441, %s442
      %s444 = smul.addr %s443, 4
      %s445 = scalar_lea.vmem %s4, %s444
      %s446 = smul.u32 36, %s26
      %p447 = scmp.lt.s32.totalorder %s25, 0
      %s448 = scalar_select %p447, %s25, 0
      %s449 = smul.addr %s448, 2
      %s450 = scalar_lea.vmem %s5, %s449
      %p451 = scmp.lt.s32.totalorder %s25, 0
      %s452 = scalar_select %p451, %s25, 0
      %s453 = scalar_lea.vmem %s6, %s452
      %p454 = scmp.lt.s32.totalorder %s25, 0
      %s455 = scalar_select %p454, %s25, 0
      %s456 = scalar_lea.vmem %s7, %s455
      %s457 = smul.u32 36, %s26
      %p458 = scmp.lt.s32.totalorder %s24, 1
      %s459 = scalar_select %p458, %s24, 1
      %p460 = scmp.lt.s32.totalorder %s457, 35
      %s461 = scalar_select %p460, %s457, 35
      %p462 = scmp.lt.s32.totalorder %s25, 0
      %s463 = scalar_select %p462, %s25, 0
      %s464 = sadd.s32 %s463, %s461
      %s465 = smul.addr %s459, 36
      %s466 = sadd.s32 %s464, %s465
      %s467 = smul.addr %s466, 4
      %s468 = scalar_lea.vmem %s8, %s467
      %s469 = smul.u32 36, %s26
      %v471 = vld [vmem:[%s426] sm:$0xf]
      %v472 = vld [vmem:[%s426 + $0x4] sm:$0xf]
      %v473 = vld [vmem:[%s426 + $0x8] sm:$0xf]
      %v474 = vld [vmem:[%s426 + $0xc] sm:$0xf]
      %v475 = vld [vmem:[%s426 + $0x10] sm:$0xf]
      %v476 = vld [vmem:[%s426 + $0x14] sm:$0xf]
      %v477 = vld [vmem:[%s426 + $0x18] sm:$0xf]
      %v478 = vld [vmem:[%s426 + $0x1c] sm:$0xf]
      %v479 = vld [vmem:[%s426 + $0x20] sm:$0xf]
      %v480 = vld [vmem:[%s426 + $0x24] sm:$0xf]
      %v481 = vld [vmem:[%s426 + $0x28] sm:$0xf]
      %v482 = vld [vmem:[%s426 + $0x2c] sm:$0xf]
      %v483 = vld [vmem:[%s426 + $0x30] sm:$0xf]
      %v484 = vld [vmem:[%s426 + $0x34] sm:$0xf]
      %v485 = vld [vmem:[%s426 + $0x38] sm:$0xf]
      %v486 = vld [vmem:[%s426 + $0x3c] sm:$0xf]
      %v487 = vld [vmem:[%s426 + $0x40] sm:$0xf]
      %v488 = vld [vmem:[%s426 + $0x44] sm:$0xf]
      %v489 = vld [vmem:[%s426 + $0x48] sm:$0xf]
      %v490 = vld [vmem:[%s426 + $0x4c] sm:$0xf]
      %v491 = vld [vmem:[%s426 + $0x50] sm:$0xf]
      %v492 = vld [vmem:[%s426 + $0x54] sm:$0xf]
      %v493 = vld [vmem:[%s426 + $0x58] sm:$0xf]
      %v494 = vld [vmem:[%s426 + $0x5c] sm:$0xf]
      %v495 = vld [vmem:[%s426 + $0x60] sm:$0xf]
      %v496 = vld [vmem:[%s426 + $0x64] sm:$0xf]
      %v497 = vld [vmem:[%s426 + $0x68] sm:$0xf]
      %v498 = vld [vmem:[%s426 + $0x6c] sm:$0xf]
      %v499 = vld [vmem:[%s426 + $0x70] sm:$0xf]
      %v500 = vld [vmem:[%s426 + $0x74] sm:$0xf]
      %v501 = vld [vmem:[%s426 + $0x78] sm:$0xf]
      %v502 = vld [vmem:[%s426 + $0x7c] sm:$0xf]
      %v503 = vld [vmem:[%s426 + $0x80] sm:$0xf]
      %v504 = vld [vmem:[%s426 + $0x84] sm:$0xf]
      %v505 = vld [vmem:[%s426 + $0x88] sm:$0xf]
      %v506 = vld [vmem:[%s426 + $0x8c] sm:$0xf]
      %v507 = vld [vmem:[%s426 + $0x90] sm:$0x1]
      %v508 = vld [vmem:[%s426] sm:$0xe]
      %v509 = vld [vmem:[%s426 + $0x8] sm:$0xe]
      %v510 = vld [vmem:[%s426 + $0x90] sm:$0xf]
      %v511 = vld [vmem:[%s426 + $0x94] sm:$0xf]
      %v512 = vld [vmem:[%s426 + $0x98] sm:$0x1]
      %v513 = vld [vmem:[%s426 + $0x98] sm:$0x3]
      %v514 = vld [vmem:[%s426 + $0x8] sm:$0xc]
      %v515 = vld [vmem:[%s426 + $0x10] sm:$0xc]
      %v516 = vld [vmem:[%s426 + $0x14] sm:$0xf]
      %v517 = vld [vmem:[%s426 + $0x18] sm:$0xf]
      %v518 = vld [vmem:[%s426 + $0x1c] sm:$0xf]
      %v519 = vld [vmem:[%s426 + $0x20] sm:$0xf]
      %v520 = vld [vmem:[%s426 + $0x24] sm:$0xf]
      %v521 = vld [vmem:[%s426 + $0x28] sm:$0xf]
      %v522 = vld [vmem:[%s426 + $0x2c] sm:$0xf]
      %v523 = vld [vmem:[%s426 + $0x30] sm:$0xf]
      %v524 = vld [vmem:[%s426 + $0x34] sm:$0xf]
      %v525 = vld [vmem:[%s426 + $0x38] sm:$0xf]
      %v526 = vld [vmem:[%s426 + $0x3c] sm:$0xf]
      %v527 = vld [vmem:[%s426 + $0x40] sm:$0xf]
      %v528 = vld [vmem:[%s426 + $0x44] sm:$0xf]
      %v529 = vld [vmem:[%s426 + $0x48] sm:$0xf]
      %v530 = vld [vmem:[%s426 + $0x4c] sm:$0xf]
      %v531 = vld [vmem:[%s426 + $0x50] sm:$0xf]
      %v532 = vld [vmem:[%s426 + $0x54] sm:$0xf]
      %v533 = vld [vmem:[%s426 + $0x58] sm:$0xf]
      %v534 = vld [vmem:[%s426 + $0x5c] sm:$0xf]
      %v535 = vld [vmem:[%s426 + $0x60] sm:$0xf]
      %v536 = vld [vmem:[%s426 + $0x64] sm:$0xf]
      %v537 = vld [vmem:[%s426 + $0x68] sm:$0xf]
      %v538 = vld [vmem:[%s426 + $0x6c] sm:$0xf]
      %v539 = vld [vmem:[%s426 + $0x70] sm:$0xf]
      %v540 = vld [vmem:[%s426 + $0x74] sm:$0xf]
      %v541 = vld [vmem:[%s426 + $0x78] sm:$0xf]
      %v542 = vld [vmem:[%s426 + $0x7c] sm:$0xf]
      %v543 = vld [vmem:[%s426 + $0x80] sm:$0xf]
      %v544 = vld [vmem:[%s426 + $0x84] sm:$0xf]
      %v545 = vld [vmem:[%s426 + $0x88] sm:$0xf]
      %v546 = vld [vmem:[%s426 + $0x8c] sm:$0xf]
      %v547 = vld [vmem:[%s426 + $0x90] sm:$0xf]
      %v548 = vld [vmem:[%s426 + $0x94] sm:$0xf]
      %v549 = vld [vmem:[%s426 + $0x98] sm:$0xf]
      %v550 = vld [vmem:[%s426 + $0x9c] sm:$0xf]
      %v551 = vld [vmem:[%s426 + $0xa0] sm:$0x3]
      %v552 = vld [vmem:[%s426 + $0xa0] sm:$0x7]
      %v553 = vld [vmem:[%s426 + $0x10] sm:$0x8]
      %v590 = vunpack.c.l.b16 %v471
      %v591 = vunpack.c.l.b16 %v472
      %v592 = vunpack.c.l.b16 %v473
      %v593 = vunpack.c.l.b16 %v474
      %v594 = vunpack.c.l.b16 %v475
      %v595 = vunpack.c.l.b16 %v476
      %v596 = vunpack.c.l.b16 %v477
      %v597 = vunpack.c.l.b16 %v478
      %v598 = vunpack.c.l.b16 %v479
      %v599 = vunpack.c.l.b16 %v480
      %v600 = vunpack.c.l.b16 %v481
      %v601 = vunpack.c.l.b16 %v482
      %v602 = vunpack.c.l.b16 %v483
      %v603 = vunpack.c.l.b16 %v484
      %v604 = vunpack.c.l.b16 %v485
      %v605 = vunpack.c.l.b16 %v486
      %v606 = vunpack.c.l.b16 %v487
      %v607 = vunpack.c.l.b16 %v488
      %v608 = vunpack.c.l.b16 %v489
      %v609 = vunpack.c.l.b16 %v490
      %v610 = vunpack.c.l.b16 %v491
      %v611 = vunpack.c.l.b16 %v492
      %v612 = vunpack.c.l.b16 %v493
      %v613 = vunpack.c.l.b16 %v494
      %v614 = vunpack.c.l.b16 %v495
      %v615 = vunpack.c.l.b16 %v496
      %v616 = vunpack.c.l.b16 %v497
      %v617 = vunpack.c.l.b16 %v498
      %v618 = vunpack.c.l.b16 %v499
      %v619 = vunpack.c.l.b16 %v500
      %v620 = vunpack.c.l.b16 %v501
      %v621 = vunpack.c.l.b16 %v502
      %v622 = vunpack.c.l.b16 %v503
      %v623 = vunpack.c.l.b16 %v504
      %v624 = vunpack.c.l.b16 %v505
      %v625 = vunpack.c.l.b16 %v506
      %v626 = vpack.c.b16 %v591, %v590
      %v627 = vpack.c.b16 %v593, %v592
      %v628 = vpack.c.b16 %v595, %v594
      %v629 = vpack.c.b16 %v597, %v596
      %v630 = vpack.c.b16 %v599, %v598
      %v631 = vpack.c.b16 %v601, %v600
      %v632 = vpack.c.b16 %v603, %v602
      %v633 = vpack.c.b16 %v605, %v604
      %v634 = vpack.c.b16 %v607, %v606
      %v635 = vpack.c.b16 %v609, %v608
      %v636 = vpack.c.b16 %v611, %v610
      %v637 = vpack.c.b16 %v613, %v612
      %v638 = vpack.c.b16 %v615, %v614
      %v639 = vpack.c.b16 %v617, %v616
      %v640 = vpack.c.b16 %v619, %v618
      %v641 = vpack.c.b16 %v621, %v620
      %v642 = vpack.c.b16 %v623, %v622
      %v643 = vpack.c.b16 %v625, %v624
      %v663 = vunpack.c.l.b16 %v507
      %v664 = vpack.c.b16 %v663, %v663
      %vm665 = vsmask.f32 7424
      %v667 = vshrl.u32 %v626, 16
      %v669 = vshll.u32 %v626, 16
      %v671 = vrot.slane %v669, 1
      %v672 = vor.u32 %v667, %v671
      %v674 = vshll.u32 %v627, 16
      %v676 = vrot.slane %v674, 1
      %v677 = vsel %vm665, %v672, %v676
      %v678 = vshrl.u32 %v627, 16
      %v680 = vor.u32 %v678, %v676
      %v682 = vshll.u32 %v628, 16
      %v684 = vrot.slane %v682, 1
      %v685 = vsel %vm665, %v680, %v684
      %v686 = vshrl.u32 %v628, 16
      %v688 = vor.u32 %v686, %v684
      %v690 = vshll.u32 %v629, 16
      %v692 = vrot.slane %v690, 1
      %v693 = vsel %vm665, %v688, %v692
      %v694 = vshrl.u32 %v629, 16
      %v696 = vor.u32 %v694, %v692
      %v698 = vshll.u32 %v630, 16
      %v700 = vrot.slane %v698, 1
      %v701 = vsel %vm665, %v696, %v700
      %v702 = vshrl.u32 %v630, 16
      %v704 = vor.u32 %v702, %v700
      %v706 = vshll.u32 %v631, 16
      %v708 = vrot.slane %v706, 1
      %v709 = vsel %vm665, %v704, %v708
      %v710 = vshrl.u32 %v631, 16
      %v712 = vor.u32 %v710, %v708
      %v714 = vshll.u32 %v632, 16
      %v716 = vrot.slane %v714, 1
      %v717 = vsel %vm665, %v712, %v716
      %v718 = vshrl.u32 %v632, 16
      %v720 = vor.u32 %v718, %v716
      %v722 = vshll.u32 %v633, 16
      %v724 = vrot.slane %v722, 1
      %v725 = vsel %vm665, %v720, %v724
      %v726 = vshrl.u32 %v633, 16
      %v728 = vor.u32 %v726, %v724
      %v730 = vshll.u32 %v634, 16
      %v732 = vrot.slane %v730, 1
      %v733 = vsel %vm665, %v728, %v732
      %v734 = vshrl.u32 %v634, 16
      %v736 = vor.u32 %v734, %v732
      %v738 = vshll.u32 %v635, 16
      %v740 = vrot.slane %v738, 1
      %v741 = vsel %vm665, %v736, %v740
      %v742 = vshrl.u32 %v635, 16
      %v744 = vor.u32 %v742, %v740
      %v746 = vshll.u32 %v636, 16
      %v748 = vrot.slane %v746, 1
      %v749 = vsel %vm665, %v744, %v748
      %v750 = vshrl.u32 %v636, 16
      %v752 = vor.u32 %v750, %v748
      %v754 = vshll.u32 %v637, 16
      %v756 = vrot.slane %v754, 1
      %v757 = vsel %vm665, %v752, %v756
      %v758 = vshrl.u32 %v637, 16
      %v760 = vor.u32 %v758, %v756
      %v762 = vshll.u32 %v638, 16
      %v764 = vrot.slane %v762, 1
      %v765 = vsel %vm665, %v760, %v764
      %v766 = vshrl.u32 %v638, 16
      %v768 = vor.u32 %v766, %v764
      %v770 = vshll.u32 %v639, 16
      %v772 = vrot.slane %v770, 1
      %v773 = vsel %vm665, %v768, %v772
      %v774 = vshrl.u32 %v639, 16
      %v776 = vor.u32 %v774, %v772
      %v778 = vshll.u32 %v640, 16
      %v780 = vrot.slane %v778, 1
      %v781 = vsel %vm665, %v776, %v780
      %v782 = vshrl.u32 %v640, 16
      %v784 = vor.u32 %v782, %v780
      %v786 = vshll.u32 %v641, 16
      %v788 = vrot.slane %v786, 1
      %v789 = vsel %vm665, %v784, %v788
      %v790 = vshrl.u32 %v641, 16
      %v792 = vor.u32 %v790, %v788
      %v794 = vshll.u32 %v642, 16
      %v796 = vrot.slane %v794, 1
      %v797 = vsel %vm665, %v792, %v796
      %v798 = vshrl.u32 %v642, 16
      %v800 = vor.u32 %v798, %v796
      %v802 = vshll.u32 %v643, 16
      %v804 = vrot.slane %v802, 1
      %v805 = vsel %vm665, %v800, %v804
      %v806 = vshrl.u32 %v643, 16
      %v808 = vor.u32 %v806, %v804
      %v810 = vshll.u32 %v664, 16
      %v812 = vrot.slane %v810, 1
      %v813 = vsel %vm665, %v808, %v812
      %v833 = vunpack.c.l.b16 %v508
      %v834 = vpack.c.b16 %v591, %v833
      %vm835 = vcmask 1046528
      %v836 = vrot.slane %v834, 1
      %v837 = vrot.slane %v627, 1
      %v838 = vsel %vm835, %v836, %v837
      %v839 = vrot.slane %v628, 1
      %v840 = vsel %vm835, %v837, %v839
      %v841 = vrot.slane %v629, 1
      %v842 = vsel %vm835, %v839, %v841
      %v843 = vrot.slane %v630, 1
      %v844 = vsel %vm835, %v841, %v843
      %v845 = vrot.slane %v631, 1
      %v846 = vsel %vm835, %v843, %v845
      %v847 = vrot.slane %v632, 1
      %v848 = vsel %vm835, %v845, %v847
      %v849 = vrot.slane %v633, 1
      %v850 = vsel %vm835, %v847, %v849
      %v851 = vrot.slane %v634, 1
      %v852 = vsel %vm835, %v849, %v851
      %v853 = vrot.slane %v635, 1
      %v854 = vsel %vm835, %v851, %v853
      %v855 = vrot.slane %v636, 1
      %v856 = vsel %vm835, %v853, %v855
      %v857 = vrot.slane %v637, 1
      %v858 = vsel %vm835, %v855, %v857
      %v859 = vrot.slane %v638, 1
      %v860 = vsel %vm835, %v857, %v859
      %v861 = vrot.slane %v639, 1
      %v862 = vsel %vm835, %v859, %v861
      %v863 = vrot.slane %v640, 1
      %v864 = vsel %vm835, %v861, %v863
      %v865 = vrot.slane %v641, 1
      %v866 = vsel %vm835, %v863, %v865
      %v867 = vrot.slane %v642, 1
      %v868 = vsel %vm835, %v865, %v867
      %v869 = vrot.slane %v643, 1
      %v870 = vsel %vm835, %v867, %v869
      %v871 = vrot.slane %v664, 1
      %v872 = vsel %vm835, %v869, %v871
      %v895 = vunpack.c.l.b16 %v509
      %v896 = vunpack.c.l.b16 %v510
      %v897 = vunpack.c.l.b16 %v511
      %v898 = vunpack.c.l.b16 %v512
      %v899 = vpack.c.b16 %v593, %v895
      %v900 = vpack.c.b16 %v897, %v896
      %v901 = vpack.c.b16 %v898, %v898
      %v902 = vrot.slane %v899, 1
      %v903 = vsel %vm835, %v902, %v839
      %v904 = vrot.slane %v900, 1
      %v905 = vsel %vm835, %v869, %v904
      %v906 = vrot.slane %v901, 1
      %v907 = vsel %vm835, %v904, %v906
      %v912 = vunpack.c.l.b16 %v513
      %v913 = vpack.c.b16 %v912, %v912
      %vm914 = vsmask.f32 6400
      %v916 = vshrl.u32 %v899, 16
      %v918 = vrot.slane %v916, 1
      %v919 = vshll.u32 %v899, 16
      %v921 = vrot.slane %v919, 2
      %v922 = vor.u32 %v918, %v921
      %v923 = vrot.slane %v686, 1
      %v924 = vrot.slane %v682, 2
      %v925 = vor.u32 %v923, %v924
      %v926 = vsel %vm914, %v922, %v925
      %v927 = vrot.slane %v694, 1
      %v928 = vrot.slane %v690, 2
      %v929 = vor.u32 %v927, %v928
      %v930 = vsel %vm914, %v925, %v929
      %v931 = vrot.slane %v702, 1
      %v932 = vrot.slane %v698, 2
      %v933 = vor.u32 %v931, %v932
      %v934 = vsel %vm914, %v929, %v933
      %v935 = vrot.slane %v710, 1
      %v936 = vrot.slane %v706, 2
      %v937 = vor.u32 %v935, %v936
      %v938 = vsel %vm914, %v933, %v937
      %v939 = vrot.slane %v718, 1
      %v940 = vrot.slane %v714, 2
      %v941 = vor.u32 %v939, %v940
      %v942 = vsel %vm914, %v937, %v941
      %v943 = vrot.slane %v726, 1
      %v944 = vrot.slane %v722, 2
      %v945 = vor.u32 %v943, %v944
      %v946 = vsel %vm914, %v941, %v945
      %v947 = vrot.slane %v734, 1
      %v948 = vrot.slane %v730, 2
      %v949 = vor.u32 %v947, %v948
      %v950 = vsel %vm914, %v945, %v949
      %v951 = vrot.slane %v742, 1
      %v952 = vrot.slane %v738, 2
      %v953 = vor.u32 %v951, %v952
      %v954 = vsel %vm914, %v949, %v953
      %v955 = vrot.slane %v750, 1
      %v956 = vrot.slane %v746, 2
      %v957 = vor.u32 %v955, %v956
      %v958 = vsel %vm914, %v953, %v957
      %v959 = vrot.slane %v758, 1
      %v960 = vrot.slane %v754, 2
      %v961 = vor.u32 %v959, %v960
      %v962 = vsel %vm914, %v957, %v961
      %v963 = vrot.slane %v766, 1
      %v964 = vrot.slane %v762, 2
      %v965 = vor.u32 %v963, %v964
      %v966 = vsel %vm914, %v961, %v965
      %v967 = vrot.slane %v774, 1
      %v968 = vrot.slane %v770, 2
      %v969 = vor.u32 %v967, %v968
      %v970 = vsel %vm914, %v965, %v969
      %v971 = vrot.slane %v782, 1
      %v972 = vrot.slane %v778, 2
      %v973 = vor.u32 %v971, %v972
      %v974 = vsel %vm914, %v969, %v973
      %v975 = vrot.slane %v790, 1
      %v976 = vrot.slane %v786, 2
      %v977 = vor.u32 %v975, %v976
      %v978 = vsel %vm914, %v973, %v977
      %v979 = vrot.slane %v798, 1
      %v980 = vrot.slane %v794, 2
      %v981 = vor.u32 %v979, %v980
      %v982 = vsel %vm914, %v977, %v981
      %v983 = vrot.slane %v806, 1
      %v984 = vrot.slane %v802, 2
      %v985 = vor.u32 %v983, %v984
      %v986 = vsel %vm914, %v981, %v985
      %v988 = vshrl.u32 %v900, 16
      %v990 = vrot.slane %v988, 1
      %v991 = vshll.u32 %v900, 16
      %v993 = vrot.slane %v991, 2
      %v994 = vor.u32 %v990, %v993
      %v995 = vsel %vm914, %v985, %v994
      %v997 = vshrl.u32 %v913, 16
      %v999 = vrot.slane %v997, 1
      %v1000 = vshll.u32 %v913, 16
      %v1002 = vrot.slane %v1000, 2
      %v1003 = vor.u32 %v999, %v1002
      %v1004 = vsel %vm914, %v994, %v1003
      %v1024 = vunpack.c.l.b16 %v514
      %v1025 = vpack.c.b16 %v593, %v1024
      %vm1026 = vcmask 1045504
      %v1027 = vrot.slane %v1025, 2
      %v1028 = vrot.slane %v628, 2
      %v1029 = vsel %vm1026, %v1027, %v1028
      %v1030 = vrot.slane %v629, 2
      %v1031 = vsel %vm1026, %v1028, %v1030
      %v1032 = vrot.slane %v630, 2
      %v1033 = vsel %vm1026, %v1030, %v1032
      %v1034 = vrot.slane %v631, 2
      %v1035 = vsel %vm1026, %v1032, %v1034
      %v1036 = vrot.slane %v632, 2
      %v1037 = vsel %vm1026, %v1034, %v1036
      %v1038 = vrot.slane %v633, 2
      %v1039 = vsel %vm1026, %v1036, %v1038
      %v1040 = vrot.slane %v634, 2
      %v1041 = vsel %vm1026, %v1038, %v1040
      %v1042 = vrot.slane %v635, 2
      %v1043 = vsel %vm1026, %v1040, %v1042
      %v1044 = vrot.slane %v636, 2
      %v1045 = vsel %vm1026, %v1042, %v1044
      %v1046 = vrot.slane %v637, 2
      %v1047 = vsel %vm1026, %v1044, %v1046
      %v1048 = vrot.slane %v638, 2
      %v1049 = vsel %vm1026, %v1046, %v1048
      %v1050 = vrot.slane %v639, 2
      %v1051 = vsel %vm1026, %v1048, %v1050
      %v1052 = vrot.slane %v640, 2
      %v1053 = vsel %vm1026, %v1050, %v1052
      %v1054 = vrot.slane %v641, 2
      %v1055 = vsel %vm1026, %v1052, %v1054
      %v1056 = vrot.slane %v642, 2
      %v1057 = vsel %vm1026, %v1054, %v1056
      %v1058 = vrot.slane %v643, 2
      %v1059 = vsel %vm1026, %v1056, %v1058
      %v1060 = vrot.slane %v900, 2
      %v1061 = vsel %vm1026, %v1058, %v1060
      %v1062 = vrot.slane %v913, 2
      %v1063 = vsel %vm1026, %v1060, %v1062
      %v1119 = vunpack.c.l.b16 %v515
      %v1120 = vunpack.c.l.b16 %v516
      %v1121 = vunpack.c.l.b16 %v517
      %v1122 = vunpack.c.l.b16 %v518
      %v1123 = vunpack.c.l.b16 %v519
      %v1124 = vunpack.c.l.b16 %v520
      %v1125 = vunpack.c.l.b16 %v521
      %v1126 = vunpack.c.l.b16 %v522
      %v1127 = vunpack.c.l.b16 %v523
      %v1128 = vunpack.c.l.b16 %v524
      %v1129 = vunpack.c.l.b16 %v525
      %v1130 = vunpack.c.l.b16 %v526
      %v1131 = vunpack.c.l.b16 %v527
      %v1132 = vunpack.c.l.b16 %v528
      %v1133 = vunpack.c.l.b16 %v529
      %v1134 = vunpack.c.l.b16 %v530
      %v1135 = vunpack.c.l.b16 %v531
      %v1136 = vunpack.c.l.b16 %v532
      %v1137 = vunpack.c.l.b16 %v533
      %v1138 = vunpack.c.l.b16 %v534
      %v1139 = vunpack.c.l.b16 %v535
      %v1140 = vunpack.c.l.b16 %v536
      %v1141 = vunpack.c.l.b16 %v537
      %v1142 = vunpack.c.l.b16 %v538
      %v1143 = vunpack.c.l.b16 %v539
      %v1144 = vunpack.c.l.b16 %v540
      %v1145 = vunpack.c.l.b16 %v541
      %v1146 = vunpack.c.l.b16 %v542
      %v1147 = vunpack.c.l.b16 %v543
      %v1148 = vunpack.c.l.b16 %v544
      %v1149 = vunpack.c.l.b16 %v545
      %v1150 = vunpack.c.l.b16 %v546
      %v1151 = vunpack.c.l.b16 %v547
      %v1152 = vunpack.c.l.b16 %v548
      %v1153 = vunpack.c.l.b16 %v549
      %v1154 = vunpack.c.l.b16 %v550
      %v1155 = vunpack.c.l.b16 %v551
      %v1156 = vpack.c.b16 %v1120, %v1119
      %v1157 = vpack.c.b16 %v1122, %v1121
      %v1158 = vpack.c.b16 %v1124, %v1123
      %v1159 = vpack.c.b16 %v1126, %v1125
      %v1160 = vpack.c.b16 %v1128, %v1127
      %v1161 = vpack.c.b16 %v1130, %v1129
      %v1162 = vpack.c.b16 %v1132, %v1131
      %v1163 = vpack.c.b16 %v1134, %v1133
      %v1164 = vpack.c.b16 %v1136, %v1135
      %v1165 = vpack.c.b16 %v1138, %v1137
      %v1166 = vpack.c.b16 %v1140, %v1139
      %v1167 = vpack.c.b16 %v1142, %v1141
      %v1168 = vpack.c.b16 %v1144, %v1143
      %v1169 = vpack.c.b16 %v1146, %v1145
      %v1170 = vpack.c.b16 %v1148, %v1147
      %v1171 = vpack.c.b16 %v1150, %v1149
      %v1172 = vpack.c.b16 %v1152, %v1151
      %v1173 = vpack.c.b16 %v1154, %v1153
      %v1174 = vpack.c.b16 %v1155, %v1155
      %v1175 = vrot.slane %v1156, 2
      %v1176 = vrot.slane %v1157, 2
      %v1177 = vsel %vm1026, %v1175, %v1176
      %v1178 = vrot.slane %v1158, 2
      %v1179 = vsel %vm1026, %v1176, %v1178
      %v1180 = vrot.slane %v1159, 2
      %v1181 = vsel %vm1026, %v1178, %v1180
      %v1182 = vrot.slane %v1160, 2
      %v1183 = vsel %vm1026, %v1180, %v1182
      %v1184 = vrot.slane %v1161, 2
      %v1185 = vsel %vm1026, %v1182, %v1184
      %v1186 = vrot.slane %v1162, 2
      %v1187 = vsel %vm1026, %v1184, %v1186
      %v1188 = vrot.slane %v1163, 2
      %v1189 = vsel %vm1026, %v1186, %v1188
      %v1190 = vrot.slane %v1164, 2
      %v1191 = vsel %vm1026, %v1188, %v1190
      %v1192 = vrot.slane %v1165, 2
      %v1193 = vsel %vm1026, %v1190, %v1192
      %v1194 = vrot.slane %v1166, 2
      %v1195 = vsel %vm1026, %v1192, %v1194
      %v1196 = vrot.slane %v1167, 2
      %v1197 = vsel %vm1026, %v1194, %v1196
      %v1198 = vrot.slane %v1168, 2
      %v1199 = vsel %vm1026, %v1196, %v1198
      %v1200 = vrot.slane %v1169, 2
      %v1201 = vsel %vm1026, %v1198, %v1200
      %v1202 = vrot.slane %v1170, 2
      %v1203 = vsel %vm1026, %v1200, %v1202
      %v1204 = vrot.slane %v1171, 2
      %v1205 = vsel %vm1026, %v1202, %v1204
      %v1206 = vrot.slane %v1172, 2
      %v1207 = vsel %vm1026, %v1204, %v1206
      %v1208 = vrot.slane %v1173, 2
      %v1209 = vsel %vm1026, %v1206, %v1208
      %v1210 = vrot.slane %v1174, 2
      %v1211 = vsel %vm1026, %v1208, %v1210
      %v1231 = vunpack.c.l.b16 %v552
      %v1232 = vpack.c.b16 %v1231, %v1231
      %vm1233 = vsmask.f32 5376
      %v1235 = vshrl.u32 %v1156, 16
      %v1237 = vrot.slane %v1235, 2
      %v1238 = vshll.u32 %v1156, 16
      %v1240 = vrot.slane %v1238, 3
      %v1241 = vor.u32 %v1237, %v1240
      %v1243 = vshrl.u32 %v1157, 16
      %v1245 = vrot.slane %v1243, 2
      %v1246 = vshll.u32 %v1157, 16
      %v1248 = vrot.slane %v1246, 3
      %v1249 = vor.u32 %v1245, %v1248
      %v1250 = vsel %vm1233, %v1241, %v1249
      %v1252 = vshrl.u32 %v1158, 16
      %v1254 = vrot.slane %v1252, 2
      %v1255 = vshll.u32 %v1158, 16
      %v1257 = vrot.slane %v1255, 3
      %v1258 = vor.u32 %v1254, %v1257
      %v1259 = vsel %vm1233, %v1249, %v1258
      %v1261 = vshrl.u32 %v1159, 16
      %v1263 = vrot.slane %v1261, 2
      %v1264 = vshll.u32 %v1159, 16
      %v1266 = vrot.slane %v1264, 3
      %v1267 = vor.u32 %v1263, %v1266
      %v1268 = vsel %vm1233, %v1258, %v1267
      %v1270 = vshrl.u32 %v1160, 16
      %v1272 = vrot.slane %v1270, 2
      %v1273 = vshll.u32 %v1160, 16
      %v1275 = vrot.slane %v1273, 3
      %v1276 = vor.u32 %v1272, %v1275
      %v1277 = vsel %vm1233, %v1267, %v1276
      %v1279 = vshrl.u32 %v1161, 16
      %v1281 = vrot.slane %v1279, 2
      %v1282 = vshll.u32 %v1161, 16
      %v1284 = vrot.slane %v1282, 3
      %v1285 = vor.u32 %v1281, %v1284
      %v1286 = vsel %vm1233, %v1276, %v1285
      %v1288 = vshrl.u32 %v1162, 16
      %v1290 = vrot.slane %v1288, 2
      %v1291 = vshll.u32 %v1162, 16
      %v1293 = vrot.slane %v1291, 3
      %v1294 = vor.u32 %v1290, %v1293
      %v1295 = vsel %vm1233, %v1285, %v1294
      %v1297 = vshrl.u32 %v1163, 16
      %v1299 = vrot.slane %v1297, 2
      %v1300 = vshll.u32 %v1163, 16
      %v1302 = vrot.slane %v1300, 3
      %v1303 = vor.u32 %v1299, %v1302
      %v1304 = vsel %vm1233, %v1294, %v1303
      %v1306 = vshrl.u32 %v1164, 16
      %v1308 = vrot.slane %v1306, 2
      %v1309 = vshll.u32 %v1164, 16
      %v1311 = vrot.slane %v1309, 3
      %v1312 = vor.u32 %v1308, %v1311
      %v1313 = vsel %vm1233, %v1303, %v1312
      %v1315 = vshrl.u32 %v1165, 16
      %v1317 = vrot.slane %v1315, 2
      %v1318 = vshll.u32 %v1165, 16
      %v1320 = vrot.slane %v1318, 3
      %v1321 = vor.u32 %v1317, %v1320
      %v1322 = vsel %vm1233, %v1312, %v1321
      %v1324 = vshrl.u32 %v1166, 16
      %v1326 = vrot.slane %v1324, 2
      %v1327 = vshll.u32 %v1166, 16
      %v1329 = vrot.slane %v1327, 3
      %v1330 = vor.u32 %v1326, %v1329
      %v1331 = vsel %vm1233, %v1321, %v1330
      %v1333 = vshrl.u32 %v1167, 16
      %v1335 = vrot.slane %v1333, 2
      %v1336 = vshll.u32 %v1167, 16
      %v1338 = vrot.slane %v1336, 3
      %v1339 = vor.u32 %v1335, %v1338
      %v1340 = vsel %vm1233, %v1330, %v1339
      %v1342 = vshrl.u32 %v1168, 16
      %v1344 = vrot.slane %v1342, 2
      %v1345 = vshll.u32 %v1168, 16
      %v1347 = vrot.slane %v1345, 3
      %v1348 = vor.u32 %v1344, %v1347
      %v1349 = vsel %vm1233, %v1339, %v1348
      %v1351 = vshrl.u32 %v1169, 16
      %v1353 = vrot.slane %v1351, 2
      %v1354 = vshll.u32 %v1169, 16
      %v1356 = vrot.slane %v1354, 3
      %v1357 = vor.u32 %v1353, %v1356
      %v1358 = vsel %vm1233, %v1348, %v1357
      %v1360 = vshrl.u32 %v1170, 16
      %v1362 = vrot.slane %v1360, 2
      %v1363 = vshll.u32 %v1170, 16
      %v1365 = vrot.slane %v1363, 3
      %v1366 = vor.u32 %v1362, %v1365
      %v1367 = vsel %vm1233, %v1357, %v1366
      %v1369 = vshrl.u32 %v1171, 16
      %v1371 = vrot.slane %v1369, 2
      %v1372 = vshll.u32 %v1171, 16
      %v1374 = vrot.slane %v1372, 3
      %v1375 = vor.u32 %v1371, %v1374
      %v1376 = vsel %vm1233, %v1366, %v1375
      %v1378 = vshrl.u32 %v1172, 16
      %v1380 = vrot.slane %v1378, 2
      %v1381 = vshll.u32 %v1172, 16
      %v1383 = vrot.slane %v1381, 3
      %v1384 = vor.u32 %v1380, %v1383
      %v1385 = vsel %vm1233, %v1375, %v1384
      %v1387 = vshrl.u32 %v1173, 16
      %v1389 = vrot.slane %v1387, 2
      %v1390 = vshll.u32 %v1173, 16
      %v1392 = vrot.slane %v1390, 3
      %v1393 = vor.u32 %v1389, %v1392
      %v1394 = vsel %vm1233, %v1384, %v1393
      %v1396 = vshrl.u32 %v1232, 16
      %v1398 = vrot.slane %v1396, 2
      %v1399 = vshll.u32 %v1232, 16
      %v1401 = vrot.slane %v1399, 3
      %v1402 = vor.u32 %v1398, %v1401
      %v1403 = vsel %vm1233, %v1393, %v1402
      %v1423 = vunpack.c.l.b16 %v553
      %v1424 = vpack.c.b16 %v1120, %v1423
      %vm1425 = vcmask 1044480
      %v1426 = vrot.slane %v1424, 3
      %v1427 = vrot.slane %v1157, 3
      %v1428 = vsel %vm1425, %v1426, %v1427
      %v1429 = vrot.slane %v1158, 3
      %v1430 = vsel %vm1425, %v1427, %v1429
      %v1431 = vrot.slane %v1159, 3
      %v1432 = vsel %vm1425, %v1429, %v1431
      %v1433 = vrot.slane %v1160, 3
      %v1434 = vsel %vm1425, %v1431, %v1433
      %v1435 = vrot.slane %v1161, 3
      %v1436 = vsel %vm1425, %v1433, %v1435
      %v1437 = vrot.slane %v1162, 3
      %v1438 = vsel %vm1425, %v1435, %v1437
      %v1439 = vrot.slane %v1163, 3
      %v1440 = vsel %vm1425, %v1437, %v1439
      %v1441 = vrot.slane %v1164, 3
      %v1442 = vsel %vm1425, %v1439, %v1441
      %v1443 = vrot.slane %v1165, 3
      %v1444 = vsel %vm1425, %v1441, %v1443
      %v1445 = vrot.slane %v1166, 3
      %v1446 = vsel %vm1425, %v1443, %v1445
      %v1447 = vrot.slane %v1167, 3
      %v1448 = vsel %vm1425, %v1445, %v1447
      %v1449 = vrot.slane %v1168, 3
      %v1450 = vsel %vm1425, %v1447, %v1449
      %v1451 = vrot.slane %v1169, 3
      %v1452 = vsel %vm1425, %v1449, %v1451
      %v1453 = vrot.slane %v1170, 3
      %v1454 = vsel %vm1425, %v1451, %v1453
      %v1455 = vrot.slane %v1171, 3
      %v1456 = vsel %vm1425, %v1453, %v1455
      %v1457 = vrot.slane %v1172, 3
      %v1458 = vsel %vm1425, %v1455, %v1457
      %v1459 = vrot.slane %v1173, 3
      %v1460 = vsel %vm1425, %v1457, %v1459
      %v1461 = vrot.slane %v1232, 3
      %v1462 = vsel %vm1425, %v1459, %v1461
      %v1481 = vld [vmem:[%s430] sm:$0xf]
      %v1482 = vld [vmem:[%s430 + $0x4] sm:$0xf]
      %v1483 = vld [vmem:[%s430 + $0x8] sm:$0xf]
      %v1484 = vld [vmem:[%s430 + $0xc] sm:$0xf]
      %v1485 = vld [vmem:[%s430 + $0x10] sm:$0xf]
      %v1486 = vld [vmem:[%s430 + $0x14] sm:$0xf]
      %v1487 = vld [vmem:[%s430 + $0x18] sm:$0xf]
      %v1488 = vld [vmem:[%s430 + $0x1c] sm:$0xf]
      %v1489 = vld [vmem:[%s430 + $0x20] sm:$0xf]
      %v1490 = vld [vmem:[%s430 + $0x24] sm:$0xf]
      %v1491 = vld [vmem:[%s430 + $0x28] sm:$0xf]
      %v1492 = vld [vmem:[%s430 + $0x2c] sm:$0xf]
      %v1493 = vld [vmem:[%s430 + $0x30] sm:$0xf]
      %v1494 = vld [vmem:[%s430 + $0x34] sm:$0xf]
      %v1495 = vld [vmem:[%s430 + $0x38] sm:$0xf]
      %v1496 = vld [vmem:[%s430 + $0x3c] sm:$0xf]
      %v1497 = vld [vmem:[%s430 + $0x40] sm:$0xf]
      %v1498 = vld [vmem:[%s430 + $0x44] sm:$0xf]
      %v1499 = vld [vmem:[%s430 + $0x48] sm:$0xf]
      %v1500 = vld [vmem:[%s430 + $0x4c] sm:$0xf]
      %v1501 = vld [vmem:[%s430 + $0x50] sm:$0xf]
      %v1502 = vld [vmem:[%s430 + $0x54] sm:$0xf]
      %v1503 = vld [vmem:[%s430 + $0x58] sm:$0xf]
      %v1504 = vld [vmem:[%s430 + $0x5c] sm:$0xf]
      %v1505 = vld [vmem:[%s430 + $0x60] sm:$0xf]
      %v1506 = vld [vmem:[%s430 + $0x64] sm:$0xf]
      %v1507 = vld [vmem:[%s430 + $0x68] sm:$0xf]
      %v1508 = vld [vmem:[%s430 + $0x6c] sm:$0xf]
      %v1509 = vld [vmem:[%s430 + $0x70] sm:$0xf]
      %v1510 = vld [vmem:[%s430 + $0x74] sm:$0xf]
      %v1511 = vld [vmem:[%s430 + $0x78] sm:$0xf]
      %v1512 = vld [vmem:[%s430 + $0x7c] sm:$0xf]
      %v1513 = vld [vmem:[%s430 + $0x80] sm:$0xf]
      %v1514 = vld [vmem:[%s430 + $0x84] sm:$0xf]
      %v1515 = vld [vmem:[%s430 + $0x88] sm:$0xf]
      %v1516 = vld [vmem:[%s430 + $0x8c] sm:$0xf]
      %v1517 = vld [vmem:[%s430 + $0x90] sm:$0xf]
      %v1518 = vld [vmem:[%s430 + $0x94] sm:$0xf]
      %v1519 = vld [vmem:[%s430 + $0x98] sm:$0xf]
      %v1520 = vld [vmem:[%s430 + $0x9c] sm:$0xf]
      %v1521 = vld [vmem:[%s430 + $0xa0] sm:$0xf]
      %v1522 = vld [vmem:[%s430 + $0xa4] sm:$0xf]
      %v1523 = vld [vmem:[%s430 + $0xa8] sm:$0xf]
      %v1524 = vld [vmem:[%s430 + $0xac] sm:$0xf]
      %v1525 = vld [vmem:[%s430 + $0xb0] sm:$0xf]
      %v1526 = vld [vmem:[%s430 + $0xb4] sm:$0xf]
      %v1527 = vld [vmem:[%s430 + $0xb8] sm:$0xf]
      %v1528 = vld [vmem:[%s430 + $0xbc] sm:$0xf]
      %v1529 = vld [vmem:[%s430 + $0xc0] sm:$0xf]
      %v1530 = vld [vmem:[%s430 + $0xc4] sm:$0xf]
      %v1531 = vld [vmem:[%s430 + $0xc8] sm:$0xf]
      %v1532 = vld [vmem:[%s430 + $0xcc] sm:$0xf]
      %v1533 = vld [vmem:[%s430 + $0xd0] sm:$0xf]
      %v1534 = vld [vmem:[%s430 + $0xd4] sm:$0xf]
      %v1535 = vld [vmem:[%s430 + $0xd8] sm:$0xf]
      %v1536 = vld [vmem:[%s430 + $0xdc] sm:$0xf]
      %v1537 = vld [vmem:[%s430 + $0xe0] sm:$0xf]
      %v1538 = vld [vmem:[%s430 + $0xe4] sm:$0xf]
      %v1539 = vld [vmem:[%s430 + $0xe8] sm:$0xf]
      %v1540 = vld [vmem:[%s430 + $0xec] sm:$0xf]
      %v1541 = vld [vmem:[%s430 + $0xf0] sm:$0xf]
      %v1542 = vld [vmem:[%s430 + $0xf4] sm:$0xf]
      %v1543 = vld [vmem:[%s430 + $0xf8] sm:$0xf]
      %v1544 = vld [vmem:[%s430 + $0xfc] sm:$0xf]
      %v1545 = vld [vmem:[%s430 + $0x100] sm:$0xf]
      %v1546 = vld [vmem:[%s430 + $0x104] sm:$0xf]
      %v1547 = vld [vmem:[%s430 + $0x108] sm:$0xf]
      %v1548 = vld [vmem:[%s430 + $0x10c] sm:$0xf]
      %v1549 = vld [vmem:[%s430 + $0x110] sm:$0xf]
      %v1550 = vld [vmem:[%s430 + $0x114] sm:$0xf]
      %v1551 = vld [vmem:[%s430 + $0x118] sm:$0xf]
      %v1552 = vld [vmem:[%s430 + $0x11c] sm:$0xf]
      %v1553 = vld [vmem:[%s430 + $0x120] sm:$0xf]
      %v1554 = vld [vmem:[%s430 + $0x124] sm:$0xf]
      %v1555 = vld [vmem:[%s430 + $0x128] sm:$0xf]
      %v1556 = vld [vmem:[%s430 + $0x12c] sm:$0xf]
      %v1557 = vld [vmem:[%s430 + $0x130] sm:$0xf]
      %v1558 = vld [vmem:[%s430 + $0x134] sm:$0xf]
      %v1559 = vld [vmem:[%s430 + $0x138] sm:$0xf]
      %v1560 = vld [vmem:[%s430 + $0x13c] sm:$0xf]
      %v1561 = vld [vmem:[%s430 + $0x140] sm:$0xf]
      %v1562 = vld [vmem:[%s430 + $0x144] sm:$0xf]
      %v1563 = vld [vmem:[%s430 + $0x148] sm:$0xf]
      %v1564 = vld [vmem:[%s430 + $0x14c] sm:$0xf]
      %v1565 = vld [vmem:[%s430 + $0x150] sm:$0xf]
      %v1566 = vld [vmem:[%s430 + $0x154] sm:$0xf]
      %v1567 = vld [vmem:[%s430 + $0x158] sm:$0xf]
      %v1568 = vld [vmem:[%s430 + $0x15c] sm:$0xf]
      %v1569 = vld [vmem:[%s430 + $0x160] sm:$0xf]
      %v1570 = vld [vmem:[%s430 + $0x164] sm:$0xf]
      %v1571 = vld [vmem:[%s430 + $0x168] sm:$0xf]
      %v1572 = vld [vmem:[%s430 + $0x16c] sm:$0xf]
      %v1573 = vld [vmem:[%s430 + $0x170] sm:$0xf]
      %v1574 = vld [vmem:[%s430 + $0x174] sm:$0xf]
      %v1575 = vld [vmem:[%s430 + $0x178] sm:$0xf]
      %v1576 = vld [vmem:[%s430 + $0x17c] sm:$0xf]
      %v1577 = vld [vmem:[%s430 + $0x180] sm:$0xf]
      %v1578 = vld [vmem:[%s430 + $0x184] sm:$0xf]
      %v1579 = vld [vmem:[%s430 + $0x188] sm:$0xf]
      %v1580 = vld [vmem:[%s430 + $0x18c] sm:$0xf]
      %v1581 = vld [vmem:[%s430 + $0x190] sm:$0xf]
      %v1582 = vld [vmem:[%s430 + $0x194] sm:$0xf]
      %v1583 = vld [vmem:[%s430 + $0x198] sm:$0xf]
      %v1584 = vld [vmem:[%s430 + $0x19c] sm:$0xf]
      %v1585 = vld [vmem:[%s430 + $0x1a0] sm:$0xf]
      %v1586 = vld [vmem:[%s430 + $0x1a4] sm:$0xf]
      %v1587 = vld [vmem:[%s430 + $0x1a8] sm:$0xf]
      %v1588 = vld [vmem:[%s430 + $0x1ac] sm:$0xf]
      %v1589 = vld [vmem:[%s430 + $0x1b0] sm:$0xf]
      %v1590 = vld [vmem:[%s430 + $0x1b4] sm:$0xf]
      %v1591 = vld [vmem:[%s430 + $0x1b8] sm:$0xf]
      %v1592 = vld [vmem:[%s430 + $0x1bc] sm:$0xf]
      %v1593 = vld [vmem:[%s430 + $0x1c0] sm:$0xf]
      %v1594 = vld [vmem:[%s430 + $0x1c4] sm:$0xf]
      %v1595 = vld [vmem:[%s430 + $0x1c8] sm:$0xf]
      %v1596 = vld [vmem:[%s430 + $0x1cc] sm:$0xf]
      %v1597 = vld [vmem:[%s430 + $0x1d0] sm:$0xf]
      %v1598 = vld [vmem:[%s430 + $0x1d4] sm:$0xf]
      %v1599 = vld [vmem:[%s430 + $0x1d8] sm:$0xf]
      %v1600 = vld [vmem:[%s430 + $0x1dc] sm:$0xf]
      %v1601 = vld [vmem:[%s430 + $0x1e0] sm:$0xf]
      %v1602 = vld [vmem:[%s430 + $0x1e4] sm:$0xf]
      %v1603 = vld [vmem:[%s430 + $0x1e8] sm:$0xf]
      %v1604 = vld [vmem:[%s430 + $0x1ec] sm:$0xf]
      %v1605 = vld [vmem:[%s430 + $0x1f0] sm:$0xf]
      %v1606 = vld [vmem:[%s430 + $0x1f4] sm:$0xf]
      %v1607 = vld [vmem:[%s430 + $0x1f8] sm:$0xf]
      %v1608 = vld [vmem:[%s430 + $0x1fc] sm:$0xf]
      %v1609 = vld [vmem:[%s430 + $0x200] sm:$0xf]
      %v1610 = vld [vmem:[%s430 + $0x204] sm:$0xf]
      %v1611 = vld [vmem:[%s430 + $0x208] sm:$0xf]
      %v1612 = vld [vmem:[%s430 + $0x20c] sm:$0xf]
      %v1613 = vld [vmem:[%s430 + $0x210] sm:$0xf]
      %v1614 = vld [vmem:[%s430 + $0x214] sm:$0xf]
      %v1615 = vld [vmem:[%s430 + $0x218] sm:$0xf]
      %v1616 = vld [vmem:[%s430 + $0x21c] sm:$0xf]
      %v1617 = vld [vmem:[%s430 + $0x220] sm:$0xf]
      %v1618 = vld [vmem:[%s430 + $0x224] sm:$0xf]
      %v1619 = vld [vmem:[%s430 + $0x228] sm:$0xf]
      %v1620 = vld [vmem:[%s430 + $0x22c] sm:$0xf]
      %v1621 = vld [vmem:[%s430 + $0x230] sm:$0xf]
      %v1622 = vld [vmem:[%s430 + $0x234] sm:$0xf]
      %v1623 = vld [vmem:[%s430 + $0x238] sm:$0xf]
      %v1624 = vld [vmem:[%s430 + $0x23c] sm:$0xf]
      %v1769 = vunpack.c.l.b16 %v1481
      %v1770 = vunpack.c.l.b16 %v1482
      %v1771 = vunpack.c.l.b16 %v1483
      %v1772 = vunpack.c.l.b16 %v1484
      %v1773 = vunpack.c.l.b16 %v1485
      %v1774 = vunpack.c.l.b16 %v1486
      %v1775 = vunpack.c.l.b16 %v1487
      %v1776 = vunpack.c.l.b16 %v1488
      %v1777 = vunpack.c.l.b16 %v1489
      %v1778 = vunpack.c.l.b16 %v1490
      %v1779 = vunpack.c.l.b16 %v1491
      %v1780 = vunpack.c.l.b16 %v1492
      %v1781 = vunpack.c.l.b16 %v1493
      %v1782 = vunpack.c.l.b16 %v1494
      %v1783 = vunpack.c.l.b16 %v1495
      %v1784 = vunpack.c.l.b16 %v1496
      %v1785 = vunpack.c.l.b16 %v1497
      %v1786 = vunpack.c.l.b16 %v1498
      %v1787 = vunpack.c.l.b16 %v1499
      %v1788 = vunpack.c.l.b16 %v1500
      %v1789 = vunpack.c.l.b16 %v1501
      %v1790 = vunpack.c.l.b16 %v1502
      %v1791 = vunpack.c.l.b16 %v1503
      %v1792 = vunpack.c.l.b16 %v1504
      %v1793 = vunpack.c.l.b16 %v1505
      %v1794 = vunpack.c.l.b16 %v1506
      %v1795 = vunpack.c.l.b16 %v1507
      %v1796 = vunpack.c.l.b16 %v1508
      %v1797 = vunpack.c.l.b16 %v1509
      %v1798 = vunpack.c.l.b16 %v1510
      %v1799 = vunpack.c.l.b16 %v1511
      %v1800 = vunpack.c.l.b16 %v1512
      %v1801 = vunpack.c.l.b16 %v1513
      %v1802 = vunpack.c.l.b16 %v1514
      %v1803 = vunpack.c.l.b16 %v1515
      %v1804 = vunpack.c.l.b16 %v1516
      %v1805 = vunpack.c.l.b16 %v1517
      %v1806 = vunpack.c.l.b16 %v1518
      %v1807 = vunpack.c.l.b16 %v1519
      %v1808 = vunpack.c.l.b16 %v1520
      %v1809 = vunpack.c.l.b16 %v1521
      %v1810 = vunpack.c.l.b16 %v1522
      %v1811 = vunpack.c.l.b16 %v1523
      %v1812 = vunpack.c.l.b16 %v1524
      %v1813 = vunpack.c.l.b16 %v1525
      %v1814 = vunpack.c.l.b16 %v1526
      %v1815 = vunpack.c.l.b16 %v1527
      %v1816 = vunpack.c.l.b16 %v1528
      %v1817 = vunpack.c.l.b16 %v1529
      %v1818 = vunpack.c.l.b16 %v1530
      %v1819 = vunpack.c.l.b16 %v1531
      %v1820 = vunpack.c.l.b16 %v1532
      %v1821 = vunpack.c.l.b16 %v1533
      %v1822 = vunpack.c.l.b16 %v1534
      %v1823 = vunpack.c.l.b16 %v1535
      %v1824 = vunpack.c.l.b16 %v1536
      %v1825 = vunpack.c.l.b16 %v1537
      %v1826 = vunpack.c.l.b16 %v1538
      %v1827 = vunpack.c.l.b16 %v1539
      %v1828 = vunpack.c.l.b16 %v1540
      %v1829 = vunpack.c.l.b16 %v1541
      %v1830 = vunpack.c.l.b16 %v1542
      %v1831 = vunpack.c.l.b16 %v1543
      %v1832 = vunpack.c.l.b16 %v1544
      %v1833 = vunpack.c.l.b16 %v1545
      %v1834 = vunpack.c.l.b16 %v1546
      %v1835 = vunpack.c.l.b16 %v1547
      %v1836 = vunpack.c.l.b16 %v1548
      %v1837 = vunpack.c.l.b16 %v1549
      %v1838 = vunpack.c.l.b16 %v1550
      %v1839 = vunpack.c.l.b16 %v1551
      %v1840 = vunpack.c.l.b16 %v1552
      %v1841 = vunpack.c.l.b16 %v1553
      %v1842 = vunpack.c.l.b16 %v1554
      %v1843 = vunpack.c.l.b16 %v1555
      %v1844 = vunpack.c.l.b16 %v1556
      %v1845 = vunpack.c.l.b16 %v1557
      %v1846 = vunpack.c.l.b16 %v1558
      %v1847 = vunpack.c.l.b16 %v1559
      %v1848 = vunpack.c.l.b16 %v1560
      %v1849 = vunpack.c.l.b16 %v1561
      %v1850 = vunpack.c.l.b16 %v1562
      %v1851 = vunpack.c.l.b16 %v1563
      %v1852 = vunpack.c.l.b16 %v1564
      %v1853 = vunpack.c.l.b16 %v1565
      %v1854 = vunpack.c.l.b16 %v1566
      %v1855 = vunpack.c.l.b16 %v1567
      %v1856 = vunpack.c.l.b16 %v1568
      %v1857 = vunpack.c.l.b16 %v1569
      %v1858 = vunpack.c.l.b16 %v1570
      %v1859 = vunpack.c.l.b16 %v1571
      %v1860 = vunpack.c.l.b16 %v1572
      %v1861 = vunpack.c.l.b16 %v1573
      %v1862 = vunpack.c.l.b16 %v1574
      %v1863 = vunpack.c.l.b16 %v1575
      %v1864 = vunpack.c.l.b16 %v1576
      %v1865 = vunpack.c.l.b16 %v1577
      %v1866 = vunpack.c.l.b16 %v1578
      %v1867 = vunpack.c.l.b16 %v1579
      %v1868 = vunpack.c.l.b16 %v1580
      %v1869 = vunpack.c.l.b16 %v1581
      %v1870 = vunpack.c.l.b16 %v1582
      %v1871 = vunpack.c.l.b16 %v1583
      %v1872 = vunpack.c.l.b16 %v1584
      %v1873 = vunpack.c.l.b16 %v1585
      %v1874 = vunpack.c.l.b16 %v1586
      %v1875 = vunpack.c.l.b16 %v1587
      %v1876 = vunpack.c.l.b16 %v1588
      %v1877 = vunpack.c.l.b16 %v1589
      %v1878 = vunpack.c.l.b16 %v1590
      %v1879 = vunpack.c.l.b16 %v1591
      %v1880 = vunpack.c.l.b16 %v1592
      %v1881 = vunpack.c.l.b16 %v1593
      %v1882 = vunpack.c.l.b16 %v1594
      %v1883 = vunpack.c.l.b16 %v1595
      %v1884 = vunpack.c.l.b16 %v1596
      %v1885 = vunpack.c.l.b16 %v1597
      %v1886 = vunpack.c.l.b16 %v1598
      %v1887 = vunpack.c.l.b16 %v1599
      %v1888 = vunpack.c.l.b16 %v1600
      %v1889 = vunpack.c.l.b16 %v1601
      %v1890 = vunpack.c.l.b16 %v1602
      %v1891 = vunpack.c.l.b16 %v1603
      %v1892 = vunpack.c.l.b16 %v1604
      %v1893 = vunpack.c.l.b16 %v1605
      %v1894 = vunpack.c.l.b16 %v1606
      %v1895 = vunpack.c.l.b16 %v1607
      %v1896 = vunpack.c.l.b16 %v1608
      %v1897 = vunpack.c.l.b16 %v1609
      %v1898 = vunpack.c.l.b16 %v1610
      %v1899 = vunpack.c.l.b16 %v1611
      %v1900 = vunpack.c.l.b16 %v1612
      %v1901 = vunpack.c.l.b16 %v1613
      %v1902 = vunpack.c.l.b16 %v1614
      %v1903 = vunpack.c.l.b16 %v1615
      %v1904 = vunpack.c.l.b16 %v1616
      %v1905 = vunpack.c.l.b16 %v1617
      %v1906 = vunpack.c.l.b16 %v1618
      %v1907 = vunpack.c.l.b16 %v1619
      %v1908 = vunpack.c.l.b16 %v1620
      %v1909 = vunpack.c.l.b16 %v1621
      %v1910 = vunpack.c.l.b16 %v1622
      %v1911 = vunpack.c.l.b16 %v1623
      %v1912 = vunpack.c.l.b16 %v1624
      %v1913 = vpack.c.b16 %v1770, %v1769
      %v1914 = vpack.c.b16 %v1772, %v1771
      %v1915 = vpack.c.b16 %v1774, %v1773
      %v1916 = vpack.c.b16 %v1776, %v1775
      %v1917 = vpack.c.b16 %v1778, %v1777
      %v1918 = vpack.c.b16 %v1780, %v1779
      %v1919 = vpack.c.b16 %v1782, %v1781
      %v1920 = vpack.c.b16 %v1784, %v1783
      %v1921 = vpack.c.b16 %v1786, %v1785
      %v1922 = vpack.c.b16 %v1788, %v1787
      %v1923 = vpack.c.b16 %v1790, %v1789
      %v1924 = vpack.c.b16 %v1792, %v1791
      %v1925 = vpack.c.b16 %v1794, %v1793
      %v1926 = vpack.c.b16 %v1796, %v1795
      %v1927 = vpack.c.b16 %v1798, %v1797
      %v1928 = vpack.c.b16 %v1800, %v1799
      %v1929 = vpack.c.b16 %v1802, %v1801
      %v1930 = vpack.c.b16 %v1804, %v1803
      %v1931 = vpack.c.b16 %v1806, %v1805
      %v1932 = vpack.c.b16 %v1808, %v1807
      %v1933 = vpack.c.b16 %v1810, %v1809
      %v1934 = vpack.c.b16 %v1812, %v1811
      %v1935 = vpack.c.b16 %v1814, %v1813
      %v1936 = vpack.c.b16 %v1816, %v1815
      %v1937 = vpack.c.b16 %v1818, %v1817
      %v1938 = vpack.c.b16 %v1820, %v1819
      %v1939 = vpack.c.b16 %v1822, %v1821
      %v1940 = vpack.c.b16 %v1824, %v1823
      %v1941 = vpack.c.b16 %v1826, %v1825
      %v1942 = vpack.c.b16 %v1828, %v1827
      %v1943 = vpack.c.b16 %v1830, %v1829
      %v1944 = vpack.c.b16 %v1832, %v1831
      %v1945 = vpack.c.b16 %v1834, %v1833
      %v1946 = vpack.c.b16 %v1836, %v1835
      %v1947 = vpack.c.b16 %v1838, %v1837
      %v1948 = vpack.c.b16 %v1840, %v1839
      %v1949 = vpack.c.b16 %v1842, %v1841
      %v1950 = vpack.c.b16 %v1844, %v1843
      %v1951 = vpack.c.b16 %v1846, %v1845
      %v1952 = vpack.c.b16 %v1848, %v1847
      %v1953 = vpack.c.b16 %v1850, %v1849
      %v1954 = vpack.c.b16 %v1852, %v1851
      %v1955 = vpack.c.b16 %v1854, %v1853
      %v1956 = vpack.c.b16 %v1856, %v1855
      %v1957 = vpack.c.b16 %v1858, %v1857
      %v1958 = vpack.c.b16 %v1860, %v1859
      %v1959 = vpack.c.b16 %v1862, %v1861
      %v1960 = vpack.c.b16 %v1864, %v1863
      %v1961 = vpack.c.b16 %v1866, %v1865
      %v1962 = vpack.c.b16 %v1868, %v1867
      %v1963 = vpack.c.b16 %v1870, %v1869
      %v1964 = vpack.c.b16 %v1872, %v1871
      %v1965 = vpack.c.b16 %v1874, %v1873
      %v1966 = vpack.c.b16 %v1876, %v1875
      %v1967 = vpack.c.b16 %v1878, %v1877
      %v1968 = vpack.c.b16 %v1880, %v1879
      %v1969 = vpack.c.b16 %v1882, %v1881
      %v1970 = vpack.c.b16 %v1884, %v1883
      %v1971 = vpack.c.b16 %v1886, %v1885
      %v1972 = vpack.c.b16 %v1888, %v1887
      %v1973 = vpack.c.b16 %v1890, %v1889
      %v1974 = vpack.c.b16 %v1892, %v1891
      %v1975 = vpack.c.b16 %v1894, %v1893
      %v1976 = vpack.c.b16 %v1896, %v1895
      %v1977 = vpack.c.b16 %v1898, %v1897
      %v1978 = vpack.c.b16 %v1900, %v1899
      %v1979 = vpack.c.b16 %v1902, %v1901
      %v1980 = vpack.c.b16 %v1904, %v1903
      %v1981 = vpack.c.b16 %v1906, %v1905
      %v1982 = vpack.c.b16 %v1908, %v1907
      %v1983 = vpack.c.b16 %v1910, %v1909
      %v1984 = vpack.c.b16 %v1912, %v1911
      %2057 = vmatpush.bf16.msra.mxu0 %v1920
      %2058 = vmatpush.bf16.msra.mxu0 %v1919
      %2059 = vmatpush.bf16.msra.mxu0 %v1918
      %2060 = vmatpush.bf16.msra.mxu0 %v1917
      %2061 = vmatpush.bf16.msra.mxu0 %v1916
      %2062 = vmatpush.bf16.msra.mxu0 %v1915
      %2063 = vmatpush.bf16.msra.mxu0 %v1914
      %2064 = vmatpush.bf16.msra.mxu0 %v1913
      %2065 = vmatmul.bf16.gmra.mxu0 %v626
      %v2066 = vpop.f32.mrf.mxu0
      %v2067 = vadd.f32 0.0, %v2066
      %v2068 = vpop.f32.mrf.mxu0
      %v2069 = vadd.f32 0.0, %v2068
      %2070 = vmatmul.bf16.gmra.mxu0 %v627
      %v2071 = vpop.f32.mrf.mxu0
      %v2072 = vadd.f32 0.0, %v2071
      %v2073 = vpop.f32.mrf.mxu0
      %v2074 = vadd.f32 0.0, %v2073
      %2075 = vmatmul.bf16.gmra.mxu0 %v628
      %v2076 = vpop.f32.mrf.mxu0
      %v2077 = vadd.f32 0.0, %v2076
      %v2078 = vpop.f32.mrf.mxu0
      %v2079 = vadd.f32 0.0, %v2078
      %2080 = vmatmul.bf16.gmra.mxu0 %v629
      %v2081 = vpop.f32.mrf.mxu0
      %v2082 = vadd.f32 0.0, %v2081
      %v2083 = vpop.f32.mrf.mxu0
      %v2084 = vadd.f32 0.0, %v2083
      %2085 = vmatmul.bf16.gmra.mxu0 %v630
      %v2086 = vpop.f32.mrf.mxu0
      %v2087 = vadd.f32 0.0, %v2086
      %v2088 = vpop.f32.mrf.mxu0
      %v2089 = vadd.f32 0.0, %v2088
      %2090 = vmatmul.bf16.gmra.mxu0 %v631
      %v2091 = vpop.f32.mrf.mxu0
      %v2092 = vadd.f32 0.0, %v2091
      %v2093 = vpop.f32.mrf.mxu0
      %v2094 = vadd.f32 0.0, %v2093
      %2095 = vmatmul.bf16.gmra.mxu0 %v632
      %v2096 = vpop.f32.mrf.mxu0
      %v2097 = vadd.f32 0.0, %v2096
      %v2098 = vpop.f32.mrf.mxu0
      %v2099 = vadd.f32 0.0, %v2098
      %2100 = vmatmul.bf16.gmra.mxu0 %v633
      %v2101 = vpop.f32.mrf.mxu0
      %v2102 = vadd.f32 0.0, %v2101
      %v2103 = vpop.f32.mrf.mxu0
      %v2104 = vadd.f32 0.0, %v2103
      %2105 = vmatmul.bf16.gmra.mxu0 %v634
      %v2106 = vpop.f32.mrf.mxu0
      %v2107 = vadd.f32 0.0, %v2106
      %v2108 = vpop.f32.mrf.mxu0
      %v2109 = vadd.f32 0.0, %v2108
      %2110 = vmatmul.bf16.gmra.mxu0 %v635
      %v2111 = vpop.f32.mrf.mxu0
      %v2112 = vadd.f32 0.0, %v2111
      %v2113 = vpop.f32.mrf.mxu0
      %v2114 = vadd.f32 0.0, %v2113
      %2115 = vmatmul.bf16.gmra.mxu0 %v636
      %v2116 = vpop.f32.mrf.mxu0
      %v2117 = vadd.f32 0.0, %v2116
      %v2118 = vpop.f32.mrf.mxu0
      %v2119 = vadd.f32 0.0, %v2118
      %2120 = vmatmul.bf16.gmra.mxu0 %v637
      %v2121 = vpop.f32.mrf.mxu0
      %v2122 = vadd.f32 0.0, %v2121
      %v2123 = vpop.f32.mrf.mxu0
      %v2124 = vadd.f32 0.0, %v2123
      %2125 = vmatmul.bf16.gmra.mxu0 %v638
      %v2126 = vpop.f32.mrf.mxu0
      %v2127 = vadd.f32 0.0, %v2126
      %v2128 = vpop.f32.mrf.mxu0
      %v2129 = vadd.f32 0.0, %v2128
      %2130 = vmatmul.bf16.gmra.mxu0 %v639
      %v2131 = vpop.f32.mrf.mxu0
      %v2132 = vadd.f32 0.0, %v2131
      %v2133 = vpop.f32.mrf.mxu0
      %v2134 = vadd.f32 0.0, %v2133
      %2135 = vmatmul.bf16.gmra.mxu0 %v640
      %v2136 = vpop.f32.mrf.mxu0
      %v2137 = vadd.f32 0.0, %v2136
      %v2138 = vpop.f32.mrf.mxu0
      %v2139 = vadd.f32 0.0, %v2138
      %2140 = vmatmul.bf16.gmra.mxu0 %v641
      %v2141 = vpop.f32.mrf.mxu0
      %v2142 = vadd.f32 0.0, %v2141
      %v2143 = vpop.f32.mrf.mxu0
      %v2144 = vadd.f32 0.0, %v2143
      %2145 = vmatmul.bf16.gmra.mxu0 %v642
      %v2146 = vpop.f32.mrf.mxu0
      %v2147 = vadd.f32 0.0, %v2146
      %v2148 = vpop.f32.mrf.mxu0
      %v2149 = vadd.f32 0.0, %v2148
      %2150 = vmatmul.bf16.gmra.mxu0 %v643
      %v2151 = vpop.f32.mrf.mxu0
      %v2152 = vadd.f32 0.0, %v2151
      %v2153 = vpop.f32.mrf.mxu0
      %v2154 = vadd.f32 0.0, %v2153
      %2155 = vdwg.mxu0
      %2156 = vmatpush.bf16.msra.mxu0 %v1928
      %2157 = vmatpush.bf16.msra.mxu0 %v1927
      %2158 = vmatpush.bf16.msra.mxu0 %v1926
      %2159 = vmatpush.bf16.msra.mxu0 %v1925
      %2160 = vmatpush.bf16.msra.mxu0 %v1924
      %2161 = vmatpush.bf16.msra.mxu0 %v1923
      %2162 = vmatpush.bf16.msra.mxu0 %v1922
      %2163 = vmatpush.bf16.msra.mxu0 %v1921
      %2164 = vmatmul.bf16.gmra.mxu0 %v677
      %v2165 = vpop.f32.mrf.mxu0
      %v2166 = vadd.f32 %v2067, %v2165
      %v2167 = vpop.f32.mrf.mxu0
      %v2168 = vadd.f32 %v2069, %v2167
      %2169 = vmatmul.bf16.gmra.mxu0 %v685
      %v2170 = vpop.f32.mrf.mxu0
      %v2171 = vadd.f32 %v2072, %v2170
      %v2172 = vpop.f32.mrf.mxu0
      %v2173 = vadd.f32 %v2074, %v2172
      %2174 = vmatmul.bf16.gmra.mxu0 %v693
      %v2175 = vpop.f32.mrf.mxu0
      %v2176 = vadd.f32 %v2077, %v2175
      %v2177 = vpop.f32.mrf.mxu0
      %v2178 = vadd.f32 %v2079, %v2177
      %2179 = vmatmul.bf16.gmra.mxu0 %v701
      %v2180 = vpop.f32.mrf.mxu0
      %v2181 = vadd.f32 %v2082, %v2180
      %v2182 = vpop.f32.mrf.mxu0
      %v2183 = vadd.f32 %v2084, %v2182
      %2184 = vmatmul.bf16.gmra.mxu0 %v709
      %v2185 = vpop.f32.mrf.mxu0
      %v2186 = vadd.f32 %v2087, %v2185
      %v2187 = vpop.f32.mrf.mxu0
      %v2188 = vadd.f32 %v2089, %v2187
      %2189 = vmatmul.bf16.gmra.mxu0 %v717
      %v2190 = vpop.f32.mrf.mxu0
      %v2191 = vadd.f32 %v2092, %v2190
      %v2192 = vpop.f32.mrf.mxu0
      %v2193 = vadd.f32 %v2094, %v2192
      %2194 = vmatmul.bf16.gmra.mxu0 %v725
      %v2195 = vpop.f32.mrf.mxu0
      %v2196 = vadd.f32 %v2097, %v2195
      %v2197 = vpop.f32.mrf.mxu0
      %v2198 = vadd.f32 %v2099, %v2197
      %2199 = vmatmul.bf16.gmra.mxu0 %v733
      %v2200 = vpop.f32.mrf.mxu0
      %v2201 = vadd.f32 %v2102, %v2200
      %v2202 = vpop.f32.mrf.mxu0
      %v2203 = vadd.f32 %v2104, %v2202
      %2204 = vmatmul.bf16.gmra.mxu0 %v741
      %v2205 = vpop.f32.mrf.mxu0
      %v2206 = vadd.f32 %v2107, %v2205
      %v2207 = vpop.f32.mrf.mxu0
      %v2208 = vadd.f32 %v2109, %v2207
      %2209 = vmatmul.bf16.gmra.mxu0 %v749
      %v2210 = vpop.f32.mrf.mxu0
      %v2211 = vadd.f32 %v2112, %v2210
      %v2212 = vpop.f32.mrf.mxu0
      %v2213 = vadd.f32 %v2114, %v2212
      %2214 = vmatmul.bf16.gmra.mxu0 %v757
      %v2215 = vpop.f32.mrf.mxu0
      %v2216 = vadd.f32 %v2117, %v2215
      %v2217 = vpop.f32.mrf.mxu0
      %v2218 = vadd.f32 %v2119, %v2217
      %2219 = vmatmul.bf16.gmra.mxu0 %v765
      %v2220 = vpop.f32.mrf.mxu0
      %v2221 = vadd.f32 %v2122, %v2220
      %v2222 = vpop.f32.mrf.mxu0
      %v2223 = vadd.f32 %v2124, %v2222
      %2224 = vmatmul.bf16.gmra.mxu0 %v773
      %v2225 = vpop.f32.mrf.mxu0
      %v2226 = vadd.f32 %v2127, %v2225
      %v2227 = vpop.f32.mrf.mxu0
      %v2228 = vadd.f32 %v2129, %v2227
      %2229 = vmatmul.bf16.gmra.mxu0 %v781
      %v2230 = vpop.f32.mrf.mxu0
      %v2231 = vadd.f32 %v2132, %v2230
      %v2232 = vpop.f32.mrf.mxu0
      %v2233 = vadd.f32 %v2134, %v2232
      %2234 = vmatmul.bf16.gmra.mxu0 %v789
      %v2235 = vpop.f32.mrf.mxu0
      %v2236 = vadd.f32 %v2137, %v2235
      %v2237 = vpop.f32.mrf.mxu0
      %v2238 = vadd.f32 %v2139, %v2237
      %2239 = vmatmul.bf16.gmra.mxu0 %v797
      %v2240 = vpop.f32.mrf.mxu0
      %v2241 = vadd.f32 %v2142, %v2240
      %v2242 = vpop.f32.mrf.mxu0
      %v2243 = vadd.f32 %v2144, %v2242
      %2244 = vmatmul.bf16.gmra.mxu0 %v805
      %v2245 = vpop.f32.mrf.mxu0
      %v2246 = vadd.f32 %v2147, %v2245
      %v2247 = vpop.f32.mrf.mxu0
      %v2248 = vadd.f32 %v2149, %v2247
      %2249 = vmatmul.bf16.gmra.mxu0 %v813
      %v2250 = vpop.f32.mrf.mxu0
      %v2251 = vadd.f32 %v2152, %v2250
      %v2252 = vpop.f32.mrf.mxu0
      %v2253 = vadd.f32 %v2154, %v2252
      %2254 = vdwg.mxu0
      %2255 = vmatpush.bf16.msra.mxu0 %v1936
      %2256 = vmatpush.bf16.msra.mxu0 %v1935
      %2257 = vmatpush.bf16.msra.mxu0 %v1934
      %2258 = vmatpush.bf16.msra.mxu0 %v1933
      %2259 = vmatpush.bf16.msra.mxu0 %v1932
      %2260 = vmatpush.bf16.msra.mxu0 %v1931
      %2261 = vmatpush.bf16.msra.mxu0 %v1930
      %2262 = vmatpush.bf16.msra.mxu0 %v1929
      %2263 = vmatmul.bf16.gmra.mxu0 %v838
      %v2264 = vpop.f32.mrf.mxu0
      %v2265 = vadd.f32 %v2166, %v2264
      %v2266 = vpop.f32.mrf.mxu0
      %v2267 = vadd.f32 %v2168, %v2266
      %2268 = vmatmul.bf16.gmra.mxu0 %v840
      %v2269 = vpop.f32.mrf.mxu0
      %v2270 = vadd.f32 %v2171, %v2269
      %v2271 = vpop.f32.mrf.mxu0
      %v2272 = vadd.f32 %v2173, %v2271
      %2273 = vmatmul.bf16.gmra.mxu0 %v842
      %v2274 = vpop.f32.mrf.mxu0
      %v2275 = vadd.f32 %v2176, %v2274
      %v2276 = vpop.f32.mrf.mxu0
      %v2277 = vadd.f32 %v2178, %v2276
      %2278 = vmatmul.bf16.gmra.mxu0 %v844
      %v2279 = vpop.f32.mrf.mxu0
      %v2280 = vadd.f32 %v2181, %v2279
      %v2281 = vpop.f32.mrf.mxu0
      %v2282 = vadd.f32 %v2183, %v2281
      %2283 = vmatmul.bf16.gmra.mxu0 %v846
      %v2284 = vpop.f32.mrf.mxu0
      %v2285 = vadd.f32 %v2186, %v2284
      %v2286 = vpop.f32.mrf.mxu0
      %v2287 = vadd.f32 %v2188, %v2286
      %2288 = vmatmul.bf16.gmra.mxu0 %v848
      %v2289 = vpop.f32.mrf.mxu0
      %v2290 = vadd.f32 %v2191, %v2289
      %v2291 = vpop.f32.mrf.mxu0
      %v2292 = vadd.f32 %v2193, %v2291
      %2293 = vmatmul.bf16.gmra.mxu0 %v850
      %v2294 = vpop.f32.mrf.mxu0
      %v2295 = vadd.f32 %v2196, %v2294
      %v2296 = vpop.f32.mrf.mxu0
      %v2297 = vadd.f32 %v2198, %v2296
      %2298 = vmatmul.bf16.gmra.mxu0 %v852
      %v2299 = vpop.f32.mrf.mxu0
      %v2300 = vadd.f32 %v2201, %v2299
      %v2301 = vpop.f32.mrf.mxu0
      %v2302 = vadd.f32 %v2203, %v2301
      %2303 = vmatmul.bf16.gmra.mxu0 %v854
      %v2304 = vpop.f32.mrf.mxu0
      %v2305 = vadd.f32 %v2206, %v2304
      %v2306 = vpop.f32.mrf.mxu0
      %v2307 = vadd.f32 %v2208, %v2306
      %2308 = vmatmul.bf16.gmra.mxu0 %v856
      %v2309 = vpop.f32.mrf.mxu0
      %v2310 = vadd.f32 %v2211, %v2309
      %v2311 = vpop.f32.mrf.mxu0
      %v2312 = vadd.f32 %v2213, %v2311
      %2313 = vmatmul.bf16.gmra.mxu0 %v858
      %v2314 = vpop.f32.mrf.mxu0
      %v2315 = vadd.f32 %v2216, %v2314
      %v2316 = vpop.f32.mrf.mxu0
      %v2317 = vadd.f32 %v2218, %v2316
      %2318 = vmatmul.bf16.gmra.mxu0 %v860
      %v2319 = vpop.f32.mrf.mxu0
      %v2320 = vadd.f32 %v2221, %v2319
      %v2321 = vpop.f32.mrf.mxu0
      %v2322 = vadd.f32 %v2223, %v2321
      %2323 = vmatmul.bf16.gmra.mxu0 %v862
      %v2324 = vpop.f32.mrf.mxu0
      %v2325 = vadd.f32 %v2226, %v2324
      %v2326 = vpop.f32.mrf.mxu0
      %v2327 = vadd.f32 %v2228, %v2326
      %2328 = vmatmul.bf16.gmra.mxu0 %v864
      %v2329 = vpop.f32.mrf.mxu0
      %v2330 = vadd.f32 %v2231, %v2329
      %v2331 = vpop.f32.mrf.mxu0
      %v2332 = vadd.f32 %v2233, %v2331
      %2333 = vmatmul.bf16.gmra.mxu0 %v866
      %v2334 = vpop.f32.mrf.mxu0
      %v2335 = vadd.f32 %v2236, %v2334
      %v2336 = vpop.f32.mrf.mxu0
      %v2337 = vadd.f32 %v2238, %v2336
      %2338 = vmatmul.bf16.gmra.mxu0 %v868
      %v2339 = vpop.f32.mrf.mxu0
      %v2340 = vadd.f32 %v2241, %v2339
      %v2341 = vpop.f32.mrf.mxu0
      %v2342 = vadd.f32 %v2243, %v2341
      %2343 = vmatmul.bf16.gmra.mxu0 %v870
      %v2344 = vpop.f32.mrf.mxu0
      %v2345 = vadd.f32 %v2246, %v2344
      %v2346 = vpop.f32.mrf.mxu0
      %v2347 = vadd.f32 %v2248, %v2346
      %2348 = vmatmul.bf16.gmra.mxu0 %v872
      %v2349 = vpop.f32.mrf.mxu0
      %v2350 = vadd.f32 %v2251, %v2349
      %v2351 = vpop.f32.mrf.mxu0
      %v2352 = vadd.f32 %v2253, %v2351
      %2353 = vdwg.mxu0
      %2354 = vmatpush.bf16.msra.mxu0 %v1944
      %2355 = vmatpush.bf16.msra.mxu0 %v1943
      %2356 = vmatpush.bf16.msra.mxu0 %v1942
      %2357 = vmatpush.bf16.msra.mxu0 %v1941
      %2358 = vmatpush.bf16.msra.mxu0 %v1940
      %2359 = vmatpush.bf16.msra.mxu0 %v1939
      %2360 = vmatpush.bf16.msra.mxu0 %v1938
      %2361 = vmatpush.bf16.msra.mxu0 %v1937
      %2362 = vmatmul.bf16.gmra.mxu0 %v903
      %v2363 = vpop.f32.mrf.mxu0
      %v2364 = vadd.f32 %v2265, %v2363
      %v2365 = vpop.f32.mrf.mxu0
      %v2366 = vadd.f32 %v2267, %v2365
      %2367 = vmatmul.bf16.gmra.mxu0 %v842
      %v2368 = vpop.f32.mrf.mxu0
      %v2369 = vadd.f32 %v2270, %v2368
      %v2370 = vpop.f32.mrf.mxu0
      %v2371 = vadd.f32 %v2272, %v2370
      %2372 = vmatmul.bf16.gmra.mxu0 %v844
      %v2373 = vpop.f32.mrf.mxu0
      %v2374 = vadd.f32 %v2275, %v2373
      %v2375 = vpop.f32.mrf.mxu0
      %v2376 = vadd.f32 %v2277, %v2375
      %2377 = vmatmul.bf16.gmra.mxu0 %v846
      %v2378 = vpop.f32.mrf.mxu0
      %v2379 = vadd.f32 %v2280, %v2378
      %v2380 = vpop.f32.mrf.mxu0
      %v2381 = vadd.f32 %v2282, %v2380
      %2382 = vmatmul.bf16.gmra.mxu0 %v848
      %v2383 = vpop.f32.mrf.mxu0
      %v2384 = vadd.f32 %v2285, %v2383
      %v2385 = vpop.f32.mrf.mxu0
      %v2386 = vadd.f32 %v2287, %v2385
      %2387 = vmatmul.bf16.gmra.mxu0 %v850
      %v2388 = vpop.f32.mrf.mxu0
      %v2389 = vadd.f32 %v2290, %v2388
      %v2390 = vpop.f32.mrf.mxu0
      %v2391 = vadd.f32 %v2292, %v2390
      %2392 = vmatmul.bf16.gmra.mxu0 %v852
      %v2393 = vpop.f32.mrf.mxu0
      %v2394 = vadd.f32 %v2295, %v2393
      %v2395 = vpop.f32.mrf.mxu0
      %v2396 = vadd.f32 %v2297, %v2395
      %2397 = vmatmul.bf16.gmra.mxu0 %v854
      %v2398 = vpop.f32.mrf.mxu0
      %v2399 = vadd.f32 %v2300, %v2398
      %v2400 = vpop.f32.mrf.mxu0
      %v2401 = vadd.f32 %v2302, %v2400
      %2402 = vmatmul.bf16.gmra.mxu0 %v856
      %v2403 = vpop.f32.mrf.mxu0
      %v2404 = vadd.f32 %v2305, %v2403
      %v2405 = vpop.f32.mrf.mxu0
      %v2406 = vadd.f32 %v2307, %v2405
      %2407 = vmatmul.bf16.gmra.mxu0 %v858
      %v2408 = vpop.f32.mrf.mxu0
      %v2409 = vadd.f32 %v2310, %v2408
      %v2410 = vpop.f32.mrf.mxu0
      %v2411 = vadd.f32 %v2312, %v2410
      %2412 = vmatmul.bf16.gmra.mxu0 %v860
      %v2413 = vpop.f32.mrf.mxu0
      %v2414 = vadd.f32 %v2315, %v2413
      %v2415 = vpop.f32.mrf.mxu0
      %v2416 = vadd.f32 %v2317, %v2415
      %2417 = vmatmul.bf16.gmra.mxu0 %v862
      %v2418 = vpop.f32.mrf.mxu0
      %v2419 = vadd.f32 %v2320, %v2418
      %v2420 = vpop.f32.mrf.mxu0
      %v2421 = vadd.f32 %v2322, %v2420
      %2422 = vmatmul.bf16.gmra.mxu0 %v864
      %v2423 = vpop.f32.mrf.mxu0
      %v2424 = vadd.f32 %v2325, %v2423
      %v2425 = vpop.f32.mrf.mxu0
      %v2426 = vadd.f32 %v2327, %v2425
      %2427 = vmatmul.bf16.gmra.mxu0 %v866
      %v2428 = vpop.f32.mrf.mxu0
      %v2429 = vadd.f32 %v2330, %v2428
      %v2430 = vpop.f32.mrf.mxu0
      %v2431 = vadd.f32 %v2332, %v2430
      %2432 = vmatmul.bf16.gmra.mxu0 %v868
      %v2433 = vpop.f32.mrf.mxu0
      %v2434 = vadd.f32 %v2335, %v2433
      %v2435 = vpop.f32.mrf.mxu0
      %v2436 = vadd.f32 %v2337, %v2435
      %2437 = vmatmul.bf16.gmra.mxu0 %v870
      %v2438 = vpop.f32.mrf.mxu0
      %v2439 = vadd.f32 %v2340, %v2438
      %v2440 = vpop.f32.mrf.mxu0
      %v2441 = vadd.f32 %v2342, %v2440
      %2442 = vmatmul.bf16.gmra.mxu0 %v905
      %v2443 = vpop.f32.mrf.mxu0
      %v2444 = vadd.f32 %v2345, %v2443
      %v2445 = vpop.f32.mrf.mxu0
      %v2446 = vadd.f32 %v2347, %v2445
      %2447 = vmatmul.bf16.gmra.mxu0 %v907
      %v2448 = vpop.f32.mrf.mxu0
      %v2449 = vadd.f32 %v2350, %v2448
      %v2450 = vpop.f32.mrf.mxu0
      %v2451 = vadd.f32 %v2352, %v2450
      %2452 = vdwg.mxu0
      %2453 = vmatpush.bf16.msra.mxu0 %v1952
      %2454 = vmatpush.bf16.msra.mxu0 %v1951
      %2455 = vmatpush.bf16.msra.mxu0 %v1950
      %2456 = vmatpush.bf16.msra.mxu0 %v1949
      %2457 = vmatpush.bf16.msra.mxu0 %v1948
      %2458 = vmatpush.bf16.msra.mxu0 %v1947
      %2459 = vmatpush.bf16.msra.mxu0 %v1946
      %2460 = vmatpush.bf16.msra.mxu0 %v1945
      %2461 = vmatmul.bf16.gmra.mxu0 %v926
      %v2462 = vpop.f32.mrf.mxu0
      %v2463 = vadd.f32 %v2364, %v2462
      %v2464 = vpop.f32.mrf.mxu0
      %v2465 = vadd.f32 %v2366, %v2464
      %2466 = vmatmul.bf16.gmra.mxu0 %v930
      %v2467 = vpop.f32.mrf.mxu0
      %v2468 = vadd.f32 %v2369, %v2467
      %v2469 = vpop.f32.mrf.mxu0
      %v2470 = vadd.f32 %v2371, %v2469
      %2471 = vmatmul.bf16.gmra.mxu0 %v934
      %v2472 = vpop.f32.mrf.mxu0
      %v2473 = vadd.f32 %v2374, %v2472
      %v2474 = vpop.f32.mrf.mxu0
      %v2475 = vadd.f32 %v2376, %v2474
      %2476 = vmatmul.bf16.gmra.mxu0 %v938
      %v2477 = vpop.f32.mrf.mxu0
      %v2478 = vadd.f32 %v2379, %v2477
      %v2479 = vpop.f32.mrf.mxu0
      %v2480 = vadd.f32 %v2381, %v2479
      %2481 = vmatmul.bf16.gmra.mxu0 %v942
      %v2482 = vpop.f32.mrf.mxu0
      %v2483 = vadd.f32 %v2384, %v2482
      %v2484 = vpop.f32.mrf.mxu0
      %v2485 = vadd.f32 %v2386, %v2484
      %2486 = vmatmul.bf16.gmra.mxu0 %v946
      %v2487 = vpop.f32.mrf.mxu0
      %v2488 = vadd.f32 %v2389, %v2487
      %v2489 = vpop.f32.mrf.mxu0
      %v2490 = vadd.f32 %v2391, %v2489
      %2491 = vmatmul.bf16.gmra.mxu0 %v950
      %v2492 = vpop.f32.mrf.mxu0
      %v2493 = vadd.f32 %v2394, %v2492
      %v2494 = vpop.f32.mrf.mxu0
      %v2495 = vadd.f32 %v2396, %v2494
      %2496 = vmatmul.bf16.gmra.mxu0 %v954
      %v2497 = vpop.f32.mrf.mxu0
      %v2498 = vadd.f32 %v2399, %v2497
      %v2499 = vpop.f32.mrf.mxu0
      %v2500 = vadd.f32 %v2401, %v2499
      %2501 = vmatmul.bf16.gmra.mxu0 %v958
      %v2502 = vpop.f32.mrf.mxu0
      %v2503 = vadd.f32 %v2404, %v2502
      %v2504 = vpop.f32.mrf.mxu0
      %v2505 = vadd.f32 %v2406, %v2504
      %2506 = vmatmul.bf16.gmra.mxu0 %v962
      %v2507 = vpop.f32.mrf.mxu0
      %v2508 = vadd.f32 %v2409, %v2507
      %v2509 = vpop.f32.mrf.mxu0
      %v2510 = vadd.f32 %v2411, %v2509
      %2511 = vmatmul.bf16.gmra.mxu0 %v966
      %v2512 = vpop.f32.mrf.mxu0
      %v2513 = vadd.f32 %v2414, %v2512
      %v2514 = vpop.f32.mrf.mxu0
      %v2515 = vadd.f32 %v2416, %v2514
      %2516 = vmatmul.bf16.gmra.mxu0 %v970
      %v2517 = vpop.f32.mrf.mxu0
      %v2518 = vadd.f32 %v2419, %v2517
      %v2519 = vpop.f32.mrf.mxu0
      %v2520 = vadd.f32 %v2421, %v2519
      %2521 = vmatmul.bf16.gmra.mxu0 %v974
      %v2522 = vpop.f32.mrf.mxu0
      %v2523 = vadd.f32 %v2424, %v2522
      %v2524 = vpop.f32.mrf.mxu0
      %v2525 = vadd.f32 %v2426, %v2524
      %2526 = vmatmul.bf16.gmra.mxu0 %v978
      %v2527 = vpop.f32.mrf.mxu0
      %v2528 = vadd.f32 %v2429, %v2527
      %v2529 = vpop.f32.mrf.mxu0
      %v2530 = vadd.f32 %v2431, %v2529
      %2531 = vmatmul.bf16.gmra.mxu0 %v982
      %v2532 = vpop.f32.mrf.mxu0
      %v2533 = vadd.f32 %v2434, %v2532
      %v2534 = vpop.f32.mrf.mxu0
      %v2535 = vadd.f32 %v2436, %v2534
      %2536 = vmatmul.bf16.gmra.mxu0 %v986
      %v2537 = vpop.f32.mrf.mxu0
      %v2538 = vadd.f32 %v2439, %v2537
      %v2539 = vpop.f32.mrf.mxu0
      %v2540 = vadd.f32 %v2441, %v2539
      %2541 = vmatmul.bf16.gmra.mxu0 %v995
      %v2542 = vpop.f32.mrf.mxu0
      %v2543 = vadd.f32 %v2444, %v2542
      %v2544 = vpop.f32.mrf.mxu0
      %v2545 = vadd.f32 %v2446, %v2544
      %2546 = vmatmul.bf16.gmra.mxu0 %v1004
      %v2547 = vpop.f32.mrf.mxu0
      %v2548 = vadd.f32 %v2449, %v2547
      %v2549 = vpop.f32.mrf.mxu0
      %v2550 = vadd.f32 %v2451, %v2549
      %2551 = vdwg.mxu0
      %2552 = vmatpush.bf16.msra.mxu0 %v1960
      %2553 = vmatpush.bf16.msra.mxu0 %v1959
      %2554 = vmatpush.bf16.msra.mxu0 %v1958
      %2555 = vmatpush.bf16.msra.mxu0 %v1957
      %2556 = vmatpush.bf16.msra.mxu0 %v1956
      %2557 = vmatpush.bf16.msra.mxu0 %v1955
      %2558 = vmatpush.bf16.msra.mxu0 %v1954
      %2559 = vmatpush.bf16.msra.mxu0 %v1953
      %2560 = vmatmul.bf16.gmra.mxu0 %v1029
      %v2561 = vpop.f32.mrf.mxu0
      %v2562 = vadd.f32 %v2463, %v2561
      %v2563 = vpop.f32.mrf.mxu0
      %v2564 = vadd.f32 %v2465, %v2563
      %2565 = vmatmul.bf16.gmra.mxu0 %v1031
      %v2566 = vpop.f32.mrf.mxu0
      %v2567 = vadd.f32 %v2468, %v2566
      %v2568 = vpop.f32.mrf.mxu0
      %v2569 = vadd.f32 %v2470, %v2568
      %2570 = vmatmul.bf16.gmra.mxu0 %v1033
      %v2571 = vpop.f32.mrf.mxu0
      %v2572 = vadd.f32 %v2473, %v2571
      %v2573 = vpop.f32.mrf.mxu0
      %v2574 = vadd.f32 %v2475, %v2573
      %2575 = vmatmul.bf16.gmra.mxu0 %v1035
      %v2576 = vpop.f32.mrf.mxu0
      %v2577 = vadd.f32 %v2478, %v2576
      %v2578 = vpop.f32.mrf.mxu0
      %v2579 = vadd.f32 %v2480, %v2578
      %2580 = vmatmul.bf16.gmra.mxu0 %v1037
      %v2581 = vpop.f32.mrf.mxu0
      %v2582 = vadd.f32 %v2483, %v2581
      %v2583 = vpop.f32.mrf.mxu0
      %v2584 = vadd.f32 %v2485, %v2583
      %2585 = vmatmul.bf16.gmra.mxu0 %v1039
      %v2586 = vpop.f32.mrf.mxu0
      %v2587 = vadd.f32 %v2488, %v2586
      %v2588 = vpop.f32.mrf.mxu0
      %v2589 = vadd.f32 %v2490, %v2588
      %2590 = vmatmul.bf16.gmra.mxu0 %v1041
      %v2591 = vpop.f32.mrf.mxu0
      %v2592 = vadd.f32 %v2493, %v2591
      %v2593 = vpop.f32.mrf.mxu0
      %v2594 = vadd.f32 %v2495, %v2593
      %2595 = vmatmul.bf16.gmra.mxu0 %v1043
      %v2596 = vpop.f32.mrf.mxu0
      %v2597 = vadd.f32 %v2498, %v2596
      %v2598 = vpop.f32.mrf.mxu0
      %v2599 = vadd.f32 %v2500, %v2598
      %2600 = vmatmul.bf16.gmra.mxu0 %v1045
      %v2601 = vpop.f32.mrf.mxu0
      %v2602 = vadd.f32 %v2503, %v2601
      %v2603 = vpop.f32.mrf.mxu0
      %v2604 = vadd.f32 %v2505, %v2603
      %2605 = vmatmul.bf16.gmra.mxu0 %v1047
      %v2606 = vpop.f32.mrf.mxu0
      %v2607 = vadd.f32 %v2508, %v2606
      %v2608 = vpop.f32.mrf.mxu0
      %v2609 = vadd.f32 %v2510, %v2608
      %2610 = vmatmul.bf16.gmra.mxu0 %v1049
      %v2611 = vpop.f32.mrf.mxu0
      %v2612 = vadd.f32 %v2513, %v2611
      %v2613 = vpop.f32.mrf.mxu0
      %v2614 = vadd.f32 %v2515, %v2613
      %2615 = vmatmul.bf16.gmra.mxu0 %v1051
      %v2616 = vpop.f32.mrf.mxu0
      %v2617 = vadd.f32 %v2518, %v2616
      %v2618 = vpop.f32.mrf.mxu0
      %v2619 = vadd.f32 %v2520, %v2618
      %2620 = vmatmul.bf16.gmra.mxu0 %v1053
      %v2621 = vpop.f32.mrf.mxu0
      %v2622 = vadd.f32 %v2523, %v2621
      %v2623 = vpop.f32.mrf.mxu0
      %v2624 = vadd.f32 %v2525, %v2623
      %2625 = vmatmul.bf16.gmra.mxu0 %v1055
      %v2626 = vpop.f32.mrf.mxu0
      %v2627 = vadd.f32 %v2528, %v2626
      %v2628 = vpop.f32.mrf.mxu0
      %v2629 = vadd.f32 %v2530, %v2628
      %2630 = vmatmul.bf16.gmra.mxu0 %v1057
      %v2631 = vpop.f32.mrf.mxu0
      %v2632 = vadd.f32 %v2533, %v2631
      %v2633 = vpop.f32.mrf.mxu0
      %v2634 = vadd.f32 %v2535, %v2633
      %2635 = vmatmul.bf16.gmra.mxu0 %v1059
      %v2636 = vpop.f32.mrf.mxu0
      %v2637 = vadd.f32 %v2538, %v2636
      %v2638 = vpop.f32.mrf.mxu0
      %v2639 = vadd.f32 %v2540, %v2638
      %2640 = vmatmul.bf16.gmra.mxu0 %v1061
      %v2641 = vpop.f32.mrf.mxu0
      %v2642 = vadd.f32 %v2543, %v2641
      %v2643 = vpop.f32.mrf.mxu0
      %v2644 = vadd.f32 %v2545, %v2643
      %2645 = vmatmul.bf16.gmra.mxu0 %v1063
      %v2646 = vpop.f32.mrf.mxu0
      %v2647 = vadd.f32 %v2548, %v2646
      %v2648 = vpop.f32.mrf.mxu0
      %v2649 = vadd.f32 %v2550, %v2648
      %2650 = vdwg.mxu0
      %2651 = vmatpush.bf16.msra.mxu0 %v1968
      %2652 = vmatpush.bf16.msra.mxu0 %v1967
      %2653 = vmatpush.bf16.msra.mxu0 %v1966
      %2654 = vmatpush.bf16.msra.mxu0 %v1965
      %2655 = vmatpush.bf16.msra.mxu0 %v1964
      %2656 = vmatpush.bf16.msra.mxu0 %v1963
      %2657 = vmatpush.bf16.msra.mxu0 %v1962
      %2658 = vmatpush.bf16.msra.mxu0 %v1961
      %2659 = vmatmul.bf16.gmra.mxu0 %v1177
      %v2660 = vpop.f32.mrf.mxu0
      %v2661 = vadd.f32 %v2562, %v2660
      %v2662 = vpop.f32.mrf.mxu0
      %v2663 = vadd.f32 %v2564, %v2662
      %2664 = vmatmul.bf16.gmra.mxu0 %v1179
      %v2665 = vpop.f32.mrf.mxu0
      %v2666 = vadd.f32 %v2567, %v2665
      %v2667 = vpop.f32.mrf.mxu0
      %v2668 = vadd.f32 %v2569, %v2667
      %2669 = vmatmul.bf16.gmra.mxu0 %v1181
      %v2670 = vpop.f32.mrf.mxu0
      %v2671 = vadd.f32 %v2572, %v2670
      %v2672 = vpop.f32.mrf.mxu0
      %v2673 = vadd.f32 %v2574, %v2672
      %2674 = vmatmul.bf16.gmra.mxu0 %v1183
      %v2675 = vpop.f32.mrf.mxu0
      %v2676 = vadd.f32 %v2577, %v2675
      %v2677 = vpop.f32.mrf.mxu0
      %v2678 = vadd.f32 %v2579, %v2677
      %2679 = vmatmul.bf16.gmra.mxu0 %v1185
      %v2680 = vpop.f32.mrf.mxu0
      %v2681 = vadd.f32 %v2582, %v2680
      %v2682 = vpop.f32.mrf.mxu0
      %v2683 = vadd.f32 %v2584, %v2682
      %2684 = vmatmul.bf16.gmra.mxu0 %v1187
      %v2685 = vpop.f32.mrf.mxu0
      %v2686 = vadd.f32 %v2587, %v2685
      %v2687 = vpop.f32.mrf.mxu0
      %v2688 = vadd.f32 %v2589, %v2687
      %2689 = vmatmul.bf16.gmra.mxu0 %v1189
      %v2690 = vpop.f32.mrf.mxu0
      %v2691 = vadd.f32 %v2592, %v2690
      %v2692 = vpop.f32.mrf.mxu0
      %v2693 = vadd.f32 %v2594, %v2692
      %2694 = vmatmul.bf16.gmra.mxu0 %v1191
      %v2695 = vpop.f32.mrf.mxu0
      %v2696 = vadd.f32 %v2597, %v2695
      %v2697 = vpop.f32.mrf.mxu0
      %v2698 = vadd.f32 %v2599, %v2697
      %2699 = vmatmul.bf16.gmra.mxu0 %v1193
      %v2700 = vpop.f32.mrf.mxu0
      %v2701 = vadd.f32 %v2602, %v2700
      %v2702 = vpop.f32.mrf.mxu0
      %v2703 = vadd.f32 %v2604, %v2702
      %2704 = vmatmul.bf16.gmra.mxu0 %v1195
      %v2705 = vpop.f32.mrf.mxu0
      %v2706 = vadd.f32 %v2607, %v2705
      %v2707 = vpop.f32.mrf.mxu0
      %v2708 = vadd.f32 %v2609, %v2707
      %2709 = vmatmul.bf16.gmra.mxu0 %v1197
      %v2710 = vpop.f32.mrf.mxu0
      %v2711 = vadd.f32 %v2612, %v2710
      %v2712 = vpop.f32.mrf.mxu0
      %v2713 = vadd.f32 %v2614, %v2712
      %2714 = vmatmul.bf16.gmra.mxu0 %v1199
      %v2715 = vpop.f32.mrf.mxu0
      %v2716 = vadd.f32 %v2617, %v2715
      %v2717 = vpop.f32.mrf.mxu0
      %v2718 = vadd.f32 %v2619, %v2717
      %2719 = vmatmul.bf16.gmra.mxu0 %v1201
      %v2720 = vpop.f32.mrf.mxu0
      %v2721 = vadd.f32 %v2622, %v2720
      %v2722 = vpop.f32.mrf.mxu0
      %v2723 = vadd.f32 %v2624, %v2722
      %2724 = vmatmul.bf16.gmra.mxu0 %v1203
      %v2725 = vpop.f32.mrf.mxu0
      %v2726 = vadd.f32 %v2627, %v2725
      %v2727 = vpop.f32.mrf.mxu0
      %v2728 = vadd.f32 %v2629, %v2727
      %2729 = vmatmul.bf16.gmra.mxu0 %v1205
      %v2730 = vpop.f32.mrf.mxu0
      %v2731 = vadd.f32 %v2632, %v2730
      %v2732 = vpop.f32.mrf.mxu0
      %v2733 = vadd.f32 %v2634, %v2732
      %2734 = vmatmul.bf16.gmra.mxu0 %v1207
      %v2735 = vpop.f32.mrf.mxu0
      %v2736 = vadd.f32 %v2637, %v2735
      %v2737 = vpop.f32.mrf.mxu0
      %v2738 = vadd.f32 %v2639, %v2737
      %2739 = vmatmul.bf16.gmra.mxu0 %v1209
      %v2740 = vpop.f32.mrf.mxu0
      %v2741 = vadd.f32 %v2642, %v2740
      %v2742 = vpop.f32.mrf.mxu0
      %v2743 = vadd.f32 %v2644, %v2742
      %2744 = vmatmul.bf16.gmra.mxu0 %v1211
      %v2745 = vpop.f32.mrf.mxu0
      %v2746 = vadd.f32 %v2647, %v2745
      %v2747 = vpop.f32.mrf.mxu0
      %v2748 = vadd.f32 %v2649, %v2747
      %2749 = vdwg.mxu0
      %2750 = vmatpush.bf16.msra.mxu0 %v1976
      %2751 = vmatpush.bf16.msra.mxu0 %v1975
      %2752 = vmatpush.bf16.msra.mxu0 %v1974
      %2753 = vmatpush.bf16.msra.mxu0 %v1973
      %2754 = vmatpush.bf16.msra.mxu0 %v1972
      %2755 = vmatpush.bf16.msra.mxu0 %v1971
      %2756 = vmatpush.bf16.msra.mxu0 %v1970
      %2757 = vmatpush.bf16.msra.mxu0 %v1969
      %2758 = vmatmul.bf16.gmra.mxu0 %v1250
      %v2759 = vpop.f32.mrf.mxu0
      %v2760 = vadd.f32 %v2661, %v2759
      %v2761 = vpop.f32.mrf.mxu0
      %v2762 = vadd.f32 %v2663, %v2761
      %2763 = vmatmul.bf16.gmra.mxu0 %v1259
      %v2764 = vpop.f32.mrf.mxu0
      %v2765 = vadd.f32 %v2666, %v2764
      %v2766 = vpop.f32.mrf.mxu0
      %v2767 = vadd.f32 %v2668, %v2766
      %2768 = vmatmul.bf16.gmra.mxu0 %v1268
      %v2769 = vpop.f32.mrf.mxu0
      %v2770 = vadd.f32 %v2671, %v2769
      %v2771 = vpop.f32.mrf.mxu0
      %v2772 = vadd.f32 %v2673, %v2771
      %2773 = vmatmul.bf16.gmra.mxu0 %v1277
      %v2774 = vpop.f32.mrf.mxu0
      %v2775 = vadd.f32 %v2676, %v2774
      %v2776 = vpop.f32.mrf.mxu0
      %v2777 = vadd.f32 %v2678, %v2776
      %2778 = vmatmul.bf16.gmra.mxu0 %v1286
      %v2779 = vpop.f32.mrf.mxu0
      %v2780 = vadd.f32 %v2681, %v2779
      %v2781 = vpop.f32.mrf.mxu0
      %v2782 = vadd.f32 %v2683, %v2781
      %2783 = vmatmul.bf16.gmra.mxu0 %v1295
      %v2784 = vpop.f32.mrf.mxu0
      %v2785 = vadd.f32 %v2686, %v2784
      %v2786 = vpop.f32.mrf.mxu0
      %v2787 = vadd.f32 %v2688, %v2786
      %2788 = vmatmul.bf16.gmra.mxu0 %v1304
      %v2789 = vpop.f32.mrf.mxu0
      %v2790 = vadd.f32 %v2691, %v2789
      %v2791 = vpop.f32.mrf.mxu0
      %v2792 = vadd.f32 %v2693, %v2791
      %2793 = vmatmul.bf16.gmra.mxu0 %v1313
      %v2794 = vpop.f32.mrf.mxu0
      %v2795 = vadd.f32 %v2696, %v2794
      %v2796 = vpop.f32.mrf.mxu0
      %v2797 = vadd.f32 %v2698, %v2796
      %2798 = vmatmul.bf16.gmra.mxu0 %v1322
      %v2799 = vpop.f32.mrf.mxu0
      %v2800 = vadd.f32 %v2701, %v2799
      %v2801 = vpop.f32.mrf.mxu0
      %v2802 = vadd.f32 %v2703, %v2801
      %2803 = vmatmul.bf16.gmra.mxu0 %v1331
      %v2804 = vpop.f32.mrf.mxu0
      %v2805 = vadd.f32 %v2706, %v2804
      %v2806 = vpop.f32.mrf.mxu0
      %v2807 = vadd.f32 %v2708, %v2806
      %2808 = vmatmul.bf16.gmra.mxu0 %v1340
      %v2809 = vpop.f32.mrf.mxu0
      %v2810 = vadd.f32 %v2711, %v2809
      %v2811 = vpop.f32.mrf.mxu0
      %v2812 = vadd.f32 %v2713, %v2811
      %2813 = vmatmul.bf16.gmra.mxu0 %v1349
      %v2814 = vpop.f32.mrf.mxu0
      %v2815 = vadd.f32 %v2716, %v2814
      %v2816 = vpop.f32.mrf.mxu0
      %v2817 = vadd.f32 %v2718, %v2816
      %2818 = vmatmul.bf16.gmra.mxu0 %v1358
      %v2819 = vpop.f32.mrf.mxu0
      %v2820 = vadd.f32 %v2721, %v2819
      %v2821 = vpop.f32.mrf.mxu0
      %v2822 = vadd.f32 %v2723, %v2821
      %2823 = vmatmul.bf16.gmra.mxu0 %v1367
      %v2824 = vpop.f32.mrf.mxu0
      %v2825 = vadd.f32 %v2726, %v2824
      %v2826 = vpop.f32.mrf.mxu0
      %v2827 = vadd.f32 %v2728, %v2826
      %2828 = vmatmul.bf16.gmra.mxu0 %v1376
      %v2829 = vpop.f32.mrf.mxu0
      %v2830 = vadd.f32 %v2731, %v2829
      %v2831 = vpop.f32.mrf.mxu0
      %v2832 = vadd.f32 %v2733, %v2831
      %2833 = vmatmul.bf16.gmra.mxu0 %v1385
      %v2834 = vpop.f32.mrf.mxu0
      %v2835 = vadd.f32 %v2736, %v2834
      %v2836 = vpop.f32.mrf.mxu0
      %v2837 = vadd.f32 %v2738, %v2836
      %2838 = vmatmul.bf16.gmra.mxu0 %v1394
      %v2839 = vpop.f32.mrf.mxu0
      %v2840 = vadd.f32 %v2741, %v2839
      %v2841 = vpop.f32.mrf.mxu0
      %v2842 = vadd.f32 %v2743, %v2841
      %2843 = vmatmul.bf16.gmra.mxu0 %v1403
      %v2844 = vpop.f32.mrf.mxu0
      %v2845 = vadd.f32 %v2746, %v2844
      %v2846 = vpop.f32.mrf.mxu0
      %v2847 = vadd.f32 %v2748, %v2846
      %2848 = vdwg.mxu0
      %2849 = vmatpush.bf16.msra.mxu0 %v1984
      %2850 = vmatpush.bf16.msra.mxu0 %v1983
      %2851 = vmatpush.bf16.msra.mxu0 %v1982
      %2852 = vmatpush.bf16.msra.mxu0 %v1981
      %2853 = vmatpush.bf16.msra.mxu0 %v1980
      %2854 = vmatpush.bf16.msra.mxu0 %v1979
      %2855 = vmatpush.bf16.msra.mxu0 %v1978
      %2856 = vmatpush.bf16.msra.mxu0 %v1977
      %2857 = vmatmul.bf16.gmra.mxu0 %v1428
      %v2858 = vpop.f32.mrf.mxu0
      %v2859 = vadd.f32 %v2760, %v2858
      %v2860 = vpop.f32.mrf.mxu0
      %v2861 = vadd.f32 %v2762, %v2860
      %2862 = vmatmul.bf16.gmra.mxu0 %v1430
      %v2863 = vpop.f32.mrf.mxu0
      %v2864 = vadd.f32 %v2765, %v2863
      %v2865 = vpop.f32.mrf.mxu0
      %v2866 = vadd.f32 %v2767, %v2865
      %2867 = vmatmul.bf16.gmra.mxu0 %v1432
      %v2868 = vpop.f32.mrf.mxu0
      %v2869 = vadd.f32 %v2770, %v2868
      %v2870 = vpop.f32.mrf.mxu0
      %v2871 = vadd.f32 %v2772, %v2870
      %2872 = vmatmul.bf16.gmra.mxu0 %v1434
      %v2873 = vpop.f32.mrf.mxu0
      %v2874 = vadd.f32 %v2775, %v2873
      %v2875 = vpop.f32.mrf.mxu0
      %v2876 = vadd.f32 %v2777, %v2875
      %2877 = vmatmul.bf16.gmra.mxu0 %v1436
      %v2878 = vpop.f32.mrf.mxu0
      %v2879 = vadd.f32 %v2780, %v2878
      %v2880 = vpop.f32.mrf.mxu0
      %v2881 = vadd.f32 %v2782, %v2880
      %2882 = vmatmul.bf16.gmra.mxu0 %v1438
      %v2883 = vpop.f32.mrf.mxu0
      %v2884 = vadd.f32 %v2785, %v2883
      %v2885 = vpop.f32.mrf.mxu0
      %v2886 = vadd.f32 %v2787, %v2885
      %2887 = vmatmul.bf16.gmra.mxu0 %v1440
      %v2888 = vpop.f32.mrf.mxu0
      %v2889 = vadd.f32 %v2790, %v2888
      %v2890 = vpop.f32.mrf.mxu0
      %v2891 = vadd.f32 %v2792, %v2890
      %2892 = vmatmul.bf16.gmra.mxu0 %v1442
      %v2893 = vpop.f32.mrf.mxu0
      %v2894 = vadd.f32 %v2795, %v2893
      %v2895 = vpop.f32.mrf.mxu0
      %v2896 = vadd.f32 %v2797, %v2895
      %2897 = vmatmul.bf16.gmra.mxu0 %v1444
      %v2898 = vpop.f32.mrf.mxu0
      %v2899 = vadd.f32 %v2800, %v2898
      %v2900 = vpop.f32.mrf.mxu0
      %v2901 = vadd.f32 %v2802, %v2900
      %2902 = vmatmul.bf16.gmra.mxu0 %v1446
      %v2903 = vpop.f32.mrf.mxu0
      %v2904 = vadd.f32 %v2805, %v2903
      %v2905 = vpop.f32.mrf.mxu0
      %v2906 = vadd.f32 %v2807, %v2905
      %2907 = vmatmul.bf16.gmra.mxu0 %v1448
      %v2908 = vpop.f32.mrf.mxu0
      %v2909 = vadd.f32 %v2810, %v2908
      %v2910 = vpop.f32.mrf.mxu0
      %v2911 = vadd.f32 %v2812, %v2910
      %2912 = vmatmul.bf16.gmra.mxu0 %v1450
      %v2913 = vpop.f32.mrf.mxu0
      %v2914 = vadd.f32 %v2815, %v2913
      %v2915 = vpop.f32.mrf.mxu0
      %v2916 = vadd.f32 %v2817, %v2915
      %2917 = vmatmul.bf16.gmra.mxu0 %v1452
      %v2918 = vpop.f32.mrf.mxu0
      %v2919 = vadd.f32 %v2820, %v2918
      %v2920 = vpop.f32.mrf.mxu0
      %v2921 = vadd.f32 %v2822, %v2920
      %2922 = vmatmul.bf16.gmra.mxu0 %v1454
      %v2923 = vpop.f32.mrf.mxu0
      %v2924 = vadd.f32 %v2825, %v2923
      %v2925 = vpop.f32.mrf.mxu0
      %v2926 = vadd.f32 %v2827, %v2925
      %2927 = vmatmul.bf16.gmra.mxu0 %v1456
      %v2928 = vpop.f32.mrf.mxu0
      %v2929 = vadd.f32 %v2830, %v2928
      %v2930 = vpop.f32.mrf.mxu0
      %v2931 = vadd.f32 %v2832, %v2930
      %2932 = vmatmul.bf16.gmra.mxu0 %v1458
      %v2933 = vpop.f32.mrf.mxu0
      %v2934 = vadd.f32 %v2835, %v2933
      %v2935 = vpop.f32.mrf.mxu0
      %v2936 = vadd.f32 %v2837, %v2935
      %2937 = vmatmul.bf16.gmra.mxu0 %v1460
      %v2938 = vpop.f32.mrf.mxu0
      %v2939 = vadd.f32 %v2840, %v2938
      %v2940 = vpop.f32.mrf.mxu0
      %v2941 = vadd.f32 %v2842, %v2940
      %2942 = vmatmul.bf16.gmra.mxu0 %v1462
      %v2943 = vpop.f32.mrf.mxu0
      %v2944 = vadd.f32 %v2845, %v2943
      %v2945 = vpop.f32.mrf.mxu0
      %v2946 = vadd.f32 %v2847, %v2945
      %2947 = vdwg.mxu0
      %v2948 = vld [vmem:[%s433] sm:$0x1]
      %v2950 = vperm.slane %v2948, 0
      %v2952 = vmul.f32 %v2859, %v2950
      %v2953 = vmul.f32 %v2861, %v2950
      %v2954 = vmul.f32 %v2864, %v2950
      %v2955 = vmul.f32 %v2866, %v2950
      %v2956 = vmul.f32 %v2869, %v2950
      %v2957 = vmul.f32 %v2871, %v2950
      %v2958 = vmul.f32 %v2874, %v2950
      %v2959 = vmul.f32 %v2876, %v2950
      %v2960 = vmul.f32 %v2879, %v2950
      %v2961 = vmul.f32 %v2881, %v2950
      %v2962 = vmul.f32 %v2884, %v2950
      %v2963 = vmul.f32 %v2886, %v2950
      %v2964 = vmul.f32 %v2889, %v2950
      %v2965 = vmul.f32 %v2891, %v2950
      %v2966 = vmul.f32 %v2894, %v2950
      %v2967 = vmul.f32 %v2896, %v2950
      %v2968 = vmul.f32 %v2899, %v2950
      %v2969 = vmul.f32 %v2901, %v2950
      %v2970 = vmul.f32 %v2904, %v2950
      %v2971 = vmul.f32 %v2906, %v2950
      %v2972 = vmul.f32 %v2909, %v2950
      %v2973 = vmul.f32 %v2911, %v2950
      %v2974 = vmul.f32 %v2914, %v2950
      %v2975 = vmul.f32 %v2916, %v2950
      %v2976 = vmul.f32 %v2919, %v2950
      %v2977 = vmul.f32 %v2921, %v2950
      %v2978 = vmul.f32 %v2924, %v2950
      %v2979 = vmul.f32 %v2926, %v2950
      %v2980 = vmul.f32 %v2929, %v2950
      %v2981 = vmul.f32 %v2931, %v2950
      %v2982 = vmul.f32 %v2934, %v2950
      %v2983 = vmul.f32 %v2936, %v2950
      %v2984 = vmul.f32 %v2939, %v2950
      %v2985 = vmul.f32 %v2941, %v2950
      %v2986 = vmul.f32 %v2944, %v2950
      %v2987 = vmul.f32 %v2946, %v2950
      %v2988 = vld [vmem:[%s436] sm:$0x1]
      %v2990 = vperm.slane %v2988, 0
      %v2992 = vadd.f32 %v2952, %v2990
      %v2993 = vadd.f32 %v2953, %v2990
      %v2994 = vadd.f32 %v2954, %v2990
      %v2995 = vadd.f32 %v2955, %v2990
      %v2996 = vadd.f32 %v2956, %v2990
      %v2997 = vadd.f32 %v2957, %v2990
      %v2998 = vadd.f32 %v2958, %v2990
      %v2999 = vadd.f32 %v2959, %v2990
      %v3000 = vadd.f32 %v2960, %v2990
      %v3001 = vadd.f32 %v2961, %v2990
      %v3002 = vadd.f32 %v2962, %v2990
      %v3003 = vadd.f32 %v2963, %v2990
      %v3004 = vadd.f32 %v2964, %v2990
      %v3005 = vadd.f32 %v2965, %v2990
      %v3006 = vadd.f32 %v2966, %v2990
      %v3007 = vadd.f32 %v2967, %v2990
      %v3008 = vadd.f32 %v2968, %v2990
      %v3009 = vadd.f32 %v2969, %v2990
      %v3010 = vadd.f32 %v2970, %v2990
      %v3011 = vadd.f32 %v2971, %v2990
      %v3012 = vadd.f32 %v2972, %v2990
      %v3013 = vadd.f32 %v2973, %v2990
      %v3014 = vadd.f32 %v2974, %v2990
      %v3015 = vadd.f32 %v2975, %v2990
      %v3016 = vadd.f32 %v2976, %v2990
      %v3017 = vadd.f32 %v2977, %v2990
      %v3018 = vadd.f32 %v2978, %v2990
      %v3019 = vadd.f32 %v2979, %v2990
      %v3020 = vadd.f32 %v2980, %v2990
      %v3021 = vadd.f32 %v2981, %v2990
      %v3022 = vadd.f32 %v2982, %v2990
      %v3023 = vadd.f32 %v2983, %v2990
      %v3024 = vadd.f32 %v2984, %v2990
      %v3025 = vadd.f32 %v2985, %v2990
      %v3026 = vadd.f32 %v2986, %v2990
      %v3027 = vadd.f32 %v2987, %v2990
      %v3028 = vld [vmem:[%s445] sm:$0xf]
      %v3029 = vld [vmem:[%s445 + $0x4] sm:$0xf]
      %v3030 = vld [vmem:[%s445 + $0x8] sm:$0xf]
      %v3031 = vld [vmem:[%s445 + $0xc] sm:$0xf]
      %v3032 = vld [vmem:[%s445 + $0x10] sm:$0xf]
      %v3033 = vld [vmem:[%s445 + $0x14] sm:$0xf]
      %v3034 = vld [vmem:[%s445 + $0x18] sm:$0xf]
      %v3035 = vld [vmem:[%s445 + $0x1c] sm:$0xf]
      %v3036 = vld [vmem:[%s445 + $0x20] sm:$0xf]
      %v3037 = vld [vmem:[%s445 + $0x24] sm:$0xf]
      %v3038 = vld [vmem:[%s445 + $0x28] sm:$0xf]
      %v3039 = vld [vmem:[%s445 + $0x2c] sm:$0xf]
      %v3040 = vld [vmem:[%s445 + $0x30] sm:$0xf]
      %v3041 = vld [vmem:[%s445 + $0x34] sm:$0xf]
      %v3042 = vld [vmem:[%s445 + $0x38] sm:$0xf]
      %v3043 = vld [vmem:[%s445 + $0x3c] sm:$0xf]
      %v3044 = vld [vmem:[%s445 + $0x40] sm:$0xf]
      %v3045 = vld [vmem:[%s445 + $0x44] sm:$0xf]
      %v3046 = vld [vmem:[%s445 + $0x48] sm:$0xf]
      %v3047 = vld [vmem:[%s445 + $0x4c] sm:$0xf]
      %v3048 = vld [vmem:[%s445 + $0x50] sm:$0xf]
      %v3049 = vld [vmem:[%s445 + $0x54] sm:$0xf]
      %v3050 = vld [vmem:[%s445 + $0x58] sm:$0xf]
      %v3051 = vld [vmem:[%s445 + $0x5c] sm:$0xf]
      %v3052 = vld [vmem:[%s445 + $0x60] sm:$0xf]
      %v3053 = vld [vmem:[%s445 + $0x64] sm:$0xf]
      %v3054 = vld [vmem:[%s445 + $0x68] sm:$0xf]
      %v3055 = vld [vmem:[%s445 + $0x6c] sm:$0xf]
      %v3056 = vld [vmem:[%s445 + $0x70] sm:$0xf]
      %v3057 = vld [vmem:[%s445 + $0x74] sm:$0xf]
      %v3058 = vld [vmem:[%s445 + $0x78] sm:$0xf]
      %v3059 = vld [vmem:[%s445 + $0x7c] sm:$0xf]
      %v3060 = vld [vmem:[%s445 + $0x80] sm:$0xf]
      %v3061 = vld [vmem:[%s445 + $0x84] sm:$0xf]
      %v3062 = vld [vmem:[%s445 + $0x88] sm:$0xf]
      %v3063 = vld [vmem:[%s445 + $0x8c] sm:$0xf]
      %v3064 = vld [vmem:[%s450] sm:$0x3]
      %v3101 = vunpack.c.l.b16 %v3028
      %v3102 = vunpack.c.l.b16 %v3029
      %v3103 = vunpack.c.l.b16 %v3030
      %v3104 = vunpack.c.l.b16 %v3031
      %v3105 = vunpack.c.l.b16 %v3032
      %v3106 = vunpack.c.l.b16 %v3033
      %v3107 = vunpack.c.l.b16 %v3034
      %v3108 = vunpack.c.l.b16 %v3035
      %v3109 = vunpack.c.l.b16 %v3036
      %v3110 = vunpack.c.l.b16 %v3037
      %v3111 = vunpack.c.l.b16 %v3038
      %v3112 = vunpack.c.l.b16 %v3039
      %v3113 = vunpack.c.l.b16 %v3040
      %v3114 = vunpack.c.l.b16 %v3041
      %v3115 = vunpack.c.l.b16 %v3042
      %v3116 = vunpack.c.l.b16 %v3043
      %v3117 = vunpack.c.l.b16 %v3044
      %v3118 = vunpack.c.l.b16 %v3045
      %v3119 = vunpack.c.l.b16 %v3046
      %v3120 = vunpack.c.l.b16 %v3047
      %v3121 = vunpack.c.l.b16 %v3048
      %v3122 = vunpack.c.l.b16 %v3049
      %v3123 = vunpack.c.l.b16 %v3050
      %v3124 = vunpack.c.l.b16 %v3051
      %v3125 = vunpack.c.l.b16 %v3052
      %v3126 = vunpack.c.l.b16 %v3053
      %v3127 = vunpack.c.l.b16 %v3054
      %v3128 = vunpack.c.l.b16 %v3055
      %v3129 = vunpack.c.l.b16 %v3056
      %v3130 = vunpack.c.l.b16 %v3057
      %v3131 = vunpack.c.l.b16 %v3058
      %v3132 = vunpack.c.l.b16 %v3059
      %v3133 = vunpack.c.l.b16 %v3060
      %v3134 = vunpack.c.l.b16 %v3061
      %v3135 = vunpack.c.l.b16 %v3062
      %v3136 = vunpack.c.l.b16 %v3063
      %v3137 = vpack.c.b16 %v3102, %v3101
      %v3138 = vpack.c.b16 %v3104, %v3103
      %v3139 = vpack.c.b16 %v3106, %v3105
      %v3140 = vpack.c.b16 %v3108, %v3107
      %v3141 = vpack.c.b16 %v3110, %v3109
      %v3142 = vpack.c.b16 %v3112, %v3111
      %v3143 = vpack.c.b16 %v3114, %v3113
      %v3144 = vpack.c.b16 %v3116, %v3115
      %v3145 = vpack.c.b16 %v3118, %v3117
      %v3146 = vpack.c.b16 %v3120, %v3119
      %v3147 = vpack.c.b16 %v3122, %v3121
      %v3148 = vpack.c.b16 %v3124, %v3123
      %v3149 = vpack.c.b16 %v3126, %v3125
      %v3150 = vpack.c.b16 %v3128, %v3127
      %v3151 = vpack.c.b16 %v3130, %v3129
      %v3152 = vpack.c.b16 %v3132, %v3131
      %v3153 = vpack.c.b16 %v3134, %v3133
      %v3154 = vpack.c.b16 %v3136, %v3135
      %vm3155 = vcmask 31744
      %v3157 = vsel %vm3155, %v3137, 0
      %v3160 = vsel %vm3155, %v3138, 0
      %v3163 = vsel %vm3155, %v3139, 0
      %v3166 = vsel %vm3155, %v3140, 0
      %v3169 = vsel %vm3155, %v3141, 0
      %v3172 = vsel %vm3155, %v3142, 0
      %v3175 = vsel %vm3155, %v3143, 0
      %v3178 = vsel %vm3155, %v3144, 0
      %v3181 = vsel %vm3155, %v3145, 0
      %v3184 = vsel %vm3155, %v3146, 0
      %v3187 = vsel %vm3155, %v3147, 0
      %v3190 = vsel %vm3155, %v3148, 0
      %v3193 = vsel %vm3155, %v3149, 0
      %v3196 = vsel %vm3155, %v3150, 0
      %v3199 = vsel %vm3155, %v3151, 0
      %v3202 = vsel %vm3155, %v3152, 0
      %v3205 = vsel %vm3155, %v3153, 0
      %v3208 = vsel %vm3155, %v3154, 0
      %vm3210 = vcmask 1041408
      %v3212 = vsel %vm3210, %v3064, 0
      %3214 = vmatpush.bf16.msra.mxu0 0
      %3215 = vmatpush.bf16.msra.mxu0 0
      %3216 = vmatpush.bf16.msra.mxu0 0
      %3217 = vmatpush.bf16.msra.mxu0 0
      %3218 = vmatpush.bf16.msra.mxu0 0
      %3219 = vmatpush.bf16.msra.mxu0 0
      %3220 = vmatpush.bf16.msra.mxu0 0
      %3221 = vmatpush.bf16.msra.mxu0 %v3212
      %3222 = vmatmul.bf16.gmra.mxu0 %v3157
      %v3223 = vpop.f32.mrf.mxu0
      %v3224 = vadd.f32 0.0, %v3223
      %v3225 = vpop.f32.mrf.mxu0
      %v3226 = vadd.f32 0.0, %v3225
      %3227 = vmatmul.bf16.gmra.mxu0 %v3160
      %v3228 = vpop.f32.mrf.mxu0
      %v3229 = vadd.f32 0.0, %v3228
      %v3230 = vpop.f32.mrf.mxu0
      %v3231 = vadd.f32 0.0, %v3230
      %3232 = vmatmul.bf16.gmra.mxu0 %v3163
      %v3233 = vpop.f32.mrf.mxu0
      %v3234 = vadd.f32 0.0, %v3233
      %v3235 = vpop.f32.mrf.mxu0
      %v3236 = vadd.f32 0.0, %v3235
      %3237 = vmatmul.bf16.gmra.mxu0 %v3166
      %v3238 = vpop.f32.mrf.mxu0
      %v3239 = vadd.f32 0.0, %v3238
      %v3240 = vpop.f32.mrf.mxu0
      %v3241 = vadd.f32 0.0, %v3240
      %3242 = vmatmul.bf16.gmra.mxu0 %v3169
      %v3243 = vpop.f32.mrf.mxu0
      %v3244 = vadd.f32 0.0, %v3243
      %v3245 = vpop.f32.mrf.mxu0
      %v3246 = vadd.f32 0.0, %v3245
      %3247 = vmatmul.bf16.gmra.mxu0 %v3172
      %v3248 = vpop.f32.mrf.mxu0
      %v3249 = vadd.f32 0.0, %v3248
      %v3250 = vpop.f32.mrf.mxu0
      %v3251 = vadd.f32 0.0, %v3250
      %3252 = vmatmul.bf16.gmra.mxu0 %v3175
      %v3253 = vpop.f32.mrf.mxu0
      %v3254 = vadd.f32 0.0, %v3253
      %v3255 = vpop.f32.mrf.mxu0
      %v3256 = vadd.f32 0.0, %v3255
      %3257 = vmatmul.bf16.gmra.mxu0 %v3178
      %v3258 = vpop.f32.mrf.mxu0
      %v3259 = vadd.f32 0.0, %v3258
      %v3260 = vpop.f32.mrf.mxu0
      %v3261 = vadd.f32 0.0, %v3260
      %3262 = vmatmul.bf16.gmra.mxu0 %v3181
      %v3263 = vpop.f32.mrf.mxu0
      %v3264 = vadd.f32 0.0, %v3263
      %v3265 = vpop.f32.mrf.mxu0
      %v3266 = vadd.f32 0.0, %v3265
      %3267 = vmatmul.bf16.gmra.mxu0 %v3184
      %v3268 = vpop.f32.mrf.mxu0
      %v3269 = vadd.f32 0.0, %v3268
      %v3270 = vpop.f32.mrf.mxu0
      %v3271 = vadd.f32 0.0, %v3270
      %3272 = vmatmul.bf16.gmra.mxu0 %v3187
      %v3273 = vpop.f32.mrf.mxu0
      %v3274 = vadd.f32 0.0, %v3273
      %v3275 = vpop.f32.mrf.mxu0
      %v3276 = vadd.f32 0.0, %v3275
      %3277 = vmatmul.bf16.gmra.mxu0 %v3190
      %v3278 = vpop.f32.mrf.mxu0
      %v3279 = vadd.f32 0.0, %v3278
      %v3280 = vpop.f32.mrf.mxu0
      %v3281 = vadd.f32 0.0, %v3280
      %3282 = vmatmul.bf16.gmra.mxu0 %v3193
      %v3283 = vpop.f32.mrf.mxu0
      %v3284 = vadd.f32 0.0, %v3283
      %v3285 = vpop.f32.mrf.mxu0
      %v3286 = vadd.f32 0.0, %v3285
      %3287 = vmatmul.bf16.gmra.mxu0 %v3196
      %v3288 = vpop.f32.mrf.mxu0
      %v3289 = vadd.f32 0.0, %v3288
      %v3290 = vpop.f32.mrf.mxu0
      %v3291 = vadd.f32 0.0, %v3290
      %3292 = vmatmul.bf16.gmra.mxu0 %v3199
      %v3293 = vpop.f32.mrf.mxu0
      %v3294 = vadd.f32 0.0, %v3293
      %v3295 = vpop.f32.mrf.mxu0
      %v3296 = vadd.f32 0.0, %v3295
      %3297 = vmatmul.bf16.gmra.mxu0 %v3202
      %v3298 = vpop.f32.mrf.mxu0
      %v3299 = vadd.f32 0.0, %v3298
      %v3300 = vpop.f32.mrf.mxu0
      %v3301 = vadd.f32 0.0, %v3300
      %3302 = vmatmul.bf16.gmra.mxu0 %v3205
      %v3303 = vpop.f32.mrf.mxu0
      %v3304 = vadd.f32 0.0, %v3303
      %v3305 = vpop.f32.mrf.mxu0
      %v3306 = vadd.f32 0.0, %v3305
      %3307 = vmatmul.bf16.gmra.mxu0 %v3208
      %v3308 = vpop.f32.mrf.mxu0
      %v3309 = vadd.f32 0.0, %v3308
      %v3310 = vpop.f32.mrf.mxu0
      %v3311 = vadd.f32 0.0, %v3310
      %3312 = vdwg.mxu0
      %v3313 = vld [vmem:[%s453] sm:$0x1]
      %v3315 = vperm.slane %v3313, 0
      %v3317 = vmul.f32 %v3224, %v3315
      %v3318 = vmul.f32 %v3226, %v3315
      %v3319 = vmul.f32 %v3229, %v3315
      %v3320 = vmul.f32 %v3231, %v3315
      %v3321 = vmul.f32 %v3234, %v3315
      %v3322 = vmul.f32 %v3236, %v3315
      %v3323 = vmul.f32 %v3239, %v3315
      %v3324 = vmul.f32 %v3241, %v3315
      %v3325 = vmul.f32 %v3244, %v3315
      %v3326 = vmul.f32 %v3246, %v3315
      %v3327 = vmul.f32 %v3249, %v3315
      %v3328 = vmul.f32 %v3251, %v3315
      %v3329 = vmul.f32 %v3254, %v3315
      %v3330 = vmul.f32 %v3256, %v3315
      %v3331 = vmul.f32 %v3259, %v3315
      %v3332 = vmul.f32 %v3261, %v3315
      %v3333 = vmul.f32 %v3264, %v3315
      %v3334 = vmul.f32 %v3266, %v3315
      %v3335 = vmul.f32 %v3269, %v3315
      %v3336 = vmul.f32 %v3271, %v3315
      %v3337 = vmul.f32 %v3274, %v3315
      %v3338 = vmul.f32 %v3276, %v3315
      %v3339 = vmul.f32 %v3279, %v3315
      %v3340 = vmul.f32 %v3281, %v3315
      %v3341 = vmul.f32 %v3284, %v3315
      %v3342 = vmul.f32 %v3286, %v3315
      %v3343 = vmul.f32 %v3289, %v3315
      %v3344 = vmul.f32 %v3291, %v3315
      %v3345 = vmul.f32 %v3294, %v3315
      %v3346 = vmul.f32 %v3296, %v3315
      %v3347 = vmul.f32 %v3299, %v3315
      %v3348 = vmul.f32 %v3301, %v3315
      %v3349 = vmul.f32 %v3304, %v3315
      %v3350 = vmul.f32 %v3306, %v3315
      %v3351 = vmul.f32 %v3309, %v3315
      %v3352 = vmul.f32 %v3311, %v3315
      %v3353 = vadd.f32 %v2992, %v3317
      %v3354 = vadd.f32 %v2993, %v3318
      %v3355 = vadd.f32 %v2994, %v3319
      %v3356 = vadd.f32 %v2995, %v3320
      %v3357 = vadd.f32 %v2996, %v3321
      %v3358 = vadd.f32 %v2997, %v3322
      %v3359 = vadd.f32 %v2998, %v3323
      %v3360 = vadd.f32 %v2999, %v3324
      %v3361 = vadd.f32 %v3000, %v3325
      %v3362 = vadd.f32 %v3001, %v3326
      %v3363 = vadd.f32 %v3002, %v3327
      %v3364 = vadd.f32 %v3003, %v3328
      %v3365 = vadd.f32 %v3004, %v3329
      %v3366 = vadd.f32 %v3005, %v3330
      %v3367 = vadd.f32 %v3006, %v3331
      %v3368 = vadd.f32 %v3007, %v3332
      %v3369 = vadd.f32 %v3008, %v3333
      %v3370 = vadd.f32 %v3009, %v3334
      %v3371 = vadd.f32 %v3010, %v3335
      %v3372 = vadd.f32 %v3011, %v3336
      %v3373 = vadd.f32 %v3012, %v3337
      %v3374 = vadd.f32 %v3013, %v3338
      %v3375 = vadd.f32 %v3014, %v3339
      %v3376 = vadd.f32 %v3015, %v3340
      %v3377 = vadd.f32 %v3016, %v3341
      %v3378 = vadd.f32 %v3017, %v3342
      %v3379 = vadd.f32 %v3018, %v3343
      %v3380 = vadd.f32 %v3019, %v3344
      %v3381 = vadd.f32 %v3020, %v3345
      %v3382 = vadd.f32 %v3021, %v3346
      %v3383 = vadd.f32 %v3022, %v3347
      %v3384 = vadd.f32 %v3023, %v3348
      %v3385 = vadd.f32 %v3024, %v3349
      %v3386 = vadd.f32 %v3025, %v3350
      %v3387 = vadd.f32 %v3026, %v3351
      %v3388 = vadd.f32 %v3027, %v3352
      %v3389 = vld [vmem:[%s456] sm:$0x1]
      %v3391 = vperm.slane %v3389, 0
      %v3393 = vadd.f32 %v3353, %v3391
      %v3394 = vadd.f32 %v3354, %v3391
      %v3395 = vadd.f32 %v3355, %v3391
      %v3396 = vadd.f32 %v3356, %v3391
      %v3397 = vadd.f32 %v3357, %v3391
      %v3398 = vadd.f32 %v3358, %v3391
      %v3399 = vadd.f32 %v3359, %v3391
      %v3400 = vadd.f32 %v3360, %v3391
      %v3401 = vadd.f32 %v3361, %v3391
      %v3402 = vadd.f32 %v3362, %v3391
      %v3403 = vadd.f32 %v3363, %v3391
      %v3404 = vadd.f32 %v3364, %v3391
      %v3405 = vadd.f32 %v3365, %v3391
      %v3406 = vadd.f32 %v3366, %v3391
      %v3407 = vadd.f32 %v3367, %v3391
      %v3408 = vadd.f32 %v3368, %v3391
      %v3409 = vadd.f32 %v3369, %v3391
      %v3410 = vadd.f32 %v3370, %v3391
      %v3411 = vadd.f32 %v3371, %v3391
      %v3412 = vadd.f32 %v3372, %v3391
      %v3413 = vadd.f32 %v3373, %v3391
      %v3414 = vadd.f32 %v3374, %v3391
      %v3415 = vadd.f32 %v3375, %v3391
      %v3416 = vadd.f32 %v3376, %v3391
      %v3417 = vadd.f32 %v3377, %v3391
      %v3418 = vadd.f32 %v3378, %v3391
      %v3419 = vadd.f32 %v3379, %v3391
      %v3420 = vadd.f32 %v3380, %v3391
      %v3421 = vadd.f32 %v3381, %v3391
      %v3422 = vadd.f32 %v3382, %v3391
      %v3423 = vadd.f32 %v3383, %v3391
      %v3424 = vadd.f32 %v3384, %v3391
      %v3425 = vadd.f32 %v3385, %v3391
      %v3426 = vadd.f32 %v3386, %v3391
      %v3427 = vadd.f32 %v3387, %v3391
      %v3428 = vadd.f32 %v3388, %v3391
      %v3429 = vmax.f32 %v3393, 0.0
      %v3430 = vmax.f32 %v3394, 0.0
      %v3431 = vmax.f32 %v3395, 0.0
      %v3432 = vmax.f32 %v3396, 0.0
      %v3433 = vmax.f32 %v3397, 0.0
      %v3434 = vmax.f32 %v3398, 0.0
      %v3435 = vmax.f32 %v3399, 0.0
      %v3436 = vmax.f32 %v3400, 0.0
      %v3437 = vmax.f32 %v3401, 0.0
      %v3438 = vmax.f32 %v3402, 0.0
      %v3439 = vmax.f32 %v3403, 0.0
      %v3440 = vmax.f32 %v3404, 0.0
      %v3441 = vmax.f32 %v3405, 0.0
      %v3442 = vmax.f32 %v3406, 0.0
      %v3443 = vmax.f32 %v3407, 0.0
      %v3444 = vmax.f32 %v3408, 0.0
      %v3445 = vmax.f32 %v3409, 0.0
      %v3446 = vmax.f32 %v3410, 0.0
      %v3447 = vmax.f32 %v3411, 0.0
      %v3448 = vmax.f32 %v3412, 0.0
      %v3449 = vmax.f32 %v3413, 0.0
      %v3450 = vmax.f32 %v3414, 0.0
      %v3451 = vmax.f32 %v3415, 0.0
      %v3452 = vmax.f32 %v3416, 0.0
      %v3453 = vmax.f32 %v3417, 0.0
      %v3454 = vmax.f32 %v3418, 0.0
      %v3455 = vmax.f32 %v3419, 0.0
      %v3456 = vmax.f32 %v3420, 0.0
      %v3457 = vmax.f32 %v3421, 0.0
      %v3458 = vmax.f32 %v3422, 0.0
      %v3459 = vmax.f32 %v3423, 0.0
      %v3460 = vmax.f32 %v3424, 0.0
      %v3461 = vmax.f32 %v3425, 0.0
      %v3462 = vmax.f32 %v3426, 0.0
      %v3463 = vmax.f32 %v3427, 0.0
      %v3464 = vmax.f32 %v3428, 0.0
      %v3465 = vpack.c.bf16 %v3429, %v3429
      %v3466 = vpack.c.bf16 %v3430, %v3430
      %v3467 = vpack.c.bf16 %v3431, %v3431
      %v3468 = vpack.c.bf16 %v3432, %v3432
      %v3469 = vpack.c.bf16 %v3433, %v3433
      %v3470 = vpack.c.bf16 %v3434, %v3434
      %v3471 = vpack.c.bf16 %v3435, %v3435
      %v3472 = vpack.c.bf16 %v3436, %v3436
      %v3473 = vpack.c.bf16 %v3437, %v3437
      %v3474 = vpack.c.bf16 %v3438, %v3438
      %v3475 = vpack.c.bf16 %v3439, %v3439
      %v3476 = vpack.c.bf16 %v3440, %v3440
      %v3477 = vpack.c.bf16 %v3441, %v3441
      %v3478 = vpack.c.bf16 %v3442, %v3442
      %v3479 = vpack.c.bf16 %v3443, %v3443
      %v3480 = vpack.c.bf16 %v3444, %v3444
      %v3481 = vpack.c.bf16 %v3445, %v3445
      %v3482 = vpack.c.bf16 %v3446, %v3446
      %v3483 = vpack.c.bf16 %v3447, %v3447
      %v3484 = vpack.c.bf16 %v3448, %v3448
      %v3485 = vpack.c.bf16 %v3449, %v3449
      %v3486 = vpack.c.bf16 %v3450, %v3450
      %v3487 = vpack.c.bf16 %v3451, %v3451
      %v3488 = vpack.c.bf16 %v3452, %v3452
      %v3489 = vpack.c.bf16 %v3453, %v3453
      %v3490 = vpack.c.bf16 %v3454, %v3454
      %v3491 = vpack.c.bf16 %v3455, %v3455
      %v3492 = vpack.c.bf16 %v3456, %v3456
      %v3493 = vpack.c.bf16 %v3457, %v3457
      %v3494 = vpack.c.bf16 %v3458, %v3458
      %v3495 = vpack.c.bf16 %v3459, %v3459
      %v3496 = vpack.c.bf16 %v3460, %v3460
      %v3497 = vpack.c.bf16 %v3461, %v3461
      %v3498 = vpack.c.bf16 %v3462, %v3462
      %v3499 = vpack.c.bf16 %v3463, %v3463
      %v3500 = vpack.c.bf16 %v3464, %v3464
      %3501 = vst [vmem:[%s468] sm:$0xf] %v3465
      %3502 = vst [vmem:[%s468 + $0x4] sm:$0xf] %v3466
      %3503 = vst [vmem:[%s468 + $0x8] sm:$0xf] %v3467
      %3504 = vst [vmem:[%s468 + $0xc] sm:$0xf] %v3468
      %3505 = vst [vmem:[%s468 + $0x10] sm:$0xf] %v3469
      %3506 = vst [vmem:[%s468 + $0x14] sm:$0xf] %v3470
      %3507 = vst [vmem:[%s468 + $0x18] sm:$0xf] %v3471
      %3508 = vst [vmem:[%s468 + $0x1c] sm:$0xf] %v3472
      %3509 = vst [vmem:[%s468 + $0x20] sm:$0xf] %v3473
      %3510 = vst [vmem:[%s468 + $0x24] sm:$0xf] %v3474
      %3511 = vst [vmem:[%s468 + $0x28] sm:$0xf] %v3475
      %3512 = vst [vmem:[%s468 + $0x2c] sm:$0xf] %v3476
      %3513 = vst [vmem:[%s468 + $0x30] sm:$0xf] %v3477
      %3514 = vst [vmem:[%s468 + $0x34] sm:$0xf] %v3478
      %3515 = vst [vmem:[%s468 + $0x38] sm:$0xf] %v3479
      %3516 = vst [vmem:[%s468 + $0x3c] sm:$0xf] %v3480
      %3517 = vst [vmem:[%s468 + $0x40] sm:$0xf] %v3481
      %3518 = vst [vmem:[%s468 + $0x44] sm:$0xf] %v3482
      %3519 = vst [vmem:[%s468 + $0x48] sm:$0xf] %v3483
      %3520 = vst [vmem:[%s468 + $0x4c] sm:$0xf] %v3484
      %3521 = vst [vmem:[%s468 + $0x50] sm:$0xf] %v3485
      %3522 = vst [vmem:[%s468 + $0x54] sm:$0xf] %v3486
      %3523 = vst [vmem:[%s468 + $0x58] sm:$0xf] %v3487
      %3524 = vst [vmem:[%s468 + $0x5c] sm:$0xf] %v3488
      %3525 = vst [vmem:[%s468 + $0x60] sm:$0xf] %v3489
      %3526 = vst [vmem:[%s468 + $0x64] sm:$0xf] %v3490
      %3527 = vst [vmem:[%s468 + $0x68] sm:$0xf] %v3491
      %3528 = vst [vmem:[%s468 + $0x6c] sm:$0xf] %v3492
      %3529 = vst [vmem:[%s468 + $0x70] sm:$0xf] %v3493
      %3530 = vst [vmem:[%s468 + $0x74] sm:$0xf] %v3494
      %3531 = vst [vmem:[%s468 + $0x78] sm:$0xf] %v3495
      %3532 = vst [vmem:[%s468 + $0x7c] sm:$0xf] %v3496
      %3533 = vst [vmem:[%s468 + $0x80] sm:$0xf] %v3497
      %3534 = vst [vmem:[%s468 + $0x84] sm:$0xf] %v3498
      %3535 = vst [vmem:[%s468 + $0x88] sm:$0xf] %v3499
      %3536 = vst [vmem:[%s468 + $0x8c] sm:$0xf] %v3500
      %s3537 = smul.u32 36, %s26
      %p3538 = scmp.lt.s32.totalorder %s24, 1
      %s3539 = scalar_select %p3538, %s24, 1
      %p3540 = scmp.lt.s32.totalorder %s3537, 35
      %s3541 = scalar_select %p3540, %s3537, 35
      %p3542 = scmp.lt.s32.totalorder %s25, 0
      %s3543 = scalar_select %p3542, %s25, 0
      %s3544 = sadd.s32 %s3543, %s3541
      %s3545 = smul.addr %s3539, 36
      %s3546 = sadd.s32 %s3544, %s3545
      %s3547 = smul.addr %s3546, 4
      %s3548 = scalar_lea.vmem %s8, %s3547
      // Predicated region
      $region53: #{resblock_forward.3} parent=51 // pred_check
        %p3549 = pneg %p270
      $region54: #{resblock_forward.3} parent=51 // pred_check_branch
        %3551 = sbr.rel (%p3549) target = $region56
      $region55: #{resblock_forward.3} parent=51 // pred_region
        %s3552 = smul.u32 36, %s26
      $region56: #{resblock_forward.3} parent=51 // pred_fallthru
        _
    $region52: #{resblock_forward.3} parent=5 // pred_fallthru
      _
    %p3553 = scmp.le.s32.totalorder 2, %s14
    // Predicated region
    $region57: #{resblock_forward.3} parent=5 // pred_check
      %p3554 = pneg %p3553
    $region58: #{resblock_forward.3} parent=5 // pred_check_branch
      %3556 = sbr.rel (%p3554) target = $region60
    $region59: #{resblock_forward.3} parent=5 // pred_region
      %s3557 = ssub.s32 %s14, 2
      // Predicated region
      $region61: #{resblock_forward.3} parent=59 // pred_check
        %p3558 = pneg %p276
      $region62: #{resblock_forward.3} parent=59 // pred_check_branch
        %3560 = sbr.rel (%p3558) target = $region64
      $region63: #{resblock_forward.3} parent=59 // pred_region
        %s3561 = smul.u32 36, %s29
        %p3562 = scmp.lt.s32.totalorder %s27, 1
        %s3563 = scalar_select %p3562, %s27, 1
        %p3564 = scmp.lt.s32.totalorder %s3561, 35
        %s3565 = scalar_select %p3564, %s3561, 35
        %p3566 = scmp.lt.s32.totalorder %s28, 0
        %s3567 = scalar_select %p3566, %s28, 0
        %s3568 = sadd.s32 %s3567, %s3565
        %s3569 = smul.addr %s3563, 36
        %s3570 = sadd.s32 %s3568, %s3569
        %s3571 = smul.addr %s3570, 4
        %s3572 = scalar_lea.vmem %s8, %s3571
      $region64: #{resblock_forward.3} parent=59 // pred_fallthru
        _
    $region60: #{resblock_forward.3} parent=5 // pred_fallthru
      _
  $region6: #{resblock_forward.3} parent=0 // loop_footer
    %s18 = sadd.s32 1, %s14
  $region7: #{resblock_forward.3} parent=0 // loop_footer_branch
    %13 = sbr.rel target = $region3
  $region8: #{resblock_forward.3} parent=0 // loop_exit
    _

</llo_original>
